<compile_context>
chip_gen: v6e
topology: v6e:2x2x1
jax: 0.10.0
libtpu: 0.0.40
codegen_flags: <defaults>
</compile_context>

<pallas_src>
import math
import jax
import jax.numpy as jnp
from jax import lax
from jax.experimental import pallas as pl
from jax.experimental.pallas import tpu as pltpu


# ----------------------------- in-kernel helpers -----------------------------
def _layer_norm(x, w, b, eps=1e-5):
    mu = jnp.mean(x, axis=-1, keepdims=True)
    xc = x - mu
    var = jnp.mean(xc * xc, axis=-1, keepdims=True)
    return xc * lax.rsqrt(var + eps) * w + b


def _gelu_exact(x):
    # nn.GELU() default = exact erf-based GELU (parity with PyTorch).
    return 0.5 * x * (1.0 + lax.erf(x * (1.0 / math.sqrt(2.0))))


# ------------------------------ sizing helpers --------------------------------
def _physical_vmem_bytes():
    try:
        return int(pltpu.get_tpu_info().vmem_capacity_bytes)
    except Exception:
        return 64 << 20          # conservative (v7x per-core VMEM)


def _pick_head_group(num_heads, n_tokens, attn_bytes, budget=4 << 20):
    """Largest divisor of num_heads (capped at 4) whose attn-map block fits budget."""
    best = 1
    for g in range(1, num_heads + 1):
        if num_heads % g == 0 and g <= 4 and g * n_tokens * n_tokens * attn_bytes <= budget:
            best = g
    return best


def _pick_token_chunk(n):
    """Token-row chunk for the MLP tail; smaller cap on 64 MiB-VMEM chips (v7x)."""
    max_chunk = 256 if _physical_vmem_bytes() <= (64 << 20) else 512
    if n <= max_chunk:
        return n
    for d in range(max_chunk, 7, -1):
        if n % d == 0 and d % 8 == 0:
            return d
    return n


def _vmem_limit_bytes(n, c, hd, hidden, head_group, attn_bytes, mxu_bytes, x_bytes,
                      tq, const_buffers, head_buffers):
    hghd = head_group * hd
    est = 0
    # grid-varying blocks (double-buffered by the pipeline)
    est += 2 * n * c * x_bytes                                 # x in
    est += 2 * n * c * x_bytes                                 # x out
    est += 2 * head_group * n * n * attn_bytes                 # attn-map out block
    est += head_buffers * 4 * c * hghd * mxu_bytes             # fused wq/wk/wv/wp tiles
    # constants (buffering as actually requested)
    est += const_buffers * 2 * c * hidden * mxu_bytes          # w1, w2
    est += const_buffers * (6 * c + hidden + n) * 4            # LN vecs, biases, key bias
    # persistent scratch
    est += n * c * (4 + mxu_bytes)                             # acc (f32) + y1 (bf16)
    # live temporaries
    est += 3 * n * hghd * (4 + mxu_bytes)                      # fused q/k/v
    est += 3 * n * n * 4                                       # s / e / p per head
    est += n * hghd * mxu_bytes                                # o_cat
    est += 2 * tq * hidden * 4                                 # MLP intermediates
    phys = _physical_vmem_bytes()
    return int(min(max(est * 1.2 + (2 << 20), 24 << 20), int(phys * 0.8)))


# --------------------------------- kernel ------------------------------------
def make_block_kernel(head_group, head_dim, seq_len, mxu_dtype, use_key_bias):
    tq = _pick_token_chunk(seq_len)
    n_chunks = seq_len // tq if seq_len % tq == 0 else 1
    if n_chunks == 1:
        tq = seq_len

    def kernel(x_ref, kb_ref, ln1w_ref, ln1b_ref, wq_ref, wk_ref, wv_ref, wp_ref,
               bproj_ref, ln2w_ref, ln2b_ref, w1_ref, b1_ref, w2_ref, b2_ref,
               xout_ref, attn_ref, y1_ref, acc_ref):
        h_idx = pl.program_id(1)

        # ---- first head step for this sequence: LN1 once + accumulator init ----
        @pl.when(h_idx == 0)
        def _init():
            x = x_ref[0].astype(jnp.float32)                   # (N, C)
            y1_ref[...] = _layer_norm(x, ln1w_ref[...], ln1b_ref[...]).astype(mxu_dtype)
            # fold the output-projection bias into the accumulator once
            acc_ref[...] = jnp.zeros_like(acc_ref) + bproj_ref[...]

        # ---- fused QKV for the whole head group (lane-dense MXU outputs) ----
        y = y1_ref[...]                                        # (N, C) bf16
        qf = jnp.dot(y, wq_ref[0], preferred_element_type=jnp.float32).astype(mxu_dtype)
        kf = jnp.dot(y, wk_ref[0], preferred_element_type=jnp.float32).astype(mxu_dtype)
        vf = jnp.dot(y, wv_ref[0], preferred_element_type=jnp.float32).astype(mxu_dtype)
        # NOTE: softmax scale is pre-folded into wq host-side.

        o_parts = []
        for hh in range(head_group):                           # small static loop
            lo = hh * head_dim
            q = qf[:, lo:lo + head_dim]
            k = kf[:, lo:lo + head_dim]
            v = vf[:, lo:lo + head_dim]
            # q @ k^T without materializing a transpose (contract head_dim).
            s = lax.dot_general(q, k, dimension_numbers=(((1,), (1,)), ((), ())),
                                preferred_element_type=jnp.float32)       # (N, N)
            if use_key_bias:
                s = s + kb_ref[...]                            # mask padded key columns
            s = s - jnp.max(s, axis=-1, keepdims=True)
            e = jnp.exp(s)
            inv = 1.0 / jnp.sum(e, axis=-1, keepdims=True)     # exact (N,1) divide
            p = e * inv
            attn_ref[0, hh] = p.astype(attn_ref.dtype)
            o_parts.append(jnp.dot(p.astype(mxu_dtype), v,
                                   preferred_element_type=jnp.float32).astype(mxu_dtype))

        # ---- fused output projection: one deep (HG*hd) contraction ----
        o_cat = jnp.concatenate(o_parts, axis=-1) if head_group > 1 else o_parts[0]
        acc_ref[...] += jnp.dot(o_cat, wp_ref[0], preferred_element_type=jnp.float32)

        # ---- last head step: residual + MLP, write x_out ----
        @pl.when(h_idx == pl.num_programs(1) - 1)
        def _finish():
            def mlp_rows(x_rows, acc_rows):
                x1 = x_rows + acc_rows                         # bproj already in acc
                y2 = _layer_norm(x1, ln2w_ref[...], ln2b_ref[...])
                hdn = jnp.dot(y2.astype(mxu_dtype), w1_ref[...],
                              preferred_element_type=jnp.float32) + b1_ref[...]
                hdn = _gelu_exact(hdn)
                m = jnp.dot(hdn.astype(mxu_dtype), w2_ref[...],
                            preferred_element_type=jnp.float32) + b2_ref[...]
                return x1 + m

            if n_chunks == 1:
                xout_ref[0] = mlp_rows(x_ref[0].astype(jnp.float32),
                                       acc_ref[...]).astype(xout_ref.dtype)
            else:
                def body(i, carry):
                    r0 = pl.multiple_of(i * tq, tq)
                    rows = pl.ds(r0, tq)
                    out = mlp_rows(x_ref[0, rows, :].astype(jnp.float32),
                                   acc_ref[rows, :])
                    xout_ref[0, rows, :] = out.astype(xout_ref.dtype)
                    return carry
                lax.fori_loop(0, n_chunks, body, 0)

    return kernel, tq


# --------------------------------- wrapper ------------------------------------
def block_apply(params, x, num_heads, *, head_group=None,
                attn_dtype=jnp.float32, mxu_dtype=jnp.bfloat16, head_buffers=2):
    """x: (B2, N, C) -> (x_out (B2,N,C), attn (B2,H,N,N)).

    attn_dtype=jnp.bfloat16 is the fast path on v5e/v6e (halves attn-map HBM
    writeback); default f32 matches the PyTorch reference exactly in dtype.
    """
    B2, N, C = x.shape
    assert C % num_heads == 0
    hd = C // num_heads
    hidden = params["w1"].shape[1]
    attn_bytes = jnp.dtype(attn_dtype).itemsize
    mxu_bytes = jnp.dtype(mxu_dtype).itemsize

    # ---- pad tokens so attn stores / score temporaries are sublane/lane dense ----
    pad_to = 128 if N >= 128 else 8
    N_pad = -(-N // pad_to) * pad_to
    padded = N_pad != N
    x_p = jnp.pad(x, ((0, 0), (0, N_pad - N), (0, 0))) if padded else x
    key_bias = jnp.where(jnp.arange(N_pad) < N, 0.0, -1e30).astype(jnp.float32)[None, :]

    if head_group is None:
        head_group = _pick_head_group(num_heads, N_pad, attn_bytes)
    assert num_heads % head_group == 0
    n_htiles = num_heads // head_group
    hghd = head_group * hd

    # ---- host-side repack: fused per-head-group layouts, bf16 MXU operands ----
    f32 = jnp.float32
    scale = hd ** -0.5
    w_qkv = params["w_qkv"].astype(f32)

    def fuse_heads(w, s=1.0):
        # (C, C) with per-head contiguous columns -> (n_htiles, C, HG*hd)
        return (w.reshape(C, n_htiles, head_group, hd)
                 .transpose(1, 0, 2, 3)
                 .reshape(n_htiles, C, hghd) * s).astype(mxu_dtype)

    wq = fuse_heads(w_qkv[:, 0 * C:1 * C], scale)      # softmax scale folded in
    wk = fuse_heads(w_qkv[:, 1 * C:2 * C])
    wv = fuse_heads(w_qkv[:, 2 * C:3 * C])
    wp = params["w_proj"].astype(f32).reshape(n_htiles, hghd, C).astype(mxu_dtype)
    w1 = params["w1"].astype(mxu_dtype)
    w2 = params["w2"].astype(mxu_dtype)
    ln1w = params["ln1_w"].astype(f32)
    ln1b = params["ln1_b"].astype(f32)
    ln2w = params["ln2_w"].astype(f32)
    ln2b = params["ln2_b"].astype(f32)
    bproj = params["b_proj"].astype(f32)
    b1 = params["b1"].astype(f32)
    b2 = params["b2"].astype(f32)

    kernel, tq = make_block_kernel(head_group, hd, N_pad, mxu_dtype, use_key_bias=padded)

    def build_call(use_pipeline_mode):
        const_buffers = 1 if use_pipeline_mode else 2

        def const_spec(a):
            zeros = (0,) * a.ndim
            if use_pipeline_mode:
                return pl.BlockSpec(a.shape, lambda b, h: zeros,
                                    pipeline_mode=pl.Buffered(1))
            return pl.BlockSpec(a.shape, lambda b, h: zeros)

        def head_spec(a):
            if use_pipeline_mode:
                return pl.BlockSpec((1,) + a.shape[1:], lambda b, h: (h, 0, 0),
                                    pipeline_mode=pl.Buffered(head_buffers))
            return pl.BlockSpec((1,) + a.shape[1:], lambda b, h: (h, 0, 0))

        in_specs = [
            pl.BlockSpec((1, N_pad, C), lambda b, h: (b, 0, 0)),       # x
            const_spec(key_bias),
            const_spec(ln1w), const_spec(ln1b),
            head_spec(wq), head_spec(wk), head_spec(wv), head_spec(wp),
            const_spec(bproj),
            const_spec(ln2w), const_spec(ln2b),
            const_spec(w1), const_spec(b1),
            const_spec(w2), const_spec(b2),
        ]
        out_shape = (jax.ShapeDtypeStruct((B2, N_pad, C), x.dtype),
                     jax.ShapeDtypeStruct((B2, num_heads, N_pad, N_pad), attn_dtype))
        out_specs = (pl.BlockSpec((1, N_pad, C), lambda b, h: (b, 0, 0)),
                     pl.BlockSpec((1, head_group, N_pad, N_pad), lambda b, h: (b, h, 0, 0)))

        vmem_limit = _vmem_limit_bytes(N_pad, C, hd, hidden, head_group,
                                       attn_bytes, mxu_bytes, x.dtype.itemsize,
                                       tq, const_buffers, max(head_buffers, 2))

        return pl.pallas_call(
            kernel,
            grid=(B2, n_htiles),
            in_specs=in_specs,
            out_specs=out_specs,
            out_shape=out_shape,
            scratch_shapes=[pltpu.VMEM((N_pad, C), mxu_dtype),     # LN1(x) cache
                            pltpu.VMEM((N_pad, C), jnp.float32)],  # proj accumulator
            compiler_params=pltpu.CompilerParams(
                dimension_semantics=("parallel", "arbitrary"),
                vmem_limit_bytes=vmem_limit),
        )

    args = (x_p, key_bias, ln1w, ln1b, wq, wk, wv, wp, bproj,
            ln2w, ln2b, w1, b1, w2, b2)
    try:
        x_out, attn = build_call(True)(*args)
    except Exception:
        # TODO(synk): pipeline_mode=pl.Buffered(1) unavailable on this JAX build;
        # fall back to default double-buffering (correctness identical).
        x_out, attn = build_call(False)(*args)

    if padded:
        x_out = x_out[:, :N, :]
        attn = attn[:, :, :N, :N]
    return x_out, attn


def block_forward(params, x_rgb, x_tir, mask=None, pos_emb=None, pos_emb_z=None,
                  *, num_heads, head_group=None, attn_dtype=jnp.float32,
                  mxu_dtype=jnp.bfloat16, head_buffers=2):
    """Mirrors Block.forward: drop_path=0 / dropouts=0 -> identity; pos_emb /
    pos_emb_z are unused in the reference forward."""
    # TODO(synk): Attention's mask handling is not shown in the reference source;
    # only mask=None is supported here.
    assert mask is None, "mask handling not implemented (source of Attention not given)"
    B = x_rgb.shape[0]
    xcat = jnp.concatenate([x_rgb, x_tir], axis=0)          # share one pallas_call
    x_out, attn = block_apply(params, xcat, num_heads, head_group=head_group,
                              attn_dtype=attn_dtype, mxu_dtype=mxu_dtype,
                              head_buffers=head_buffers)
    return x_out[:B], x_out[B:], attn[:B], attn[B:]


# --------------------------- deterministic params ------------------------------
def init_params(key, dim, mlp_ratio=4.0):
    hidden = int(dim * mlp_ratio)
    ks = jax.random.split(key, 4)
    std = 0.02
    f32 = jnp.float32
    return {
        "ln1_w": jnp.ones((1, dim), f32),
        "ln1_b": jnp.zeros((1, dim), f32),
        "w_qkv": std * jax.random.normal(ks[0], (dim, 3 * dim), f32),
        "w_proj": std * jax.random.normal(ks[1], (dim, dim), f32),
        "b_proj": jnp.zeros((1, dim), f32),
        "ln2_w": jnp.ones((1, dim), f32),
        "ln2_b": jnp.zeros((1, dim), f32),
        "w1": std * jax.random.normal(ks[2], (dim, hidden), f32),
        "b1": jnp.zeros((1, hidden), f32),
        "w2": std * jax.random.normal(ks[3], (hidden, dim), f32),
        "b2": jnp.zeros((1, dim), f32),
    }


# ------------------------------ pure-JAX reference ------------------------------
def _block_reference(params, x, num_heads):
    B, N, C = x.shape
    hd = C // num_heads

    def ln(v, w, b, eps=1e-5):
        mu = v.mean(-1, keepdims=True)
        vc = v - mu
        var = (vc * vc).mean(-1, keepdims=True)
        return vc / jnp.sqrt(var + eps) * w + b

    y = ln(x, params["ln1_w"], params["ln1_b"])
    qkv = (y @ params["w_qkv"]).reshape(B, N, 3, num_heads, hd).transpose(2, 0, 3, 1, 4)
    q, k, v = qkv[0], qkv[1], qkv[2]
    s = jnp.einsum("bhqd,bhkd->bhqk", q, k) * (hd ** -0.5)
    attn = jax.nn.softmax(s, axis=-1)
    o = jnp.einsum("bhqk,bhkd->bhqd", attn, v)
    o = o.transpose(0, 2, 1, 3).reshape(B, N, C)
    x = x + (o @ params["w_proj"] + params["b_proj"])
    y2 = ln(x, params["ln2_w"], params["ln2_b"])
    h = jax.nn.gelu(y2 @ params["w1"] + params["b1"], approximate=False)
    x = x + (h @ params["w2"] + params["b2"])
    return x, attn


if __name__ == "__main__":
    B, N, DIM, HEADS = 2, 8, 32, 4
    key = jax.random.PRNGKey(0)
    k_rgb, k_tir, k_par, k_x2 = jax.random.split(key, 4)

    x_rgb = jax.random.normal(k_rgb, (B, N, DIM), jnp.float32)
    x_tir = jax.random.normal(k_tir, (B, N, DIM), jnp.float32)
    params = init_params(k_par, DIM, mlp_ratio=4.0)

    # head_group=2 -> 2 head-tiles per sequence (exercises the accumulator path).
    x_rgb_out, x_tir_out, corr_rgb, corr_tir = block_forward(
        params, x_rgb, x_tir, mask=None, pos_emb=None, pos_emb_z=None,
        num_heads=HEADS, head_group=2)
    jax.block_until_ready((x_rgb_out, x_tir_out, corr_rgb, corr_tir))

    assert x_rgb_out.shape == (B, N, DIM) and x_tir_out.shape == (B, N, DIM)
    assert corr_rgb.shape == (B, HEADS, N, N) and corr_tir.shape == (B, HEADS, N, N)

    def maxdiff(a, b):
        return float(jnp.max(jnp.abs(a - b)))

    xr_ref, ar_ref = _block_reference(params, x_rgb, HEADS)
    xt_ref, at_ref = _block_reference(params, x_tir, HEADS)
    assert maxdiff(x_rgb_out, xr_ref) < 5e-2, maxdiff(x_rgb_out, xr_ref)
    assert maxdiff(x_tir_out, xt_ref) < 5e-2, maxdiff(x_tir_out, xt_ref)
    assert maxdiff(corr_rgb, ar_ref) < 2e-2, maxdiff(corr_rgb, ar_ref)
    assert maxdiff(corr_tir, at_ref) < 2e-2, maxdiff(corr_tir, at_ref)

    # second case: N not a multiple of 8 -> exercises the padding / key-mask path.
    N2 = 12
    x2 = jax.random.normal(k_x2, (1, N2, DIM), jnp.float32)
    x2a_out, x2b_out, a2a, a2b = block_forward(
        params, x2, x2, mask=None, pos_emb=None, pos_emb_z=None, num_heads=HEADS)
    jax.block_until_ready((x2a_out, a2a))
    x2_ref, a2_ref = _block_reference(params, x2, HEADS)
    assert x2a_out.shape == (1, N2, DIM) and a2a.shape == (1, HEADS, N2, N2)
    assert maxdiff(x2a_out, x2_ref) < 5e-2, maxdiff(x2a_out, x2_ref)
    assert maxdiff(a2a, a2_ref) < 2e-2, maxdiff(a2a, a2_ref)

    print("KERNEL_OK")
</pallas_src>

<mosaic_0001>
module attributes {stable_mosaic.version = 11 : i64} {
  func.func @kernel(%arg0: i32, %arg1: i32, %arg2: memref<1x8x32xf32, #tpu.memory_space<vmem>>, %arg3: memref<1x8xf32, #tpu.memory_space<vmem>>, %arg4: memref<1x32xf32, #tpu.memory_space<vmem>>, %arg5: memref<1x32xf32, #tpu.memory_space<vmem>>, %arg6: memref<1x32x16xbf16, #tpu.memory_space<vmem>>, %arg7: memref<1x32x16xbf16, #tpu.memory_space<vmem>>, %arg8: memref<1x32x16xbf16, #tpu.memory_space<vmem>>, %arg9: memref<1x16x32xbf16, #tpu.memory_space<vmem>>, %arg10: memref<1x32xf32, #tpu.memory_space<vmem>>, %arg11: memref<1x32xf32, #tpu.memory_space<vmem>>, %arg12: memref<1x32xf32, #tpu.memory_space<vmem>>, %arg13: memref<32x128xbf16, #tpu.memory_space<vmem>>, %arg14: memref<1x128xf32, #tpu.memory_space<vmem>>, %arg15: memref<128x32xbf16, #tpu.memory_space<vmem>>, %arg16: memref<1x32xf32, #tpu.memory_space<vmem>>, %arg17: memref<1x8x32xf32, #tpu.memory_space<vmem>>, %arg18: memref<1x2x8x8xf32, #tpu.memory_space<vmem>>, %arg19: memref<8x32xbf16, #tpu.memory_space<vmem>>, %arg20: memref<8x32xf32, #tpu.memory_space<vmem>>) attributes {dimension_semantics = [#tpu.dimension_semantics<parallel>, #tpu.dimension_semantics<arbitrary>], iteration_bounds = array<i64: 4, 2>, scalar_prefetch = 0 : i64, scratch_operands = 2 : i64, tpu.core_type = #tpu.core_type<tc>, window_params = [{transform_indices = @transform_0, window_bounds = array<i64: 1, 8, 32>}, {pipeline_mode = #tpu.pipeline_mode<synchronous>, transform_indices = @transform_1, window_bounds = array<i64: 1, 8>}, {pipeline_mode = #tpu.pipeline_mode<synchronous>, transform_indices = @transform_2, window_bounds = array<i64: 1, 32>}, {pipeline_mode = #tpu.pipeline_mode<synchronous>, transform_indices = @transform_3, window_bounds = array<i64: 1, 32>}, {pipeline_mode = #tpu.pipeline_mode<double_buffered>, transform_indices = @transform_4, window_bounds = array<i64: 1, 32, 16>}, {pipeline_mode = #tpu.pipeline_mode<double_buffered>, transform_indices = @transform_5, window_bounds = array<i64: 1, 32, 16>}, {pipeline_mode = #tpu.pipeline_mode<double_buffered>, transform_indices = @transform_6, window_bounds = array<i64: 1, 32, 16>}, {pipeline_mode = #tpu.pipeline_mode<double_buffered>, transform_indices = @transform_7, window_bounds = array<i64: 1, 16, 32>}, {pipeline_mode = #tpu.pipeline_mode<synchronous>, transform_indices = @transform_8, window_bounds = array<i64: 1, 32>}, {pipeline_mode = #tpu.pipeline_mode<synchronous>, transform_indices = @transform_9, window_bounds = array<i64: 1, 32>}, {pipeline_mode = #tpu.pipeline_mode<synchronous>, transform_indices = @transform_10, window_bounds = array<i64: 1, 32>}, {pipeline_mode = #tpu.pipeline_mode<synchronous>, transform_indices = @transform_11, window_bounds = array<i64: 32, 128>}, {pipeline_mode = #tpu.pipeline_mode<synchronous>, transform_indices = @transform_12, window_bounds = array<i64: 1, 128>}, {pipeline_mode = #tpu.pipeline_mode<synchronous>, transform_indices = @transform_13, window_bounds = array<i64: 128, 32>}, {pipeline_mode = #tpu.pipeline_mode<synchronous>, transform_indices = @transform_14, window_bounds = array<i64: 1, 32>}, {transform_indices = @transform_15, window_bounds = array<i64: 1, 8, 32>}, {transform_indices = @transform_16, window_bounds = array<i64: 1, 2, 8, 8>}]} {
    %c0_i32 = arith.constant 0 : i32
    %0 = arith.cmpi eq, %arg1, %c0_i32 : i32
    %1 = arith.extui %0 : i1 to i32
    %c0_i32_0 = arith.constant 0 : i32
    %2 = arith.cmpi ne, %1, %c0_i32_0 : i32
    scf.if %2 {
      %c0_39 = arith.constant 0 : index
      %c0_40 = arith.constant 0 : index
      %c0_41 = arith.constant 0 : index
      %68 = vector.load %arg2[%c0_39, %c0_40, %c0_41] : memref<1x8x32xf32, #tpu.memory_space<vmem>>, vector<1x8x32xf32>
      %69 = vector.shape_cast %68 : vector<1x8x32xf32> to vector<8x32xf32>
      %c0_42 = arith.constant 0 : index
      %c0_43 = arith.constant 0 : index
      %70 = vector.load %arg4[%c0_42, %c0_43] : memref<1x32xf32, #tpu.memory_space<vmem>>, vector<1x32xf32>
      %c0_44 = arith.constant 0 : index
      %c0_45 = arith.constant 0 : index
      %71 = vector.load %arg5[%c0_44, %c0_45] : memref<1x32xf32, #tpu.memory_space<vmem>>, vector<1x32xf32>
      %cst_46 = arith.constant dense<0.000000e+00> : vector<8xf32>
      %72 = vector.multi_reduction <add>, %69, %cst_46 [1] : vector<8x32xf32> to vector<8xf32>
      %73 = vector.shape_cast %72 : vector<8xf32> to vector<8x1xf32>
      %cst_47 = arith.constant 3.200000e+01 : f32
      %74 = vector.broadcast %cst_47 : f32 to vector<8x1xf32>
      %75 = arith.divf %73, %74 : vector<8x1xf32>
      %76 = vector.broadcast %75 : vector<8x1xf32> to vector<8x32xf32>
      %77 = arith.subf %69, %76 : vector<8x32xf32>
      %78 = arith.mulf %77, %77 : vector<8x32xf32>
      %cst_48 = arith.constant dense<0.000000e+00> : vector<8xf32>
      %79 = vector.multi_reduction <add>, %78, %cst_48 [1] : vector<8x32xf32> to vector<8xf32>
      %80 = vector.shape_cast %79 : vector<8xf32> to vector<8x1xf32>
      %cst_49 = arith.constant 3.200000e+01 : f32
      %81 = vector.broadcast %cst_49 : f32 to vector<8x1xf32>
      %82 = arith.divf %80, %81 : vector<8x1xf32>
      %cst_50 = arith.constant 9.99999974E-6 : f32
      %83 = vector.broadcast %cst_50 : f32 to vector<8x1xf32>
      %84 = arith.addf %82, %83 : vector<8x1xf32>
      %85 = math.rsqrt %84 : vector<8x1xf32>
      %86 = vector.broadcast %85 : vector<8x1xf32> to vector<8x32xf32>
      %87 = arith.mulf %77, %86 : vector<8x32xf32>
      %88 = vector.broadcast %70 : vector<1x32xf32> to vector<8x32xf32>
      %89 = arith.mulf %87, %88 : vector<8x32xf32>
      %90 = vector.broadcast %71 : vector<1x32xf32> to vector<8x32xf32>
      %91 = arith.addf %89, %90 : vector<8x32xf32>
      %92 = arith.truncf %91 : vector<8x32xf32> to vector<8x32xbf16>
      %c0_51 = arith.constant 0 : index
      %c0_52 = arith.constant 0 : index
      %93 = vector.load %arg19[%c0_51, %c0_52] : memref<8x32xbf16, #tpu.memory_space<vmem>>, vector<8x32xbf16>
      tpu.vector_store %arg19[%c0_51, %c0_52], %92 {strides = array<i32>} : memref<8x32xbf16, #tpu.memory_space<vmem>>, vector<8x32xbf16>,
      %cst_53 = arith.constant 0.000000e+00 : f32
      %94 = vector.broadcast %cst_53 : f32 to vector<8x32xf32>
      %c0_54 = arith.constant 0 : index
      %c0_55 = arith.constant 0 : index
      %95 = vector.load %arg10[%c0_54, %c0_55] : memref<1x32xf32, #tpu.memory_space<vmem>>, vector<1x32xf32>
      %96 = vector.broadcast %95 : vector<1x32xf32> to vector<8x32xf32>
      %97 = arith.addf %94, %96 : vector<8x32xf32>
      %c0_56 = arith.constant 0 : index
      %c0_57 = arith.constant 0 : index
      %98 = vector.load %arg20[%c0_56, %c0_57] : memref<8x32xf32, #tpu.memory_space<vmem>>, vector<8x32xf32>
      tpu.vector_store %arg20[%c0_56, %c0_57], %97 {strides = array<i32>} : memref<8x32xf32, #tpu.memory_space<vmem>>, vector<8x32xf32>,
    } else {
    }
    %c0 = arith.constant 0 : index
    %c0_1 = arith.constant 0 : index
    %3 = vector.load %arg19[%c0, %c0_1] : memref<8x32xbf16, #tpu.memory_space<vmem>>, vector<8x32xbf16>
    %c0_2 = arith.constant 0 : index
    %c0_3 = arith.constant 0 : index
    %c0_4 = arith.constant 0 : index
    %4 = vector.load %arg6[%c0_2, %c0_3, %c0_4] : memref<1x32x16xbf16, #tpu.memory_space<vmem>>, vector<1x32x16xbf16>
    %5 = vector.shape_cast %4 : vector<1x32x16xbf16> to vector<32x16xbf16>
    %cst = arith.constant dense<0.000000e+00> : vector<8x16xf32>
    %6 = tpu.matmul %3, %5, %cst {dimension_numbers = #tpu.dot_dimension_numbers<[1], [0], [0], [1], [0, 0, 1, 1], [], []>} : vector<8x32xbf16>, vector<32x16xbf16>, vector<8x16xf32> -> vector<8x16xf32>
    %7 = arith.truncf %6 : vector<8x16xf32> to vector<8x16xbf16>
    %c0_5 = arith.constant 0 : index
    %c0_6 = arith.constant 0 : index
    %c0_7 = arith.constant 0 : index
    %8 = vector.load %arg7[%c0_5, %c0_6, %c0_7] : memref<1x32x16xbf16, #tpu.memory_space<vmem>>, vector<1x32x16xbf16>
    %9 = vector.shape_cast %8 : vector<1x32x16xbf16> to vector<32x16xbf16>
    %cst_8 = arith.constant dense<0.000000e+00> : vector<8x16xf32>
    %10 = tpu.matmul %3, %9, %cst_8 {dimension_numbers = #tpu.dot_dimension_numbers<[1], [0], [0], [1], [0, 0, 1, 1], [], []>} : vector<8x32xbf16>, vector<32x16xbf16>, vector<8x16xf32> -> vector<8x16xf32>
    %11 = arith.truncf %10 : vector<8x16xf32> to vector<8x16xbf16>
    %c0_9 = arith.constant 0 : index
    %c0_10 = arith.constant 0 : index
    %c0_11 = arith.constant 0 : index
    %12 = vector.load %arg8[%c0_9, %c0_10, %c0_11] : memref<1x32x16xbf16, #tpu.memory_space<vmem>>, vector<1x32x16xbf16>
    %13 = vector.shape_cast %12 : vector<1x32x16xbf16> to vector<32x16xbf16>
    %cst_12 = arith.constant dense<0.000000e+00> : vector<8x16xf32>
    %14 = tpu.matmul %3, %13, %cst_12 {dimension_numbers = #tpu.dot_dimension_numbers<[1], [0], [0], [1], [0, 0, 1, 1], [], []>} : vector<8x32xbf16>, vector<32x16xbf16>, vector<8x16xf32> -> vector<8x16xf32>
    %15 = arith.truncf %14 : vector<8x16xf32> to vector<8x16xbf16>
    %16 = vector.extract_strided_slice %7 {offsets = [0, 0], sizes = [8, 8], strides = [1, 1]} : vector<8x16xbf16> to vector<8x8xbf16>
    %17 = vector.extract_strided_slice %11 {offsets = [0, 0], sizes = [8, 8], strides = [1, 1]} : vector<8x16xbf16> to vector<8x8xbf16>
    %18 = vector.extract_strided_slice %15 {offsets = [0, 0], sizes = [8, 8], strides = [1, 1]} : vector<8x16xbf16> to vector<8x8xbf16>
    %cst_13 = arith.constant dense<0.000000e+00> : vector<8x8xf32>
    %19 = tpu.matmul %16, %17, %cst_13 {dimension_numbers = #tpu.dot_dimension_numbers<[1], [1], [0], [0], [0, 0, 1, 0], [], []>} : vector<8x8xbf16>, vector<8x8xbf16>, vector<8x8xf32> -> vector<8x8xf32>
    %cst_14 = arith.constant dense<0xFF800000> : vector<8xf32>
    %20 = vector.multi_reduction <maximumf>, %19, %cst_14 [1] : vector<8x8xf32> to vector<8xf32>
    %21 = vector.shape_cast %20 : vector<8xf32> to vector<8x1xf32>
    %22 = vector.broadcast %21 : vector<8x1xf32> to vector<8x8xf32>
    %23 = arith.subf %19, %22 : vector<8x8xf32>
    %24 = math.exp %23 : vector<8x8xf32>
    %cst_15 = arith.constant dense<0.000000e+00> : vector<8xf32>
    %25 = vector.multi_reduction <add>, %24, %cst_15 [1] : vector<8x8xf32> to vector<8xf32>
    %26 = vector.shape_cast %25 : vector<8xf32> to vector<8x1xf32>
    %cst_16 = arith.constant 1.000000e+00 : f32
    %27 = vector.broadcast %cst_16 : f32 to vector<8x1xf32>
    %28 = arith.divf %27, %26 : vector<8x1xf32>
    %29 = vector.broadcast %28 : vector<8x1xf32> to vector<8x8xf32>
    %30 = arith.mulf %24, %29 : vector<8x8xf32>
    %c0_17 = arith.constant 0 : index
    %c0_18 = arith.constant 0 : index
    %c0_19 = arith.constant 0 : index
    %c0_20 = arith.constant 0 : index
    %31 = vector.load %arg18[%c0_17, %c0_18, %c0_19, %c0_20] : memref<1x2x8x8xf32, #tpu.memory_space<vmem>>, vector<1x1x8x8xf32>
    %32 = vector.shape_cast %31 : vector<1x1x8x8xf32> to vector<8x8xf32>
    %33 = vector.shape_cast %30 : vector<8x8xf32> to vector<1x1x8x8xf32>
    tpu.vector_store %arg18[%c0_17, %c0_18, %c0_19, %c0_20], %33 {strides = array<i32>} : memref<1x2x8x8xf32, #tpu.memory_space<vmem>>, vector<1x1x8x8xf32>,
    %34 = arith.truncf %30 : vector<8x8xf32> to vector<8x8xbf16>
    %cst_21 = arith.constant dense<0.000000e+00> : vector<8x8xf32>
    %35 = tpu.matmul %34, %18, %cst_21 {dimension_numbers = #tpu.dot_dimension_numbers<[1], [0], [0], [1], [0, 0, 1, 1], [], []>} : vector<8x8xbf16>, vector<8x8xbf16>, vector<8x8xf32> -> vector<8x8xf32>
    %36 = arith.truncf %35 : vector<8x8xf32> to vector<8x8xbf16>
    %37 = vector.extract_strided_slice %7 {offsets = [0, 8], sizes = [8, 8], strides = [1, 1]} : vector<8x16xbf16> to vector<8x8xbf16>
    %38 = vector.extract_strided_slice %11 {offsets = [0, 8], sizes = [8, 8], strides = [1, 1]} : vector<8x16xbf16> to vector<8x8xbf16>
    %39 = vector.extract_strided_slice %15 {offsets = [0, 8], sizes = [8, 8], strides = [1, 1]} : vector<8x16xbf16> to vector<8x8xbf16>
    %cst_22 = arith.constant dense<0.000000e+00> : vector<8x8xf32>
    %40 = tpu.matmul %37, %38, %cst_22 {dimension_numbers = #tpu.dot_dimension_numbers<[1], [1], [0], [0], [0, 0, 1, 0], [], []>} : vector<8x8xbf16>, vector<8x8xbf16>, vector<8x8xf32> -> vector<8x8xf32>
    %cst_23 = arith.constant dense<0xFF800000> : vector<8xf32>
    %41 = vector.multi_reduction <maximumf>, %40, %cst_23 [1] : vector<8x8xf32> to vector<8xf32>
    %42 = vector.shape_cast %41 : vector<8xf32> to vector<8x1xf32>
    %43 = vector.broadcast %42 : vector<8x1xf32> to vector<8x8xf32>
    %44 = arith.subf %40, %43 : vector<8x8xf32>
    %45 = math.exp %44 : vector<8x8xf32>
    %cst_24 = arith.constant dense<0.000000e+00> : vector<8xf32>
    %46 = vector.multi_reduction <add>, %45, %cst_24 [1] : vector<8x8xf32> to vector<8xf32>
    %47 = vector.shape_cast %46 : vector<8xf32> to vector<8x1xf32>
    %cst_25 = arith.constant 1.000000e+00 : f32
    %48 = vector.broadcast %cst_25 : f32 to vector<8x1xf32>
    %49 = arith.divf %48, %47 : vector<8x1xf32>
    %50 = vector.broadcast %49 : vector<8x1xf32> to vector<8x8xf32>
    %51 = arith.mulf %45, %50 : vector<8x8xf32>
    %c0_26 = arith.constant 0 : index
    %c1 = arith.constant 1 : index
    %c0_27 = arith.constant 0 : index
    %c0_28 = arith.constant 0 : index
    %52 = vector.load %arg18[%c0_26, %c1, %c0_27, %c0_28] : memref<1x2x8x8xf32, #tpu.memory_space<vmem>>, vector<1x1x8x8xf32>
    %53 = vector.shape_cast %52 : vector<1x1x8x8xf32> to vector<8x8xf32>
    %54 = vector.shape_cast %51 : vector<8x8xf32> to vector<1x1x8x8xf32>
    tpu.vector_store %arg18[%c0_26, %c1, %c0_27, %c0_28], %54 {strides = array<i32>} : memref<1x2x8x8xf32, #tpu.memory_space<vmem>>, vector<1x1x8x8xf32>,
    %55 = arith.truncf %51 : vector<8x8xf32> to vector<8x8xbf16>
    %cst_29 = arith.constant dense<0.000000e+00> : vector<8x8xf32>
    %56 = tpu.matmul %55, %39, %cst_29 {dimension_numbers = #tpu.dot_dimension_numbers<[1], [0], [0], [1], [0, 0, 1, 1], [], []>} : vector<8x8xbf16>, vector<8x8xbf16>, vector<8x8xf32> -> vector<8x8xf32>
    %57 = arith.truncf %56 : vector<8x8xf32> to vector<8x8xbf16>
    %58 = tpu.concatenate %36, %57 in 1 : vector<8x8xbf16>, vector<8x8xbf16> -> vector<8x16xbf16>
    %c0_30 = arith.constant 0 : index
    %c0_31 = arith.constant 0 : index
    %59 = vector.load %arg20[%c0_30, %c0_31] : memref<8x32xf32, #tpu.memory_space<vmem>>, vector<8x32xf32>
    %c0_32 = arith.constant 0 : index
    %c0_33 = arith.constant 0 : index
    %c0_34 = arith.constant 0 : index
    %60 = vector.load %arg9[%c0_32, %c0_33, %c0_34] : memref<1x16x32xbf16, #tpu.memory_space<vmem>>, vector<1x16x32xbf16>
    %61 = vector.shape_cast %60 : vector<1x16x32xbf16> to vector<16x32xbf16>
    %cst_35 = arith.constant dense<0.000000e+00> : vector<8x32xf32>
    %62 = tpu.matmul %58, %61, %cst_35 {dimension_numbers = #tpu.dot_dimension_numbers<[1], [0], [0], [1], [0, 0, 1, 1], [], []>} : vector<8x16xbf16>, vector<16x32xbf16>, vector<8x32xf32> -> vector<8x32xf32>
    %63 = arith.addf %59, %62 : vector<8x32xf32>
    %c0_36 = arith.constant 0 : index
    %c0_37 = arith.constant 0 : index
    %64 = vector.load %arg20[%c0_36, %c0_37] : memref<8x32xf32, #tpu.memory_space<vmem>>, vector<8x32xf32>
    tpu.vector_store %arg20[%c0_36, %c0_37], %63 {strides = array<i32>} : memref<8x32xf32, #tpu.memory_space<vmem>>, vector<8x32xf32>,
    %c1_i32 = arith.constant 1 : i32
    %65 = arith.cmpi eq, %arg1, %c1_i32 : i32
    %66 = arith.extui %65 : i1 to i32
    %c0_i32_38 = arith.constant 0 : i32
    %67 = arith.cmpi ne, %66, %c0_i32_38 : i32
    scf.if %67 {
      %c0_39 = arith.constant 0 : index
      %c0_40 = arith.constant 0 : index
      %c0_41 = arith.constant 0 : index
      %68 = vector.load %arg2[%c0_39, %c0_40, %c0_41] : memref<1x8x32xf32, #tpu.memory_space<vmem>>, vector<1x8x32xf32>
      %69 = vector.shape_cast %68 : vector<1x8x32xf32> to vector<8x32xf32>
      %c0_42 = arith.constant 0 : index
      %c0_43 = arith.constant 0 : index
      %70 = vector.load %arg20[%c0_42, %c0_43] : memref<8x32xf32, #tpu.memory_space<vmem>>, vector<8x32xf32>
      %71 = arith.addf %69, %70 : vector<8x32xf32>
      %c0_44 = arith.constant 0 : index
      %c0_45 = arith.constant 0 : index
      %72 = vector.load %arg11[%c0_44, %c0_45] : memref<1x32xf32, #tpu.memory_space<vmem>>, vector<1x32xf32>
      %c0_46 = arith.constant 0 : index
      %c0_47 = arith.constant 0 : index
      %73 = vector.load %arg12[%c0_46, %c0_47] : memref<1x32xf32, #tpu.memory_space<vmem>>, vector<1x32xf32>
      %cst_48 = arith.constant dense<0.000000e+00> : vector<8xf32>
      %74 = vector.multi_reduction <add>, %71, %cst_48 [1] : vector<8x32xf32> to vector<8xf32>
      %75 = vector.shape_cast %74 : vector<8xf32> to vector<8x1xf32>
      %cst_49 = arith.constant 3.200000e+01 : f32
      %76 = vector.broadcast %cst_49 : f32 to vector<8x1xf32>
      %77 = arith.divf %75, %76 : vector<8x1xf32>
      %78 = vector.broadcast %77 : vector<8x1xf32> to vector<8x32xf32>
      %79 = arith.subf %71, %78 : vector<8x32xf32>
      %80 = arith.mulf %79, %79 : vector<8x32xf32>
      %cst_50 = arith.constant dense<0.000000e+00> : vector<8xf32>
      %81 = vector.multi_reduction <add>, %80, %cst_50 [1] : vector<8x32xf32> to vector<8xf32>
      %82 = vector.shape_cast %81 : vector<8xf32> to vector<8x1xf32>
      %cst_51 = arith.constant 3.200000e+01 : f32
      %83 = vector.broadcast %cst_51 : f32 to vector<8x1xf32>
      %84 = arith.divf %82, %83 : vector<8x1xf32>
      %cst_52 = arith.constant 9.99999974E-6 : f32
      %85 = vector.broadcast %cst_52 : f32 to vector<8x1xf32>
      %86 = arith.addf %84, %85 : vector<8x1xf32>
      %87 = math.rsqrt %86 : vector<8x1xf32>
      %88 = vector.broadcast %87 : vector<8x1xf32> to vector<8x32xf32>
      %89 = arith.mulf %79, %88 : vector<8x32xf32>
      %90 = vector.broadcast %72 : vector<1x32xf32> to vector<8x32xf32>
      %91 = arith.mulf %89, %90 : vector<8x32xf32>
      %92 = vector.broadcast %73 : vector<1x32xf32> to vector<8x32xf32>
      %93 = arith.addf %91, %92 : vector<8x32xf32>
      %94 = arith.truncf %93 : vector<8x32xf32> to vector<8x32xbf16>
      %c0_53 = arith.constant 0 : index
      %c0_54 = arith.constant 0 : index
      %95 = vector.load %arg13[%c0_53, %c0_54] : memref<32x128xbf16, #tpu.memory_space<vmem>>, vector<32x128xbf16>
      %cst_55 = arith.constant dense<0.000000e+00> : vector<8x128xf32>
      %96 = tpu.matmul %94, %95, %cst_55 {dimension_numbers = #tpu.dot_dimension_numbers<[1], [0], [0], [1], [0, 0, 1, 1], [], []>} : vector<8x32xbf16>, vector<32x128xbf16>, vector<8x128xf32> -> vector<8x128xf32>
      %c0_56 = arith.constant 0 : index
      %c0_57 = arith.constant 0 : index
      %97 = vector.load %arg14[%c0_56, %c0_57] : memref<1x128xf32, #tpu.memory_space<vmem>>, vector<1x128xf32>
      %98 = vector.broadcast %97 : vector<1x128xf32> to vector<8x128xf32>
      %99 = arith.addf %96, %98 : vector<8x128xf32>
      %cst_58 = arith.constant 5.000000e-01 : f32
      %100 = vector.broadcast %cst_58 : f32 to vector<8x128xf32>
      %101 = arith.mulf %100, %99 : vector<8x128xf32>
      %cst_59 = arith.constant 0.707106769 : f32
      %102 = vector.broadcast %cst_59 : f32 to vector<8x128xf32>
      %103 = arith.mulf %99, %102 : vector<8x128xf32>
      %104 = math.erf %103 : vector<8x128xf32>
      %cst_60 = arith.constant 1.000000e+00 : f32
      %105 = vector.broadcast %cst_60 : f32 to vector<8x128xf32>
      %106 = arith.addf %105, %104 : vector<8x128xf32>
      %107 = arith.mulf %101, %106 : vector<8x128xf32>
      %108 = arith.truncf %107 : vector<8x128xf32> to vector<8x128xbf16>
      %c0_61 = arith.constant 0 : index
      %c0_62 = arith.constant 0 : index
      %109 = vector.load %arg15[%c0_61, %c0_62] : memref<128x32xbf16, #tpu.memory_space<vmem>>, vector<128x32xbf16>
      %cst_63 = arith.constant dense<0.000000e+00> : vector<8x32xf32>
      %110 = tpu.matmul %108, %109, %cst_63 {dimension_numbers = #tpu.dot_dimension_numbers<[1], [0], [0], [1], [0, 0, 1, 1], [], []>} : vector<8x128xbf16>, vector<128x32xbf16>, vector<8x32xf32> -> vector<8x32xf32>
      %c0_64 = arith.constant 0 : index
      %c0_65 = arith.constant 0 : index
      %111 = vector.load %arg16[%c0_64, %c0_65] : memref<1x32xf32, #tpu.memory_space<vmem>>, vector<1x32xf32>
      %112 = vector.broadcast %111 : vector<1x32xf32> to vector<8x32xf32>
      %113 = arith.addf %110, %112 : vector<8x32xf32>
      %114 = arith.addf %71, %113 : vector<8x32xf32>
      %c0_66 = arith.constant 0 : index
      %c0_67 = arith.constant 0 : index
      %c0_68 = arith.constant 0 : index
      %115 = vector.load %arg17[%c0_66, %c0_67, %c0_68] : memref<1x8x32xf32, #tpu.memory_space<vmem>>, vector<1x8x32xf32>
      %116 = vector.shape_cast %115 : vector<1x8x32xf32> to vector<8x32xf32>
      %117 = vector.shape_cast %114 : vector<8x32xf32> to vector<1x8x32xf32>
      tpu.vector_store %arg17[%c0_66, %c0_67, %c0_68], %117 {strides = array<i32>} : memref<1x8x32xf32, #tpu.memory_space<vmem>>, vector<1x8x32xf32>,
    } else {
    }
    return
  }
  func.func @transform_0(%arg0: i32, %arg1: i32) -> (i32, i32, i32) {
    %c0_i32 = arith.constant 0 : i32
    %c0_i32_0 = arith.constant 0 : i32
    %c0_i32_1 = arith.constant 0 : i32
    return %arg0, %c0_i32, %c0_i32_0 : i32, i32, i32
  }
  func.func @transform_1(%arg0: i32, %arg1: i32) -> (i32, i32) {
    %c0_i32 = arith.constant 0 : i32
    %c0_i32_0 = arith.constant 0 : i32
    %c0_i32_1 = arith.constant 0 : i32
    return %c0_i32, %c0_i32_0 : i32, i32
  }
  func.func @transform_2(%arg0: i32, %arg1: i32) -> (i32, i32) {
    %c0_i32 = arith.constant 0 : i32
    %c0_i32_0 = arith.constant 0 : i32
    %c0_i32_1 = arith.constant 0 : i32
    return %c0_i32, %c0_i32_0 : i32, i32
  }
  func.func @transform_3(%arg0: i32, %arg1: i32) -> (i32, i32) {
    %c0_i32 = arith.constant 0 : i32
    %c0_i32_0 = arith.constant 0 : i32
    %c0_i32_1 = arith.constant 0 : i32
    return %c0_i32, %c0_i32_0 : i32, i32
  }
  func.func @transform_4(%arg0: i32, %arg1: i32) -> (i32, i32, i32) {
    %c0_i32 = arith.constant 0 : i32
    %c0_i32_0 = arith.constant 0 : i32
    %c0_i32_1 = arith.constant 0 : i32
    return %arg1, %c0_i32, %c0_i32_0 : i32, i32, i32
  }
  func.func @transform_5(%arg0: i32, %arg1: i32) -> (i32, i32, i32) {
    %c0_i32 = arith.constant 0 : i32
    %c0_i32_0 = arith.constant 0 : i32
    %c0_i32_1 = arith.constant 0 : i32
    return %arg1, %c0_i32, %c0_i32_0 : i32, i32, i32
  }
  func.func @transform_6(%arg0: i32, %arg1: i32) -> (i32, i32, i32) {
    %c0_i32 = arith.constant 0 : i32
    %c0_i32_0 = arith.constant 0 : i32
    %c0_i32_1 = arith.constant 0 : i32
    return %arg1, %c0_i32, %c0_i32_0 : i32, i32, i32
  }
  func.func @transform_7(%arg0: i32, %arg1: i32) -> (i32, i32, i32) {
    %c0_i32 = arith.constant 0 : i32
    %c0_i32_0 = arith.constant 0 : i32
    %c0_i32_1 = arith.constant 0 : i32
    return %arg1, %c0_i32, %c0_i32_0 : i32, i32, i32
  }
  func.func @transform_8(%arg0: i32, %arg1: i32) -> (i32, i32) {
    %c0_i32 = arith.constant 0 : i32
    %c0_i32_0 = arith.constant 0 : i32
    %c0_i32_1 = arith.constant 0 : i32
    return %c0_i32, %c0_i32_0 : i32, i32
  }
  func.func @transform_9(%arg0: i32, %arg1: i32) -> (i32, i32) {
    %c0_i32 = arith.constant 0 : i32
    %c0_i32_0 = arith.constant 0 : i32
    %c0_i32_1 = arith.constant 0 : i32
    return %c0_i32, %c0_i32_0 : i32, i32
  }
  func.func @transform_10(%arg0: i32, %arg1: i32) -> (i32, i32) {
    %c0_i32 = arith.constant 0 : i32
    %c0_i32_0 = arith.constant 0 : i32
    %c0_i32_1 = arith.constant 0 : i32
    return %c0_i32, %c0_i32_0 : i32, i32
  }
  func.func @transform_11(%arg0: i32, %arg1: i32) -> (i32, i32) {
    %c0_i32 = arith.constant 0 : i32
    %c0_i32_0 = arith.constant 0 : i32
    %c0_i32_1 = arith.constant 0 : i32
    return %c0_i32, %c0_i32_0 : i32, i32
  }
  func.func @transform_12(%arg0: i32, %arg1: i32) -> (i32, i32) {
    %c0_i32 = arith.constant 0 : i32
    %c0_i32_0 = arith.constant 0 : i32
    %c0_i32_1 = arith.constant 0 : i32
    return %c0_i32, %c0_i32_0 : i32, i32
  }
  func.func @transform_13(%arg0: i32, %arg1: i32) -> (i32, i32) {
    %c0_i32 = arith.constant 0 : i32
    %c0_i32_0 = arith.constant 0 : i32
    %c0_i32_1 = arith.constant 0 : i32
    return %c0_i32, %c0_i32_0 : i32, i32
  }
  func.func @transform_14(%arg0: i32, %arg1: i32) -> (i32, i32) {
    %c0_i32 = arith.constant 0 : i32
    %c0_i32_0 = arith.constant 0 : i32
    %c0_i32_1 = arith.constant 0 : i32
    return %c0_i32, %c0_i32_0 : i32, i32
  }
  func.func @transform_15(%arg0: i32, %arg1: i32) -> (i32, i32, i32) {
    %c0_i32 = arith.constant 0 : i32
    %c0_i32_0 = arith.constant 0 : i32
    %c0_i32_1 = arith.constant 0 : i32
    return %arg0, %c0_i32, %c0_i32_0 : i32, i32, i32
  }
  func.func @transform_16(%arg0: i32, %arg1: i32) -> (i32, i32, i32, i32) {
    %c0_i32 = arith.constant 0 : i32
    %c0_i32_0 = arith.constant 0 : i32
    %c0_i32_1 = arith.constant 0 : i32
    return %arg0, %arg1, %c0_i32, %c0_i32_0 : i32, i32, i32, i32
  }
}

module attributes {stable_mosaic.version = 11 : i64} {
  func.func @kernel(%arg0: i32, %arg1: i32, %arg2: memref<1x8x32xf32, #tpu.memory_space<vmem>>, %arg3: memref<1x8xf32, #tpu.memory_space<vmem>>, %arg4: memref<1x32xf32, #tpu.memory_space<vmem>>, %arg5: memref<1x32xf32, #tpu.memory_space<vmem>>, %arg6: memref<1x32x16xbf16, #tpu.memory_space<vmem>>, %arg7: memref<1x32x16xbf16, #tpu.memory_space<vmem>>, %arg8: memref<1x32x16xbf16, #tpu.memory_space<vmem>>, %arg9: memref<1x16x32xbf16, #tpu.memory_space<vmem>>, %arg10: memref<1x32xf32, #tpu.memory_space<vmem>>, %arg11: memref<1x32xf32, #tpu.memory_space<vmem>>, %arg12: memref<1x32xf32, #tpu.memory_space<vmem>>, %arg13: memref<32x128xbf16, #tpu.memory_space<vmem>>, %arg14: memref<1x128xf32, #tpu.memory_space<vmem>>, %arg15: memref<128x32xbf16, #tpu.memory_space<vmem>>, %arg16: memref<1x32xf32, #tpu.memory_space<vmem>>, %arg17: memref<1x8x32xf32, #tpu.memory_space<vmem>>, %arg18: memref<1x2x8x8xf32, #tpu.memory_space<vmem>>, %arg19: memref<8x32xbf16, #tpu.memory_space<vmem>>, %arg20: memref<8x32xf32, #tpu.memory_space<vmem>>) attributes {dimension_semantics = [#tpu.dimension_semantics<parallel>, #tpu.dimension_semantics<arbitrary>], iteration_bounds = array<i64: 4, 2>, scalar_prefetch = 0 : i64, scratch_operands = 2 : i64, tpu.core_type = #tpu.core_type<tc>, window_params = [{transform_indices = @transform_0, window_bounds = array<i64: 1, 8, 32>}, {pipeline_mode = #tpu.pipeline_mode<synchronous>, transform_indices = @transform_1, window_bounds = array<i64: 1, 8>}, {pipeline_mode = #tpu.pipeline_mode<synchronous>, transform_indices = @transform_2, window_bounds = array<i64: 1, 32>}, {pipeline_mode = #tpu.pipeline_mode<synchronous>, transform_indices = @transform_3, window_bounds = array<i64: 1, 32>}, {transform_indices = @transform_4, window_bounds = array<i64: 1, 32, 16>}, {transform_indices = @transform_5, window_bounds = array<i64: 1, 32, 16>}, {transform_indices = @transform_6, window_bounds = array<i64: 1, 32, 16>}, {transform_indices = @transform_7, window_bounds = array<i64: 1, 16, 32>}, {pipeline_mode = #tpu.pipeline_mode<synchronous>, transform_indices = @transform_8, window_bounds = array<i64: 1, 32>}, {pipeline_mode = #tpu.pipeline_mode<synchronous>, transform_indices = @transform_9, window_bounds = array<i64: 1, 32>}, {pipeline_mode = #tpu.pipeline_mode<synchronous>, transform_indices = @transform_10, window_bounds = array<i64: 1, 32>}, {pipeline_mode = #tpu.pipeline_mode<synchronous>, transform_indices = @transform_11, window_bounds = array<i64: 32, 128>}, {pipeline_mode = #tpu.pipeline_mode<synchronous>, transform_indices = @transform_12, window_bounds = array<i64: 1, 128>}, {pipeline_mode = #tpu.pipeline_mode<synchronous>, transform_indices = @transform_13, window_bounds = array<i64: 128, 32>}, {pipeline_mode = #tpu.pipeline_mode<synchronous>, transform_indices = @transform_14, window_bounds = array<i64: 1, 32>}, {transform_indices = @transform_15, window_bounds = array<i64: 1, 8, 32>}, {transform_indices = @transform_16, window_bounds = array<i64: 1, 2, 8, 8>}]} {
    %c0_i32 = arith.constant 0 : i32
    %0 = arith.cmpi eq, %arg1, %c0_i32 : i32
    %1 = arith.extui %0 : i1 to i32
    %c0_i32_0 = arith.constant 0 : i32
    %2 = arith.cmpi ne, %1, %c0_i32_0 : i32
    scf.if %2 {
      %c0_39 = arith.constant 0 : index
      %c0_40 = arith.constant 0 : index
      %c0_41 = arith.constant 0 : index
      %68 = vector.load %arg2[%c0_39, %c0_40, %c0_41] : memref<1x8x32xf32, #tpu.memory_space<vmem>>, vector<1x8x32xf32>
      %69 = vector.shape_cast %68 : vector<1x8x32xf32> to vector<8x32xf32>
      %c0_42 = arith.constant 0 : index
      %c0_43 = arith.constant 0 : index
      %70 = vector.load %arg4[%c0_42, %c0_43] : memref<1x32xf32, #tpu.memory_space<vmem>>, vector<1x32xf32>
      %c0_44 = arith.constant 0 : index
      %c0_45 = arith.constant 0 : index
      %71 = vector.load %arg5[%c0_44, %c0_45] : memref<1x32xf32, #tpu.memory_space<vmem>>, vector<1x32xf32>
      %cst_46 = arith.constant dense<0.000000e+00> : vector<8xf32>
      %72 = vector.multi_reduction <add>, %69, %cst_46 [1] : vector<8x32xf32> to vector<8xf32>
      %73 = vector.shape_cast %72 : vector<8xf32> to vector<8x1xf32>
      %cst_47 = arith.constant 3.200000e+01 : f32
      %74 = vector.broadcast %cst_47 : f32 to vector<8x1xf32>
      %75 = arith.divf %73, %74 : vector<8x1xf32>
      %76 = vector.broadcast %75 : vector<8x1xf32> to vector<8x32xf32>
      %77 = arith.subf %69, %76 : vector<8x32xf32>
      %78 = arith.mulf %77, %77 : vector<8x32xf32>
      %cst_48 = arith.constant dense<0.000000e+00> : vector<8xf32>
      %79 = vector.multi_reduction <add>, %78, %cst_48 [1] : vector<8x32xf32> to vector<8xf32>
      %80 = vector.shape_cast %79 : vector<8xf32> to vector<8x1xf32>
      %cst_49 = arith.constant 3.200000e+01 : f32
      %81 = vector.broadcast %cst_49 : f32 to vector<8x1xf32>
      %82 = arith.divf %80, %81 : vector<8x1xf32>
      %cst_50 = arith.constant 9.99999974E-6 : f32
      %83 = vector.broadcast %cst_50 : f32 to vector<8x1xf32>
      %84 = arith.addf %82, %83 : vector<8x1xf32>
      %85 = math.rsqrt %84 : vector<8x1xf32>
      %86 = vector.broadcast %85 : vector<8x1xf32> to vector<8x32xf32>
      %87 = arith.mulf %77, %86 : vector<8x32xf32>
      %88 = vector.broadcast %70 : vector<1x32xf32> to vector<8x32xf32>
      %89 = arith.mulf %87, %88 : vector<8x32xf32>
      %90 = vector.broadcast %71 : vector<1x32xf32> to vector<8x32xf32>
      %91 = arith.addf %89, %90 : vector<8x32xf32>
      %92 = arith.truncf %91 : vector<8x32xf32> to vector<8x32xbf16>
      %c0_51 = arith.constant 0 : index
      %c0_52 = arith.constant 0 : index
      %93 = vector.load %arg19[%c0_51, %c0_52] : memref<8x32xbf16, #tpu.memory_space<vmem>>, vector<8x32xbf16>
      tpu.vector_store %arg19[%c0_51, %c0_52], %92 {strides = array<i32>} : memref<8x32xbf16, #tpu.memory_space<vmem>>, vector<8x32xbf16>,
      %cst_53 = arith.constant 0.000000e+00 : f32
      %94 = vector.broadcast %cst_53 : f32 to vector<8x32xf32>
      %c0_54 = arith.constant 0 : index
      %c0_55 = arith.constant 0 : index
      %95 = vector.load %arg10[%c0_54, %c0_55] : memref<1x32xf32, #tpu.memory_space<vmem>>, vector<1x32xf32>
      %96 = vector.broadcast %95 : vector<1x32xf32> to vector<8x32xf32>
      %97 = arith.addf %94, %96 : vector<8x32xf32>
      %c0_56 = arith.constant 0 : index
      %c0_57 = arith.constant 0 : index
      %98 = vector.load %arg20[%c0_56, %c0_57] : memref<8x32xf32, #tpu.memory_space<vmem>>, vector<8x32xf32>
      tpu.vector_store %arg20[%c0_56, %c0_57], %97 {strides = array<i32>} : memref<8x32xf32, #tpu.memory_space<vmem>>, vector<8x32xf32>,
    } else {
    }
    %c0 = arith.constant 0 : index
    %c0_1 = arith.constant 0 : index
    %3 = vector.load %arg19[%c0, %c0_1] : memref<8x32xbf16, #tpu.memory_space<vmem>>, vector<8x32xbf16>
    %c0_2 = arith.constant 0 : index
    %c0_3 = arith.constant 0 : index
    %c0_4 = arith.constant 0 : index
    %4 = vector.load %arg6[%c0_2, %c0_3, %c0_4] : memref<1x32x16xbf16, #tpu.memory_space<vmem>>, vector<1x32x16xbf16>
    %5 = vector.shape_cast %4 : vector<1x32x16xbf16> to vector<32x16xbf16>
    %cst = arith.constant dense<0.000000e+00> : vector<8x16xf32>
    %6 = tpu.matmul %3, %5, %cst {dimension_numbers = #tpu.dot_dimension_numbers<[1], [0], [0], [1], [0, 0, 1, 1], [], []>} : vector<8x32xbf16>, vector<32x16xbf16>, vector<8x16xf32> -> vector<8x16xf32>
    %7 = arith.truncf %6 : vector<8x16xf32> to vector<8x16xbf16>
    %c0_5 = arith.constant 0 : index
    %c0_6 = arith.constant 0 : index
    %c0_7 = arith.constant 0 : index
    %8 = vector.load %arg7[%c0_5, %c0_6, %c0_7] : memref<1x32x16xbf16, #tpu.memory_space<vmem>>, vector<1x32x16xbf16>
    %9 = vector.shape_cast %8 : vector<1x32x16xbf16> to vector<32x16xbf16>
    %cst_8 = arith.constant dense<0.000000e+00> : vector<8x16xf32>
    %10 = tpu.matmul %3, %9, %cst_8 {dimension_numbers = #tpu.dot_dimension_numbers<[1], [0], [0], [1], [0, 0, 1, 1], [], []>} : vector<8x32xbf16>, vector<32x16xbf16>, vector<8x16xf32> -> vector<8x16xf32>
    %11 = arith.truncf %10 : vector<8x16xf32> to vector<8x16xbf16>
    %c0_9 = arith.constant 0 : index
    %c0_10 = arith.constant 0 : index
    %c0_11 = arith.constant 0 : index
    %12 = vector.load %arg8[%c0_9, %c0_10, %c0_11] : memref<1x32x16xbf16, #tpu.memory_space<vmem>>, vector<1x32x16xbf16>
    %13 = vector.shape_cast %12 : vector<1x32x16xbf16> to vector<32x16xbf16>
    %cst_12 = arith.constant dense<0.000000e+00> : vector<8x16xf32>
    %14 = tpu.matmul %3, %13, %cst_12 {dimension_numbers = #tpu.dot_dimension_numbers<[1], [0], [0], [1], [0, 0, 1, 1], [], []>} : vector<8x32xbf16>, vector<32x16xbf16>, vector<8x16xf32> -> vector<8x16xf32>
    %15 = arith.truncf %14 : vector<8x16xf32> to vector<8x16xbf16>
    %16 = vector.extract_strided_slice %7 {offsets = [0, 0], sizes = [8, 8], strides = [1, 1]} : vector<8x16xbf16> to vector<8x8xbf16>
    %17 = vector.extract_strided_slice %11 {offsets = [0, 0], sizes = [8, 8], strides = [1, 1]} : vector<8x16xbf16> to vector<8x8xbf16>
    %18 = vector.extract_strided_slice %15 {offsets = [0, 0], sizes = [8, 8], strides = [1, 1]} : vector<8x16xbf16> to vector<8x8xbf16>
    %cst_13 = arith.constant dense<0.000000e+00> : vector<8x8xf32>
    %19 = tpu.matmul %16, %17, %cst_13 {dimension_numbers = #tpu.dot_dimension_numbers<[1], [1], [0], [0], [0, 0, 1, 0], [], []>} : vector<8x8xbf16>, vector<8x8xbf16>, vector<8x8xf32> -> vector<8x8xf32>
    %cst_14 = arith.constant dense<0xFF800000> : vector<8xf32>
    %20 = vector.multi_reduction <maximumf>, %19, %cst_14 [1] : vector<8x8xf32> to vector<8xf32>
    %21 = vector.shape_cast %20 : vector<8xf32> to vector<8x1xf32>
    %22 = vector.broadcast %21 : vector<8x1xf32> to vector<8x8xf32>
    %23 = arith.subf %19, %22 : vector<8x8xf32>
    %24 = math.exp %23 : vector<8x8xf32>
    %cst_15 = arith.constant dense<0.000000e+00> : vector<8xf32>
    %25 = vector.multi_reduction <add>, %24, %cst_15 [1] : vector<8x8xf32> to vector<8xf32>
    %26 = vector.shape_cast %25 : vector<8xf32> to vector<8x1xf32>
    %cst_16 = arith.constant 1.000000e+00 : f32
    %27 = vector.broadcast %cst_16 : f32 to vector<8x1xf32>
    %28 = arith.divf %27, %26 : vector<8x1xf32>
    %29 = vector.broadcast %28 : vector<8x1xf32> to vector<8x8xf32>
    %30 = arith.mulf %24, %29 : vector<8x8xf32>
    %c0_17 = arith.constant 0 : index
    %c0_18 = arith.constant 0 : index
    %c0_19 = arith.constant 0 : index
    %c0_20 = arith.constant 0 : index
    %31 = vector.load %arg18[%c0_17, %c0_18, %c0_19, %c0_20] : memref<1x2x8x8xf32, #tpu.memory_space<vmem>>, vector<1x1x8x8xf32>
    %32 = vector.shape_cast %31 : vector<1x1x8x8xf32> to vector<8x8xf32>
    %33 = vector.shape_cast %30 : vector<8x8xf32> to vector<1x1x8x8xf32>
    tpu.vector_store %arg18[%c0_17, %c0_18, %c0_19, %c0_20], %33 {strides = array<i32>} : memref<1x2x8x8xf32, #tpu.memory_space<vmem>>, vector<1x1x8x8xf32>,
    %34 = arith.truncf %30 : vector<8x8xf32> to vector<8x8xbf16>
    %cst_21 = arith.constant dense<0.000000e+00> : vector<8x8xf32>
    %35 = tpu.matmul %34, %18, %cst_21 {dimension_numbers = #tpu.dot_dimension_numbers<[1], [0], [0], [1], [0, 0, 1, 1], [], []>} : vector<8x8xbf16>, vector<8x8xbf16>, vector<8x8xf32> -> vector<8x8xf32>
    %36 = arith.truncf %35 : vector<8x8xf32> to vector<8x8xbf16>
    %37 = vector.extract_strided_slice %7 {offsets = [0, 8], sizes = [8, 8], strides = [1, 1]} : vector<8x16xbf16> to vector<8x8xbf16>
    %38 = vector.extract_strided_slice %11 {offsets = [0, 8], sizes = [8, 8], strides = [1, 1]} : vector<8x16xbf16> to vector<8x8xbf16>
    %39 = vector.extract_strided_slice %15 {offsets = [0, 8], sizes = [8, 8], strides = [1, 1]} : vector<8x16xbf16> to vector<8x8xbf16>
    %cst_22 = arith.constant dense<0.000000e+00> : vector<8x8xf32>
    %40 = tpu.matmul %37, %38, %cst_22 {dimension_numbers = #tpu.dot_dimension_numbers<[1], [1], [0], [0], [0, 0, 1, 0], [], []>} : vector<8x8xbf16>, vector<8x8xbf16>, vector<8x8xf32> -> vector<8x8xf32>
    %cst_23 = arith.constant dense<0xFF800000> : vector<8xf32>
    %41 = vector.multi_reduction <maximumf>, %40, %cst_23 [1] : vector<8x8xf32> to vector<8xf32>
    %42 = vector.shape_cast %41 : vector<8xf32> to vector<8x1xf32>
    %43 = vector.broadcast %42 : vector<8x1xf32> to vector<8x8xf32>
    %44 = arith.subf %40, %43 : vector<8x8xf32>
    %45 = math.exp %44 : vector<8x8xf32>
    %cst_24 = arith.constant dense<0.000000e+00> : vector<8xf32>
    %46 = vector.multi_reduction <add>, %45, %cst_24 [1] : vector<8x8xf32> to vector<8xf32>
    %47 = vector.shape_cast %46 : vector<8xf32> to vector<8x1xf32>
    %cst_25 = arith.constant 1.000000e+00 : f32
    %48 = vector.broadcast %cst_25 : f32 to vector<8x1xf32>
    %49 = arith.divf %48, %47 : vector<8x1xf32>
    %50 = vector.broadcast %49 : vector<8x1xf32> to vector<8x8xf32>
    %51 = arith.mulf %45, %50 : vector<8x8xf32>
    %c0_26 = arith.constant 0 : index
    %c1 = arith.constant 1 : index
    %c0_27 = arith.constant 0 : index
    %c0_28 = arith.constant 0 : index
    %52 = vector.load %arg18[%c0_26, %c1, %c0_27, %c0_28] : memref<1x2x8x8xf32, #tpu.memory_space<vmem>>, vector<1x1x8x8xf32>
    %53 = vector.shape_cast %52 : vector<1x1x8x8xf32> to vector<8x8xf32>
    %54 = vector.shape_cast %51 : vector<8x8xf32> to vector<1x1x8x8xf32>
    tpu.vector_store %arg18[%c0_26, %c1, %c0_27, %c0_28], %54 {strides = array<i32>} : memref<1x2x8x8xf32, #tpu.memory_space<vmem>>, vector<1x1x8x8xf32>,
    %55 = arith.truncf %51 : vector<8x8xf32> to vector<8x8xbf16>
    %cst_29 = arith.constant dense<0.000000e+00> : vector<8x8xf32>
    %56 = tpu.matmul %55, %39, %cst_29 {dimension_numbers = #tpu.dot_dimension_numbers<[1], [0], [0], [1], [0, 0, 1, 1], [], []>} : vector<8x8xbf16>, vector<8x8xbf16>, vector<8x8xf32> -> vector<8x8xf32>
    %57 = arith.truncf %56 : vector<8x8xf32> to vector<8x8xbf16>
    %58 = tpu.concatenate %36, %57 in 1 : vector<8x8xbf16>, vector<8x8xbf16> -> vector<8x16xbf16>
    %c0_30 = arith.constant 0 : index
    %c0_31 = arith.constant 0 : index
    %59 = vector.load %arg20[%c0_30, %c0_31] : memref<8x32xf32, #tpu.memory_space<vmem>>, vector<8x32xf32>
    %c0_32 = arith.constant 0 : index
    %c0_33 = arith.constant 0 : index
    %c0_34 = arith.constant 0 : index
    %60 = vector.load %arg9[%c0_32, %c0_33, %c0_34] : memref<1x16x32xbf16, #tpu.memory_space<vmem>>, vector<1x16x32xbf16>
    %61 = vector.shape_cast %60 : vector<1x16x32xbf16> to vector<16x32xbf16>
    %cst_35 = arith.constant dense<0.000000e+00> : vector<8x32xf32>
    %62 = tpu.matmul %58, %61, %cst_35 {dimension_numbers = #tpu.dot_dimension_numbers<[1], [0], [0], [1], [0, 0, 1, 1], [], []>} : vector<8x16xbf16>, vector<16x32xbf16>, vector<8x32xf32> -> vector<8x32xf32>
    %63 = arith.addf %59, %62 : vector<8x32xf32>
    %c0_36 = arith.constant 0 : index
    %c0_37 = arith.constant 0 : index
    %64 = vector.load %arg20[%c0_36, %c0_37] : memref<8x32xf32, #tpu.memory_space<vmem>>, vector<8x32xf32>
    tpu.vector_store %arg20[%c0_36, %c0_37], %63 {strides = array<i32>} : memref<8x32xf32, #tpu.memory_space<vmem>>, vector<8x32xf32>,
    %c1_i32 = arith.constant 1 : i32
    %65 = arith.cmpi eq, %arg1, %c1_i32 : i32
    %66 = arith.extui %65 : i1 to i32
    %c0_i32_38 = arith.constant 0 : i32
    %67 = arith.cmpi ne, %66, %c0_i32_38 : i32
    scf.if %67 {
      %c0_39 = arith.constant 0 : index
      %c0_40 = arith.constant 0 : index
      %c0_41 = arith.constant 0 : index
      %68 = vector.load %arg2[%c0_39, %c0_40, %c0_41] : memref<1x8x32xf32, #tpu.memory_space<vmem>>, vector<1x8x32xf32>
      %69 = vector.shape_cast %68 : vector<1x8x32xf32> to vector<8x32xf32>
      %c0_42 = arith.constant 0 : index
      %c0_43 = arith.constant 0 : index
      %70 = vector.load %arg20[%c0_42, %c0_43] : memref<8x32xf32, #tpu.memory_space<vmem>>, vector<8x32xf32>
      %71 = arith.addf %69, %70 : vector<8x32xf32>
      %c0_44 = arith.constant 0 : index
      %c0_45 = arith.constant 0 : index
      %72 = vector.load %arg11[%c0_44, %c0_45] : memref<1x32xf32, #tpu.memory_space<vmem>>, vector<1x32xf32>
      %c0_46 = arith.constant 0 : index
      %c0_47 = arith.constant 0 : index
      %73 = vector.load %arg12[%c0_46, %c0_47] : memref<1x32xf32, #tpu.memory_space<vmem>>, vector<1x32xf32>
      %cst_48 = arith.constant dense<0.000000e+00> : vector<8xf32>
      %74 = vector.multi_reduction <add>, %71, %cst_48 [1] : vector<8x32xf32> to vector<8xf32>
      %75 = vector.shape_cast %74 : vector<8xf32> to vector<8x1xf32>
      %cst_49 = arith.constant 3.200000e+01 : f32
      %76 = vector.broadcast %cst_49 : f32 to vector<8x1xf32>
      %77 = arith.divf %75, %76 : vector<8x1xf32>
      %78 = vector.broadcast %77 : vector<8x1xf32> to vector<8x32xf32>
      %79 = arith.subf %71, %78 : vector<8x32xf32>
      %80 = arith.mulf %79, %79 : vector<8x32xf32>
      %cst_50 = arith.constant dense<0.000000e+00> : vector<8xf32>
      %81 = vector.multi_reduction <add>, %80, %cst_50 [1] : vector<8x32xf32> to vector<8xf32>
      %82 = vector.shape_cast %81 : vector<8xf32> to vector<8x1xf32>
      %cst_51 = arith.constant 3.200000e+01 : f32
      %83 = vector.broadcast %cst_51 : f32 to vector<8x1xf32>
      %84 = arith.divf %82, %83 : vector<8x1xf32>
      %cst_52 = arith.constant 9.99999974E-6 : f32
      %85 = vector.broadcast %cst_52 : f32 to vector<8x1xf32>
      %86 = arith.addf %84, %85 : vector<8x1xf32>
      %87 = math.rsqrt %86 : vector<8x1xf32>
      %88 = vector.broadcast %87 : vector<8x1xf32> to vector<8x32xf32>
      %89 = arith.mulf %79, %88 : vector<8x32xf32>
      %90 = vector.broadcast %72 : vector<1x32xf32> to vector<8x32xf32>
      %91 = arith.mulf %89, %90 : vector<8x32xf32>
      %92 = vector.broadcast %73 : vector<1x32xf32> to vector<8x32xf32>
      %93 = arith.addf %91, %92 : vector<8x32xf32>
      %94 = arith.truncf %93 : vector<8x32xf32> to vector<8x32xbf16>
      %c0_53 = arith.constant 0 : index
      %c0_54 = arith.constant 0 : index
      %95 = vector.load %arg13[%c0_53, %c0_54] : memref<32x128xbf16, #tpu.memory_space<vmem>>, vector<32x128xbf16>
      %cst_55 = arith.constant dense<0.000000e+00> : vector<8x128xf32>
      %96 = tpu.matmul %94, %95, %cst_55 {dimension_numbers = #tpu.dot_dimension_numbers<[1], [0], [0], [1], [0, 0, 1, 1], [], []>} : vector<8x32xbf16>, vector<32x128xbf16>, vector<8x128xf32> -> vector<8x128xf32>
      %c0_56 = arith.constant 0 : index
      %c0_57 = arith.constant 0 : index
      %97 = vector.load %arg14[%c0_56, %c0_57] : memref<1x128xf32, #tpu.memory_space<vmem>>, vector<1x128xf32>
      %98 = vector.broadcast %97 : vector<1x128xf32> to vector<8x128xf32>
      %99 = arith.addf %96, %98 : vector<8x128xf32>
      %cst_58 = arith.constant 5.000000e-01 : f32
      %100 = vector.broadcast %cst_58 : f32 to vector<8x128xf32>
      %101 = arith.mulf %100, %99 : vector<8x128xf32>
      %cst_59 = arith.constant 0.707106769 : f32
      %102 = vector.broadcast %cst_59 : f32 to vector<8x128xf32>
      %103 = arith.mulf %99, %102 : vector<8x128xf32>
      %104 = math.erf %103 : vector<8x128xf32>
      %cst_60 = arith.constant 1.000000e+00 : f32
      %105 = vector.broadcast %cst_60 : f32 to vector<8x128xf32>
      %106 = arith.addf %105, %104 : vector<8x128xf32>
      %107 = arith.mulf %101, %106 : vector<8x128xf32>
      %108 = arith.truncf %107 : vector<8x128xf32> to vector<8x128xbf16>
      %c0_61 = arith.constant 0 : index
      %c0_62 = arith.constant 0 : index
      %109 = vector.load %arg15[%c0_61, %c0_62] : memref<128x32xbf16, #tpu.memory_space<vmem>>, vector<128x32xbf16>
      %cst_63 = arith.constant dense<0.000000e+00> : vector<8x32xf32>
      %110 = tpu.matmul %108, %109, %cst_63 {dimension_numbers = #tpu.dot_dimension_numbers<[1], [0], [0], [1], [0, 0, 1, 1], [], []>} : vector<8x128xbf16>, vector<128x32xbf16>, vector<8x32xf32> -> vector<8x32xf32>
      %c0_64 = arith.constant 0 : index
      %c0_65 = arith.constant 0 : index
      %111 = vector.load %arg16[%c0_64, %c0_65] : memref<1x32xf32, #tpu.memory_space<vmem>>, vector<1x32xf32>
      %112 = vector.broadcast %111 : vector<1x32xf32> to vector<8x32xf32>
      %113 = arith.addf %110, %112 : vector<8x32xf32>
      %114 = arith.addf %71, %113 : vector<8x32xf32>
      %c0_66 = arith.constant 0 : index
      %c0_67 = arith.constant 0 : index
      %c0_68 = arith.constant 0 : index
      %115 = vector.load %arg17[%c0_66, %c0_67, %c0_68] : memref<1x8x32xf32, #tpu.memory_space<vmem>>, vector<1x8x32xf32>
      %116 = vector.shape_cast %115 : vector<1x8x32xf32> to vector<8x32xf32>
      %117 = vector.shape_cast %114 : vector<8x32xf32> to vector<1x8x32xf32>
      tpu.vector_store %arg17[%c0_66, %c0_67, %c0_68], %117 {strides = array<i32>} : memref<1x8x32xf32, #tpu.memory_space<vmem>>, vector<1x8x32xf32>,
    } else {
    }
    return
  }
  func.func @transform_0(%arg0: i32, %arg1: i32) -> (i32, i32, i32) {
    %c0_i32 = arith.constant 0 : i32
    %c0_i32_0 = arith.constant 0 : i32
    %c0_i32_1 = arith.constant 0 : i32
    return %arg0, %c0_i32, %c0_i32_0 : i32, i32, i32
  }
  func.func @transform_1(%arg0: i32, %arg1: i32) -> (i32, i32) {
    %c0_i32 = arith.constant 0 : i32
    %c0_i32_0 = arith.constant 0 : i32
    %c0_i32_1 = arith.constant 0 : i32
    return %c0_i32, %c0_i32_0 : i32, i32
  }
  func.func @transform_2(%arg0: i32, %arg1: i32) -> (i32, i32) {
    %c0_i32 = arith.constant 0 : i32
    %c0_i32_0 = arith.constant 0 : i32
    %c0_i32_1 = arith.constant 0 : i32
    return %c0_i32, %c0_i32_0 : i32, i32
  }
  func.func @transform_3(%arg0: i32, %arg1: i32) -> (i32, i32) {
    %c0_i32 = arith.constant 0 : i32
    %c0_i32_0 = arith.constant 0 : i32
    %c0_i32_1 = arith.constant 0 : i32
    return %c0_i32, %c0_i32_0 : i32, i32
  }
  func.func @transform_4(%arg0: i32, %arg1: i32) -> (i32, i32, i32) {
    %c0_i32 = arith.constant 0 : i32
    %c0_i32_0 = arith.constant 0 : i32
    %c0_i32_1 = arith.constant 0 : i32
    return %arg1, %c0_i32, %c0_i32_0 : i32, i32, i32
  }
  func.func @transform_5(%arg0: i32, %arg1: i32) -> (i32, i32, i32) {
    %c0_i32 = arith.constant 0 : i32
    %c0_i32_0 = arith.constant 0 : i32
    %c0_i32_1 = arith.constant 0 : i32
    return %arg1, %c0_i32, %c0_i32_0 : i32, i32, i32
  }
  func.func @transform_6(%arg0: i32, %arg1: i32) -> (i32, i32, i32) {
    %c0_i32 = arith.constant 0 : i32
    %c0_i32_0 = arith.constant 0 : i32
    %c0_i32_1 = arith.constant 0 : i32
    return %arg1, %c0_i32, %c0_i32_0 : i32, i32, i32
  }
  func.func @transform_7(%arg0: i32, %arg1: i32) -> (i32, i32, i32) {
    %c0_i32 = arith.constant 0 : i32
    %c0_i32_0 = arith.constant 0 : i32
    %c0_i32_1 = arith.constant 0 : i32
    return %arg1, %c0_i32, %c0_i32_0 : i32, i32, i32
  }
  func.func @transform_8(%arg0: i32, %arg1: i32) -> (i32, i32) {
    %c0_i32 = arith.constant 0 : i32
    %c0_i32_0 = arith.constant 0 : i32
    %c0_i32_1 = arith.constant 0 : i32
    return %c0_i32, %c0_i32_0 : i32, i32
  }
  func.func @transform_9(%arg0: i32, %arg1: i32) -> (i32, i32) {
    %c0_i32 = arith.constant 0 : i32
    %c0_i32_0 = arith.constant 0 : i32
    %c0_i32_1 = arith.constant 0 : i32
    return %c0_i32, %c0_i32_0 : i32, i32
  }
  func.func @transform_10(%arg0: i32, %arg1: i32) -> (i32, i32) {
    %c0_i32 = arith.constant 0 : i32
    %c0_i32_0 = arith.constant 0 : i32
    %c0_i32_1 = arith.constant 0 : i32
    return %c0_i32, %c0_i32_0 : i32, i32
  }
  func.func @transform_11(%arg0: i32, %arg1: i32) -> (i32, i32) {
    %c0_i32 = arith.constant 0 : i32
    %c0_i32_0 = arith.constant 0 : i32
    %c0_i32_1 = arith.constant 0 : i32
    return %c0_i32, %c0_i32_0 : i32, i32
  }
  func.func @transform_12(%arg0: i32, %arg1: i32) -> (i32, i32) {
    %c0_i32 = arith.constant 0 : i32
    %c0_i32_0 = arith.constant 0 : i32
    %c0_i32_1 = arith.constant 0 : i32
    return %c0_i32, %c0_i32_0 : i32, i32
  }
  func.func @transform_13(%arg0: i32, %arg1: i32) -> (i32, i32) {
    %c0_i32 = arith.constant 0 : i32
    %c0_i32_0 = arith.constant 0 : i32
    %c0_i32_1 = arith.constant 0 : i32
    return %c0_i32, %c0_i32_0 : i32, i32
  }
  func.func @transform_14(%arg0: i32, %arg1: i32) -> (i32, i32) {
    %c0_i32 = arith.constant 0 : i32
    %c0_i32_0 = arith.constant 0 : i32
    %c0_i32_1 = arith.constant 0 : i32
    return %c0_i32, %c0_i32_0 : i32, i32
  }
  func.func @transform_15(%arg0: i32, %arg1: i32) -> (i32, i32, i32) {
    %c0_i32 = arith.constant 0 : i32
    %c0_i32_0 = arith.constant 0 : i32
    %c0_i32_1 = arith.constant 0 : i32
    return %arg0, %c0_i32, %c0_i32_0 : i32, i32, i32
  }
  func.func @transform_16(%arg0: i32, %arg1: i32) -> (i32, i32, i32, i32) {
    %c0_i32 = arith.constant 0 : i32
    %c0_i32_0 = arith.constant 0 : i32
    %c0_i32_1 = arith.constant 0 : i32
    return %arg0, %arg1, %c0_i32, %c0_i32_0 : i32, i32, i32, i32
  }
}

</mosaic_0001>

<llo_original>
// kernel: tpu_custom_call.1
$region0: #{tpu_custom_call.1}
  #allocation0 [shape = 'u32[]', space=smem, size = 0x4, offset = 0x4, fixed_abs, tag = 'smem constant byte address 0x4 - core index']
  #allocation1 [shape = 'u32[144,128]{1,0:T(1,128)}', space=vmem, size = 0x12000, scoped, tag = 'internal scratch']
  #allocation2 [shape = 'bf16[8,32]{1,0:T(8,128)(2,1)}', space=vmem, size = 0x800, scoped, tag = 'scratch operand']
  #allocation3 [shape = 'f32[8,32]{1,0:T(8,128)}', space=vmem, size = 0x1000, scoped, tag = 'scratch operand']
  %s0 = inlined_call_operand.vmem [shape: f32[4,8,32], index: 0, kind: input, shape index: {}]
  %s1 = inlined_call_operand.vmem [shape: f32[1,8], index: 1, kind: input, shape index: {}]
  %s2 = inlined_call_operand.vmem [shape: f32[1,32], index: 2, kind: input, shape index: {}]
  %s3 = inlined_call_operand.vmem [shape: f32[1,32], index: 3, kind: input, shape index: {}]
  %s4 = inlined_call_operand.vmem [shape: bf16[2,32,16], index: 4, kind: input, shape index: {}]
  %s5 = inlined_call_operand.vmem [shape: bf16[2,32,16], index: 5, kind: input, shape index: {}]
  %s6 = inlined_call_operand.vmem [shape: bf16[2,32,16], index: 6, kind: input, shape index: {}]
  %s7 = inlined_call_operand.vmem [shape: bf16[2,16,32], index: 7, kind: input, shape index: {}]
  %s8 = inlined_call_operand.vmem [shape: f32[1,32], index: 8, kind: input, shape index: {}]
  %s9 = inlined_call_operand.vmem [shape: f32[1,32], index: 9, kind: input, shape index: {}]
  %s10 = inlined_call_operand.vmem [shape: f32[1,32], index: 10, kind: input, shape index: {}]
  %s11 = inlined_call_operand.vmem [shape: bf16[32,128], index: 11, kind: input, shape index: {}]
  %s12 = inlined_call_operand.vmem [shape: f32[1,128], index: 12, kind: input, shape index: {}]
  %s13 = inlined_call_operand.vmem [shape: bf16[128,32], index: 13, kind: input, shape index: {}]
  %s14 = inlined_call_operand.vmem [shape: f32[1,32], index: 14, kind: input, shape index: {}]
  %s15 = inlined_call_operand.hbm [shape: f32[4,8,32], index: 15, kind: output, shape index: {0}]
  %s16 = inlined_call_operand.hbm [shape: f32[4,4,8,8], index: 16, kind: output, shape index: {1}]
  %17 = xla_tuple %s15, %s16
  %s18 = sld [smem:[#allocation0]]
  $region109: #{tpu_custom_call.1} parent=0
    _
  %s20 = ssub.s32 1, %s18
  %s21 = scalar_select 0, %s20, %s18
  $region1: #{tpu_custom_call.1} parent=0
    #allocation4 [shape = 'u8[8192]{0}', space=vmem, size = 0x2000, scoped, tag = 'output window, operand 0']
    #allocation5 [shape = 's32[2]{0}', space=sflag, size = 0x8, scoped, tag = 'scoped memory for tpu_custom_call.1']
    #allocation6 [shape = 'u8[16384]{0}', space=vmem, size = 0x4000, scoped, tag = 'output window, operand 1']
    #allocation7 [shape = 's32[2]{0}', space=sflag, size = 0x8, scoped, tag = 'scoped memory for tpu_custom_call.1']
    %22 = vsyncpa [#allocation5], 0
    %s23 = scalar_lea.sflag [#allocation5], 1
    %24 = vsyncpa %s23, 0
    %25 = vsyncpa [#allocation7], 0
    %s26 = scalar_lea.sflag [#allocation7], 1
    %27 = vsyncpa %s26, 0
    loop: start=0, step=1, limit=10
    $region2: #{tpu_custom_call.1} parent=1 // loop_pre_header
      _
    $region3: #{tpu_custom_call.1} parent=1 // loop_header
      %s29 = sphi 0, %s33
      %p30 = scmp.ge.s32.totalorder %s29, 10
      %s36 = sphi 0, %s48
      %s37 = sphi 0, %s44
      %s38 = sphi 0, %s36
      %s39 = sphi 0, %s37
      %s40 = sphi 0, %s38
      %s41 = sphi 0, %s39
      %s51 = sphi 0, %s53
      %s54 = sphi 0, %s51
      %s55 = sphi 0, %s54
      %s71 = sphi 0, %s55
      %s75 = sphi 0, %s75
      %s77 = sphi 0, %s75
      %s78 = sphi 0, %s77
      %s92 = sphi 0, %s78
      %s96 = sphi 0, %s96
      %s98 = sphi 0, %s96
      %s99 = sphi 0, %s98
      %s113 = sphi 0, %s99
      %s117 = sphi 0, %s117
      %s119 = sphi 0, %s117
      %s120 = sphi 0, %s119
      %s134 = sphi 0, %s120
      %s140 = sphi 0, %s142
      %s143 = sphi 0, %s140
      %s144 = sphi 0, %s143
      %s160 = sphi 0, %s144
      %s166 = sphi 0, %s168
      %s169 = sphi 0, %s166
      %s170 = sphi 0, %s169
      %s186 = sphi 0, %s170
      %s192 = sphi 0, %s194
      %s195 = sphi 0, %s192
      %s196 = sphi 0, %s195
      %s212 = sphi 0, %s196
      %s218 = sphi 0, %s220
      %s221 = sphi 0, %s218
      %s222 = sphi 0, %s221
      %s238 = sphi 0, %s222
      %s242 = sphi 0, %s242
      %s244 = sphi 0, %s242
      %s245 = sphi 0, %s244
      %s259 = sphi 0, %s245
      %s263 = sphi 0, %s263
      %s265 = sphi 0, %s263
      %s266 = sphi 0, %s265
      %s280 = sphi 0, %s266
      %s284 = sphi 0, %s284
      %s286 = sphi 0, %s284
      %s287 = sphi 0, %s286
      %s301 = sphi 0, %s287
      %s305 = sphi 0, %s305
      %s307 = sphi 0, %s305
      %s308 = sphi 0, %s307
      %s322 = sphi 0, %s308
      %s326 = sphi 0, %s326
      %s328 = sphi 0, %s326
      %s329 = sphi 0, %s328
      %s343 = sphi 0, %s329
      %s347 = sphi 0, %s347
      %s349 = sphi 0, %s347
      %s350 = sphi 0, %s349
      %s364 = sphi 0, %s350
      %s368 = sphi 0, %s368
      %s370 = sphi 0, %s368
      %s371 = sphi 0, %s370
      %s385 = sphi 0, %s371
      %s391 = sphi 0, %s393
      %s394 = sphi 0, %s391
      %s395 = sphi 0, %s394
      %s411 = sphi 0, %s395
      %s419 = sphi 0, %s421
      %s422 = sphi 0, %s419
      %s423 = sphi 0, %s422
      %s439 = sphi 0, %s423
    $region4: #{tpu_custom_call.1} parent=1 // loop_header_branch
      %32 = sbr.rel (%p30) target = $region8
    $region5: #{tpu_custom_call.1} parent=1 // loop_body
      %s34 = ssub.s32 %s29, 1
      %s35 = ssub.s32 %s29, 2
      %s42 = sadd.s32 1, %s37
      %p43 = scmp.ge.s32.totalorder %s42, 2
      %s44 = scalar_select %p43, 0, %s42
      %s45 = sadd.s32 1, %s36
      %s46 = scalar_select %p43, %s45, %s36
      %p47 = scmp.ge.s32.totalorder %s46, 4
      %s48 = scalar_select %p47, 0, %s46
      %s49 = ssub.s32 %s36, %s48
      %p50 = scmp.eq.s32.totalorder %s49, 0
      %s52 = sadd.s32 %s51, 1
      %s53 = scalar_select %p50, %s51, %s52
      %p56 = pneg %p50
      %p57 = scmp.eq.s32.totalorder %s29, 7
      %p58 = por %p56, %p57
      %p59 = scmp.ne.s32.totalorder %s51, %s54
      %p60 = scmp.eq.s32.totalorder %s29, 0
      %p61 = por %p59, %p60
      %p62 = scmp.ne.s32.totalorder %s51, %s54
      %p63 = scmp.eq.s32.totalorder %s34, 7
      %p64 = por %p62, %p63
      %p65 = scmp.ne.s32.totalorder %s54, %s55
      %p66 = scmp.eq.s32.totalorder %s34, 0
      %p67 = por %p65, %p66
      %p68 = scmp.ne.s32.totalorder %s54, %s55
      %p69 = scmp.eq.s32.totalorder %s35, 7
      %p70 = por %p68, %p69
      %p72 = scmp.ne.s32.totalorder %s55, %s71
      %p73 = scmp.eq.s32.totalorder %s35, 0
      %p74 = por %p72, %p73
      %s76 = sadd.s32 %s75, 1
      %p79 = scmp.eq.s32.totalorder %s29, 7
      %p80 = scmp.ne.s32.totalorder %s75, %s77
      %p81 = scmp.eq.s32.totalorder %s29, 0
      %p82 = por %p80, %p81
      %p83 = scmp.ne.s32.totalorder %s75, %s77
      %p84 = scmp.eq.s32.totalorder %s34, 7
      %p85 = por %p83, %p84
      %p86 = scmp.ne.s32.totalorder %s77, %s78
      %p87 = scmp.eq.s32.totalorder %s34, 0
      %p88 = por %p86, %p87
      %p89 = scmp.ne.s32.totalorder %s77, %s78
      %p90 = scmp.eq.s32.totalorder %s35, 7
      %p91 = por %p89, %p90
      %p93 = scmp.ne.s32.totalorder %s78, %s92
      %p94 = scmp.eq.s32.totalorder %s35, 0
      %p95 = por %p93, %p94
      %s97 = sadd.s32 %s96, 1
      %p100 = scmp.eq.s32.totalorder %s29, 7
      %p101 = scmp.ne.s32.totalorder %s96, %s98
      %p102 = scmp.eq.s32.totalorder %s29, 0
      %p103 = por %p101, %p102
      %p104 = scmp.ne.s32.totalorder %s96, %s98
      %p105 = scmp.eq.s32.totalorder %s34, 7
      %p106 = por %p104, %p105
      %p107 = scmp.ne.s32.totalorder %s98, %s99
      %p108 = scmp.eq.s32.totalorder %s34, 0
      %p109 = por %p107, %p108
      %p110 = scmp.ne.s32.totalorder %s98, %s99
      %p111 = scmp.eq.s32.totalorder %s35, 7
      %p112 = por %p110, %p111
      %p114 = scmp.ne.s32.totalorder %s99, %s113
      %p115 = scmp.eq.s32.totalorder %s35, 0
      %p116 = por %p114, %p115
      %s118 = sadd.s32 %s117, 1
      %p121 = scmp.eq.s32.totalorder %s29, 7
      %p122 = scmp.ne.s32.totalorder %s117, %s119
      %p123 = scmp.eq.s32.totalorder %s29, 0
      %p124 = por %p122, %p123
      %p125 = scmp.ne.s32.totalorder %s117, %s119
      %p126 = scmp.eq.s32.totalorder %s34, 7
      %p127 = por %p125, %p126
      %p128 = scmp.ne.s32.totalorder %s119, %s120
      %p129 = scmp.eq.s32.totalorder %s34, 0
      %p130 = por %p128, %p129
      %p131 = scmp.ne.s32.totalorder %s119, %s120
      %p132 = scmp.eq.s32.totalorder %s35, 7
      %p133 = por %p131, %p132
      %p135 = scmp.ne.s32.totalorder %s120, %s134
      %p136 = scmp.eq.s32.totalorder %s35, 0
      %p137 = por %p135, %p136
      %s138 = ssub.s32 %s37, %s44
      %p139 = scmp.eq.s32.totalorder %s138, 0
      %s141 = sadd.s32 %s140, 1
      %s142 = scalar_select %p139, %s140, %s141
      %p145 = pneg %p139
      %p146 = scmp.eq.s32.totalorder %s29, 7
      %p147 = por %p145, %p146
      %p148 = scmp.ne.s32.totalorder %s140, %s143
      %p149 = scmp.eq.s32.totalorder %s29, 0
      %p150 = por %p148, %p149
      %p151 = scmp.ne.s32.totalorder %s140, %s143
      %p152 = scmp.eq.s32.totalorder %s34, 7
      %p153 = por %p151, %p152
      %p154 = scmp.ne.s32.totalorder %s143, %s144
      %p155 = scmp.eq.s32.totalorder %s34, 0
      %p156 = por %p154, %p155
      %p157 = scmp.ne.s32.totalorder %s143, %s144
      %p158 = scmp.eq.s32.totalorder %s35, 7
      %p159 = por %p157, %p158
      %p161 = scmp.ne.s32.totalorder %s144, %s160
      %p162 = scmp.eq.s32.totalorder %s35, 0
      %p163 = por %p161, %p162
      %s164 = ssub.s32 %s37, %s44
      %p165 = scmp.eq.s32.totalorder %s164, 0
      %s167 = sadd.s32 %s166, 1
      %s168 = scalar_select %p165, %s166, %s167
      %p171 = pneg %p165
      %p172 = scmp.eq.s32.totalorder %s29, 7
      %p173 = por %p171, %p172
      %p174 = scmp.ne.s32.totalorder %s166, %s169
      %p175 = scmp.eq.s32.totalorder %s29, 0
      %p176 = por %p174, %p175
      %p177 = scmp.ne.s32.totalorder %s166, %s169
      %p178 = scmp.eq.s32.totalorder %s34, 7
      %p179 = por %p177, %p178
      %p180 = scmp.ne.s32.totalorder %s169, %s170
      %p181 = scmp.eq.s32.totalorder %s34, 0
      %p182 = por %p180, %p181
      %p183 = scmp.ne.s32.totalorder %s169, %s170
      %p184 = scmp.eq.s32.totalorder %s35, 7
      %p185 = por %p183, %p184
      %p187 = scmp.ne.s32.totalorder %s170, %s186
      %p188 = scmp.eq.s32.totalorder %s35, 0
      %p189 = por %p187, %p188
      %s190 = ssub.s32 %s37, %s44
      %p191 = scmp.eq.s32.totalorder %s190, 0
      %s193 = sadd.s32 %s192, 1
      %s194 = scalar_select %p191, %s192, %s193
      %p197 = pneg %p191
      %p198 = scmp.eq.s32.totalorder %s29, 7
      %p199 = por %p197, %p198
      %p200 = scmp.ne.s32.totalorder %s192, %s195
      %p201 = scmp.eq.s32.totalorder %s29, 0
      %p202 = por %p200, %p201
      %p203 = scmp.ne.s32.totalorder %s192, %s195
      %p204 = scmp.eq.s32.totalorder %s34, 7
      %p205 = por %p203, %p204
      %p206 = scmp.ne.s32.totalorder %s195, %s196
      %p207 = scmp.eq.s32.totalorder %s34, 0
      %p208 = por %p206, %p207
      %p209 = scmp.ne.s32.totalorder %s195, %s196
      %p210 = scmp.eq.s32.totalorder %s35, 7
      %p211 = por %p209, %p210
      %p213 = scmp.ne.s32.totalorder %s196, %s212
      %p214 = scmp.eq.s32.totalorder %s35, 0
      %p215 = por %p213, %p214
      %s216 = ssub.s32 %s37, %s44
      %p217 = scmp.eq.s32.totalorder %s216, 0
      %s219 = sadd.s32 %s218, 1
      %s220 = scalar_select %p217, %s218, %s219
      %p223 = pneg %p217
      %p224 = scmp.eq.s32.totalorder %s29, 7
      %p225 = por %p223, %p224
      %p226 = scmp.ne.s32.totalorder %s218, %s221
      %p227 = scmp.eq.s32.totalorder %s29, 0
      %p228 = por %p226, %p227
      %p229 = scmp.ne.s32.totalorder %s218, %s221
      %p230 = scmp.eq.s32.totalorder %s34, 7
      %p231 = por %p229, %p230
      %p232 = scmp.ne.s32.totalorder %s221, %s222
      %p233 = scmp.eq.s32.totalorder %s34, 0
      %p234 = por %p232, %p233
      %p235 = scmp.ne.s32.totalorder %s221, %s222
      %p236 = scmp.eq.s32.totalorder %s35, 7
      %p237 = por %p235, %p236
      %p239 = scmp.ne.s32.totalorder %s222, %s238
      %p240 = scmp.eq.s32.totalorder %s35, 0
      %p241 = por %p239, %p240
      %s243 = sadd.s32 %s242, 1
      %p246 = scmp.eq.s32.totalorder %s29, 7
      %p247 = scmp.ne.s32.totalorder %s242, %s244
      %p248 = scmp.eq.s32.totalorder %s29, 0
      %p249 = por %p247, %p248
      %p250 = scmp.ne.s32.totalorder %s242, %s244
      %p251 = scmp.eq.s32.totalorder %s34, 7
      %p252 = por %p250, %p251
      %p253 = scmp.ne.s32.totalorder %s244, %s245
      %p254 = scmp.eq.s32.totalorder %s34, 0
      %p255 = por %p253, %p254
      %p256 = scmp.ne.s32.totalorder %s244, %s245
      %p257 = scmp.eq.s32.totalorder %s35, 7
      %p258 = por %p256, %p257
      %p260 = scmp.ne.s32.totalorder %s245, %s259
      %p261 = scmp.eq.s32.totalorder %s35, 0
      %p262 = por %p260, %p261
      %s264 = sadd.s32 %s263, 1
      %p267 = scmp.eq.s32.totalorder %s29, 7
      %p268 = scmp.ne.s32.totalorder %s263, %s265
      %p269 = scmp.eq.s32.totalorder %s29, 0
      %p270 = por %p268, %p269
      %p271 = scmp.ne.s32.totalorder %s263, %s265
      %p272 = scmp.eq.s32.totalorder %s34, 7
      %p273 = por %p271, %p272
      %p274 = scmp.ne.s32.totalorder %s265, %s266
      %p275 = scmp.eq.s32.totalorder %s34, 0
      %p276 = por %p274, %p275
      %p277 = scmp.ne.s32.totalorder %s265, %s266
      %p278 = scmp.eq.s32.totalorder %s35, 7
      %p279 = por %p277, %p278
      %p281 = scmp.ne.s32.totalorder %s266, %s280
      %p282 = scmp.eq.s32.totalorder %s35, 0
      %p283 = por %p281, %p282
      %s285 = sadd.s32 %s284, 1
      %p288 = scmp.eq.s32.totalorder %s29, 7
      %p289 = scmp.ne.s32.totalorder %s284, %s286
      %p290 = scmp.eq.s32.totalorder %s29, 0
      %p291 = por %p289, %p290
      %p292 = scmp.ne.s32.totalorder %s284, %s286
      %p293 = scmp.eq.s32.totalorder %s34, 7
      %p294 = por %p292, %p293
      %p295 = scmp.ne.s32.totalorder %s286, %s287
      %p296 = scmp.eq.s32.totalorder %s34, 0
      %p297 = por %p295, %p296
      %p298 = scmp.ne.s32.totalorder %s286, %s287
      %p299 = scmp.eq.s32.totalorder %s35, 7
      %p300 = por %p298, %p299
      %p302 = scmp.ne.s32.totalorder %s287, %s301
      %p303 = scmp.eq.s32.totalorder %s35, 0
      %p304 = por %p302, %p303
      %s306 = sadd.s32 %s305, 1
      %p309 = scmp.eq.s32.totalorder %s29, 7
      %p310 = scmp.ne.s32.totalorder %s305, %s307
      %p311 = scmp.eq.s32.totalorder %s29, 0
      %p312 = por %p310, %p311
      %p313 = scmp.ne.s32.totalorder %s305, %s307
      %p314 = scmp.eq.s32.totalorder %s34, 7
      %p315 = por %p313, %p314
      %p316 = scmp.ne.s32.totalorder %s307, %s308
      %p317 = scmp.eq.s32.totalorder %s34, 0
      %p318 = por %p316, %p317
      %p319 = scmp.ne.s32.totalorder %s307, %s308
      %p320 = scmp.eq.s32.totalorder %s35, 7
      %p321 = por %p319, %p320
      %p323 = scmp.ne.s32.totalorder %s308, %s322
      %p324 = scmp.eq.s32.totalorder %s35, 0
      %p325 = por %p323, %p324
      %s327 = sadd.s32 %s326, 1
      %p330 = scmp.eq.s32.totalorder %s29, 7
      %p331 = scmp.ne.s32.totalorder %s326, %s328
      %p332 = scmp.eq.s32.totalorder %s29, 0
      %p333 = por %p331, %p332
      %p334 = scmp.ne.s32.totalorder %s326, %s328
      %p335 = scmp.eq.s32.totalorder %s34, 7
      %p336 = por %p334, %p335
      %p337 = scmp.ne.s32.totalorder %s328, %s329
      %p338 = scmp.eq.s32.totalorder %s34, 0
      %p339 = por %p337, %p338
      %p340 = scmp.ne.s32.totalorder %s328, %s329
      %p341 = scmp.eq.s32.totalorder %s35, 7
      %p342 = por %p340, %p341
      %p344 = scmp.ne.s32.totalorder %s329, %s343
      %p345 = scmp.eq.s32.totalorder %s35, 0
      %p346 = por %p344, %p345
      %s348 = sadd.s32 %s347, 1
      %p351 = scmp.eq.s32.totalorder %s29, 7
      %p352 = scmp.ne.s32.totalorder %s347, %s349
      %p353 = scmp.eq.s32.totalorder %s29, 0
      %p354 = por %p352, %p353
      %p355 = scmp.ne.s32.totalorder %s347, %s349
      %p356 = scmp.eq.s32.totalorder %s34, 7
      %p357 = por %p355, %p356
      %p358 = scmp.ne.s32.totalorder %s349, %s350
      %p359 = scmp.eq.s32.totalorder %s34, 0
      %p360 = por %p358, %p359
      %p361 = scmp.ne.s32.totalorder %s349, %s350
      %p362 = scmp.eq.s32.totalorder %s35, 7
      %p363 = por %p361, %p362
      %p365 = scmp.ne.s32.totalorder %s350, %s364
      %p366 = scmp.eq.s32.totalorder %s35, 0
      %p367 = por %p365, %p366
      %s369 = sadd.s32 %s368, 1
      %p372 = scmp.eq.s32.totalorder %s29, 7
      %p373 = scmp.ne.s32.totalorder %s368, %s370
      %p374 = scmp.eq.s32.totalorder %s29, 0
      %p375 = por %p373, %p374
      %p376 = scmp.ne.s32.totalorder %s368, %s370
      %p377 = scmp.eq.s32.totalorder %s34, 7
      %p378 = por %p376, %p377
      %p379 = scmp.ne.s32.totalorder %s370, %s371
      %p380 = scmp.eq.s32.totalorder %s34, 0
      %p381 = por %p379, %p380
      %p382 = scmp.ne.s32.totalorder %s370, %s371
      %p383 = scmp.eq.s32.totalorder %s35, 7
      %p384 = por %p382, %p383
      %p386 = scmp.ne.s32.totalorder %s371, %s385
      %p387 = scmp.eq.s32.totalorder %s35, 0
      %p388 = por %p386, %p387
      %s389 = ssub.s32 %s36, %s48
      %p390 = scmp.eq.s32.totalorder %s389, 0
      %s392 = sadd.s32 %s391, 1
      %s393 = scalar_select %p390, %s391, %s392
      %p396 = pneg %p390
      %p397 = scmp.eq.s32.totalorder %s29, 7
      %p398 = por %p396, %p397
      %p399 = scmp.ne.s32.totalorder %s391, %s394
      %p400 = scmp.eq.s32.totalorder %s29, 0
      %p401 = por %p399, %p400
      %p402 = scmp.ne.s32.totalorder %s391, %s394
      %p403 = scmp.eq.s32.totalorder %s34, 7
      %p404 = por %p402, %p403
      %p405 = scmp.ne.s32.totalorder %s394, %s395
      %p406 = scmp.eq.s32.totalorder %s34, 0
      %p407 = por %p405, %p406
      %p408 = scmp.ne.s32.totalorder %s394, %s395
      %p409 = scmp.eq.s32.totalorder %s35, 7
      %p410 = por %p408, %p409
      %p412 = scmp.ne.s32.totalorder %s395, %s411
      %p413 = scmp.eq.s32.totalorder %s35, 0
      %p414 = por %p412, %p413
      %s415 = ssub.s32 %s36, %s48
      %s416 = ssub.s32 %s37, %s44
      %s417 = sor.u32 %s415, %s416
      %p418 = scmp.eq.s32.totalorder %s417, 0
      %s420 = sadd.s32 %s419, 1
      %s421 = scalar_select %p418, %s419, %s420
      %p424 = pneg %p418
      %p425 = scmp.eq.s32.totalorder %s29, 7
      %p426 = por %p424, %p425
      %p427 = scmp.ne.s32.totalorder %s419, %s422
      %p428 = scmp.eq.s32.totalorder %s29, 0
      %p429 = por %p427, %p428
      %p430 = scmp.ne.s32.totalorder %s419, %s422
      %p431 = scmp.eq.s32.totalorder %s34, 7
      %p432 = por %p430, %p431
      %p433 = scmp.ne.s32.totalorder %s422, %s423
      %p434 = scmp.eq.s32.totalorder %s34, 0
      %p435 = por %p433, %p434
      %p436 = scmp.ne.s32.totalorder %s422, %s423
      %p437 = scmp.eq.s32.totalorder %s35, 7
      %p438 = por %p436, %p437
      %p440 = scmp.ne.s32.totalorder %s423, %s439
      %p441 = scmp.eq.s32.totalorder %s35, 0
      %p442 = por %p440, %p441
      %p443 = scmp.le.s32.totalorder 1, %s29
      %p444 = scmp.lt.s32.totalorder %s29, 9
      %p445 = pnand %p443, %p444
      %p446 = pneg %p445
      // Predicated region
      $region9: #{tpu_custom_call.1} parent=5 // pred_check
        _
      $region10: #{tpu_custom_call.1} parent=5 // pred_check_branch
        %448 = sbr.rel (%p445) target = $region12
      $region11: #{tpu_custom_call.1} parent=5 // pred_region
        %s449 = ssub.s32 %s29, 1
        // Predicated region
        $region13: #{tpu_custom_call.1} parent=11 // pred_check
          %p450 = pneg %p88
        $region14: #{tpu_custom_call.1} parent=11 // pred_check_branch
          %452 = sbr.rel (%p450) target = $region16
        $region15: #{tpu_custom_call.1} parent=11 // pred_region
          _
        $region16: #{tpu_custom_call.1} parent=11 // pred_fallthru
          _
        // Predicated region
        $region17: #{tpu_custom_call.1} parent=11 // pred_check
          %p453 = pneg %p109
        $region18: #{tpu_custom_call.1} parent=11 // pred_check_branch
          %455 = sbr.rel (%p453) target = $region20
        $region19: #{tpu_custom_call.1} parent=11 // pred_region
          _
        $region20: #{tpu_custom_call.1} parent=11 // pred_fallthru
          _
        // Predicated region
        $region21: #{tpu_custom_call.1} parent=11 // pred_check
          %p456 = pneg %p130
        $region22: #{tpu_custom_call.1} parent=11 // pred_check_branch
          %458 = sbr.rel (%p456) target = $region24
        $region23: #{tpu_custom_call.1} parent=11 // pred_region
          _
        $region24: #{tpu_custom_call.1} parent=11 // pred_fallthru
          _
        // Predicated region
        $region25: #{tpu_custom_call.1} parent=11 // pred_check
          %p459 = pneg %p255
        $region26: #{tpu_custom_call.1} parent=11 // pred_check_branch
          %461 = sbr.rel (%p459) target = $region28
        $region27: #{tpu_custom_call.1} parent=11 // pred_region
          _
        $region28: #{tpu_custom_call.1} parent=11 // pred_fallthru
          _
        // Predicated region
        $region29: #{tpu_custom_call.1} parent=11 // pred_check
          %p462 = pneg %p276
        $region30: #{tpu_custom_call.1} parent=11 // pred_check_branch
          %464 = sbr.rel (%p462) target = $region32
        $region31: #{tpu_custom_call.1} parent=11 // pred_region
          _
        $region32: #{tpu_custom_call.1} parent=11 // pred_fallthru
          _
        // Predicated region
        $region33: #{tpu_custom_call.1} parent=11 // pred_check
          %p465 = pneg %p297
        $region34: #{tpu_custom_call.1} parent=11 // pred_check_branch
          %467 = sbr.rel (%p465) target = $region36
        $region35: #{tpu_custom_call.1} parent=11 // pred_region
          _
        $region36: #{tpu_custom_call.1} parent=11 // pred_fallthru
          _
        // Predicated region
        $region37: #{tpu_custom_call.1} parent=11 // pred_check
          %p468 = pneg %p318
        $region38: #{tpu_custom_call.1} parent=11 // pred_check_branch
          %470 = sbr.rel (%p468) target = $region40
        $region39: #{tpu_custom_call.1} parent=11 // pred_region
          _
        $region40: #{tpu_custom_call.1} parent=11 // pred_fallthru
          _
        // Predicated region
        $region41: #{tpu_custom_call.1} parent=11 // pred_check
          %p471 = pneg %p339
        $region42: #{tpu_custom_call.1} parent=11 // pred_check_branch
          %473 = sbr.rel (%p471) target = $region44
        $region43: #{tpu_custom_call.1} parent=11 // pred_region
          _
        $region44: #{tpu_custom_call.1} parent=11 // pred_fallthru
          _
        // Predicated region
        $region45: #{tpu_custom_call.1} parent=11 // pred_check
          %p474 = pneg %p360
        $region46: #{tpu_custom_call.1} parent=11 // pred_check_branch
          %476 = sbr.rel (%p474) target = $region48
        $region47: #{tpu_custom_call.1} parent=11 // pred_region
          _
        $region48: #{tpu_custom_call.1} parent=11 // pred_fallthru
          _
        // Predicated region
        $region49: #{tpu_custom_call.1} parent=11 // pred_check
          %p477 = pneg %p381
        $region50: #{tpu_custom_call.1} parent=11 // pred_check_branch
          %479 = sbr.rel (%p477) target = $region52
        $region51: #{tpu_custom_call.1} parent=11 // pred_region
          _
        $region52: #{tpu_custom_call.1} parent=11 // pred_fallthru
          _
      $region12: #{tpu_custom_call.1} parent=5 // pred_fallthru
        _
      %p480 = scmp.lt.s32.totalorder %s29, 8
      // Predicated region
      $region53: #{tpu_custom_call.1} parent=5 // pred_check
        %p481 = pneg %p480
      $region54: #{tpu_custom_call.1} parent=5 // pred_check_branch
        %483 = sbr.rel (%p481) target = $region56
      $region55: #{tpu_custom_call.1} parent=5 // pred_region
        // Predicated region
        $region57: #{tpu_custom_call.1} parent=55 // pred_check
          %p484 = pneg %p61
        $region58: #{tpu_custom_call.1} parent=55 // pred_check_branch
          %486 = sbr.rel (%p484) target = $region60
        $region59: #{tpu_custom_call.1} parent=55 // pred_region
          %p487 = scmp.lt.s32.totalorder %s36, 3
          %s488 = scalar_select %p487, %s36, 3
          %s489 = smul.addr %s488, 8
          %s490 = scalar_lea.vmem %s0, %s489
        $region60: #{tpu_custom_call.1} parent=55 // pred_fallthru
          _
        // Predicated region
        $region61: #{tpu_custom_call.1} parent=55 // pred_check
          %p491 = pneg %p150
        $region62: #{tpu_custom_call.1} parent=55 // pred_check_branch
          %493 = sbr.rel (%p491) target = $region64
        $region63: #{tpu_custom_call.1} parent=55 // pred_region
          %p494 = scmp.lt.s32.totalorder %s37, 1
          %s495 = scalar_select %p494, %s37, 1
          %s496 = smul.addr %s495, 4
          %s497 = smul.addr %s496, 4
          %s498 = scalar_lea.vmem %s4, %s497
        $region64: #{tpu_custom_call.1} parent=55 // pred_fallthru
          _
        // Predicated region
        $region65: #{tpu_custom_call.1} parent=55 // pred_check
          %p499 = pneg %p176
        $region66: #{tpu_custom_call.1} parent=55 // pred_check_branch
          %501 = sbr.rel (%p499) target = $region68
        $region67: #{tpu_custom_call.1} parent=55 // pred_region
          %p502 = scmp.lt.s32.totalorder %s37, 1
          %s503 = scalar_select %p502, %s37, 1
          %s504 = smul.addr %s503, 4
          %s505 = smul.addr %s504, 4
          %s506 = scalar_lea.vmem %s5, %s505
        $region68: #{tpu_custom_call.1} parent=55 // pred_fallthru
          _
        // Predicated region
        $region69: #{tpu_custom_call.1} parent=55 // pred_check
          %p507 = pneg %p202
        $region70: #{tpu_custom_call.1} parent=55 // pred_check_branch
          %509 = sbr.rel (%p507) target = $region72
        $region71: #{tpu_custom_call.1} parent=55 // pred_region
          %p510 = scmp.lt.s32.totalorder %s37, 1
          %s511 = scalar_select %p510, %s37, 1
          %s512 = smul.addr %s511, 4
          %s513 = smul.addr %s512, 4
          %s514 = scalar_lea.vmem %s6, %s513
        $region72: #{tpu_custom_call.1} parent=55 // pred_fallthru
          _
        // Predicated region
        $region73: #{tpu_custom_call.1} parent=55 // pred_check
          %p515 = pneg %p228
        $region74: #{tpu_custom_call.1} parent=55 // pred_check_branch
          %517 = sbr.rel (%p515) target = $region76
        $region75: #{tpu_custom_call.1} parent=55 // pred_region
          %p518 = scmp.lt.s32.totalorder %s37, 1
          %s519 = scalar_select %p518, %s37, 1
          %s520 = smul.addr %s519, 2
          %s521 = smul.addr %s520, 4
          %s522 = scalar_lea.vmem %s7, %s521
        $region76: #{tpu_custom_call.1} parent=55 // pred_fallthru
          _
      $region56: #{tpu_custom_call.1} parent=5 // pred_fallthru
        _
      %p523 = scmp.le.s32.totalorder 1, %s29
      %p524 = scmp.lt.s32.totalorder %s29, 9
      %p525 = pnand %p523, %p524
      %p526 = pneg %p525
      // Predicated region
      $region77: #{tpu_custom_call.1} parent=5 // pred_check
        _
      $region78: #{tpu_custom_call.1} parent=5 // pred_check_branch
        %528 = sbr.rel (%p525) target = $region80
      $region79: #{tpu_custom_call.1} parent=5 // pred_region
        %s529 = ssub.s32 %s29, 1
        %p530 = scmp.lt.s32.totalorder %s38, 3
        %s531 = scalar_select %p530, %s38, 3
        %s532 = smul.addr %s531, 8
        %s533 = scalar_lea.vmem %s0, %s532
        %p534 = pneg %p67
        %p535 = pneg %p64
        %p536 = pneg %p88
        %p537 = pneg %p85
        %p538 = pneg %p109
        %p539 = pneg %p106
        %p540 = pneg %p130
        %p541 = pneg %p127
        %p542 = scmp.lt.s32.totalorder %s39, 1
        %s543 = scalar_select %p542, %s39, 1
        %s544 = smul.addr %s543, 4
        %s545 = smul.addr %s544, 4
        %s546 = scalar_lea.vmem %s4, %s545
        %p547 = pneg %p156
        %p548 = pneg %p153
        %p549 = scmp.lt.s32.totalorder %s39, 1
        %s550 = scalar_select %p549, %s39, 1
        %s551 = smul.addr %s550, 4
        %s552 = smul.addr %s551, 4
        %s553 = scalar_lea.vmem %s5, %s552
        %p554 = pneg %p182
        %p555 = pneg %p179
        %p556 = scmp.lt.s32.totalorder %s39, 1
        %s557 = scalar_select %p556, %s39, 1
        %s558 = smul.addr %s557, 4
        %s559 = smul.addr %s558, 4
        %s560 = scalar_lea.vmem %s6, %s559
        %p561 = pneg %p208
        %p562 = pneg %p205
        %p563 = scmp.lt.s32.totalorder %s39, 1
        %s564 = scalar_select %p563, %s39, 1
        %s565 = smul.addr %s564, 2
        %s566 = smul.addr %s565, 4
        %s567 = scalar_lea.vmem %s7, %s566
        %p568 = pneg %p234
        %p569 = pneg %p231
        %p570 = pneg %p255
        %p571 = pneg %p252
        %p572 = pneg %p276
        %p573 = pneg %p273
        %p574 = pneg %p297
        %p575 = pneg %p294
        %p576 = pneg %p318
        %p577 = pneg %p315
        %p578 = pneg %p339
        %p579 = pneg %p336
        %p580 = pneg %p360
        %p581 = pneg %p357
        %p582 = pneg %p381
        %p583 = pneg %p378
        %p584 = pneg %p407
        %p585 = pneg %p404
        %s586 = sand.u32 %s394, 1
        %s587 = scalar_lea.sflag [#allocation5], %s586
        %s588 = sand.u32 %s394, 1
        %s589 = smul.addr %s588, 8
        %s590 = scalar_lea.vmem [#allocation4], %s589
        %p591 = pneg %p435
        %p592 = pneg %p432
        %s593 = sand.u32 %s422, 1
        %s594 = scalar_lea.sflag [#allocation7], %s593
        %s595 = sand.u32 %s422, 1
        %s596 = smul.addr %s595, 16
        %s597 = scalar_lea.vmem [#allocation6], %s596
        %p598 = scmp.lt.s32.totalorder %s38, 3
        %s599 = scalar_select %p598, %s38, 3
        %s600 = smul.addr %s599, 8
        %s601 = scalar_lea.vmem %s0, %s600
        %p602 = scmp.lt.s32.totalorder %s39, 1
        %s603 = scalar_select %p602, %s39, 1
        %s604 = smul.addr %s603, 4
        %s605 = smul.addr %s604, 4
        %s606 = scalar_lea.vmem %s4, %s605
        %p607 = scmp.lt.s32.totalorder %s39, 1
        %s608 = scalar_select %p607, %s39, 1
        %s609 = smul.addr %s608, 4
        %s610 = smul.addr %s609, 4
        %s611 = scalar_lea.vmem %s5, %s610
        %p612 = scmp.lt.s32.totalorder %s39, 1
        %s613 = scalar_select %p612, %s39, 1
        %s614 = smul.addr %s613, 4
        %s615 = smul.addr %s614, 4
        %s616 = scalar_lea.vmem %s6, %s615
        %p617 = scmp.lt.s32.totalorder %s39, 1
        %s618 = scalar_select %p617, %s39, 1
        %s619 = smul.addr %s618, 2
        %s620 = smul.addr %s619, 4
        %s621 = scalar_lea.vmem %s7, %s620
        %s622 = smul.u32 2, %s39
        %p624 = scmp.eq.s32.totalorder %s39, 0
        // Predicated region
        $region81: #{tpu_custom_call.1} parent=79 // pred_check
          %p625 = pneg %p624
        $region82: #{tpu_custom_call.1} parent=79 // pred_check_branch
          %627 = sbr.rel (%p625) target = $region84
        $region83: #{tpu_custom_call.1} parent=79 // pred_region
          %v628 = vld [vmem:[%s601] sm:$0xff]
          %v629 = vld [vmem:[%s2] sm:$0x1]
          %v630 = vld [vmem:[%s3] sm:$0x1]
          %vm631 = vcmask 261120
          %v632 = vsel %vm631, %v628, 0.0
          %633 = vadd.xlane.f32.xlu0 %v632
          %v634 = vpop.xlane.xlu0 %633
          %v635 = vrcp.pop 32.0
          %v636 = vmul.f32 %v634, %v635
          %v637 = vsub.f32 %v628, %v636
          %v638 = vmul.f32 %v637, %v637
          %v639 = vsel %vm631, %v638, 0.0
          %640 = vadd.xlane.f32.xlu0 %v639
          %v641 = vpop.xlane.xlu0 %640
          %v642 = vmul.f32 %v641, %v635
          %v643 = vadd.f32 %v642, 1e-05
          %v644 = vrsqrt.pop %v643
          %v645 = vmul.f32 %v637, %v644
          %v647 = vlaneseq
          %v648 = vshrl.u32 %v647, 7
          %v649 = vsub.s32 0, %v648
          %v650 = vrot.slane %v629, %v649
          %v652 = vmul.f32 %v645, %v650
          %v654 = vlaneseq
          %v655 = vshrl.u32 %v654, 7
          %v656 = vsub.s32 0, %v655
          %v657 = vrot.slane %v630, %v656
          %v659 = vadd.f32 %v652, %v657
          %v660 = vpack.c.bf16 %v659, %v659
          %vm661 = vcmask 257024
          %662 = vst.msk [vmem:[#allocation2] sm:$0xf] %vm661, %v660
          %v663 = vld [vmem:[%s8] sm:$0x1]
          %v665 = vlaneseq
          %v666 = vshrl.u32 %v665, 7
          %v667 = vsub.s32 0, %v666
          %v668 = vrot.slane %v663, %v667
          %v670 = vadd.f32 %v668, 0.0
          %671 = vst.msk [vmem:[#allocation3] sm:$0xff] %vm631, %v670
        $region84: #{tpu_custom_call.1} parent=79 // pred_fallthru
          _
        %v672 = vld [vmem:[#allocation2] sm:$0xf]
        %v673 = vld [vmem:[%s606] sm:$0xf]
        %v674 = vld [vmem:[%s606 + $0x4] sm:$0xf]
        %v675 = vld [vmem:[%s606 + $0x8] sm:$0xf]
        %v676 = vld [vmem:[%s606 + $0xc] sm:$0xf]
        %v681 = vunpack.c.l.b16 %v673
        %v682 = vunpack.c.l.b16 %v674
        %v683 = vunpack.c.l.b16 %v675
        %v684 = vunpack.c.l.b16 %v676
        %v685 = vpack.c.b16 %v682, %v681
        %v686 = vpack.c.b16 %v684, %v683
        %vm689 = vcmask 261120
        %v691 = vsel %vm689, %v672, 0
        %693 = vmatprep.subr.bf16.mxu0 0
        %694 = vmatpush1.bf16.msra.mxu0 0
        %695 = vmatprep.subr.bf16.mxu0 0
        %696 = vmatpush1.bf16.msra.mxu0 0
        %697 = vmatprep.subr.bf16.mxu0 0
        %698 = vmatpush1.bf16.msra.mxu0 0
        %699 = vmatprep.subr.bf16.mxu0 0
        %700 = vmatpush1.bf16.msra.mxu0 0
        %701 = vmatprep.subr.bf16.mxu0 0
        %702 = vmatpush1.bf16.msra.mxu0 0
        %703 = vmatprep.subr.bf16.mxu0 0
        %704 = vmatpush1.bf16.msra.mxu0 0
        %705 = vmatprep.subr.bf16.mxu0 0
        %706 = vmatpush1.bf16.msra.mxu0 %v686
        %707 = vmatprep.subr.bf16.mxu0 0
        %708 = vmatpush1.bf16.msra.mxu0 %v685
        %709 = vmatprep.subr.bf16.mxu0 0
        %710 = vmatpush2.bf16.msra.mxu0 0
        %711 = vmatprep.subr.bf16.mxu0 0
        %712 = vmatpush2.bf16.msra.mxu0 0
        %713 = vmatprep.subr.bf16.mxu0 0
        %714 = vmatpush2.bf16.msra.mxu0 0
        %715 = vmatprep.subr.bf16.mxu0 0
        %716 = vmatpush2.bf16.msra.mxu0 0
        %717 = vmatprep.subr.bf16.mxu0 0
        %718 = vmatpush2.bf16.msra.mxu0 0
        %719 = vmatprep.subr.bf16.mxu0 0
        %720 = vmatpush2.bf16.msra.mxu0 0
        %721 = vmatprep.subr.bf16.mxu0 0
        %722 = vmatpush2.bf16.msra.mxu0 0
        %723 = vmatprep.subr.bf16.mxu0 0
        %724 = vmatpush2.bf16.msra.mxu0 0
        %725 = vmatprep.mubr.bf16.mxu0 0
        %726 = vmatmul.mubr.bf16.gmra.mxu0 %v691
        %v727 = vpop.f32.mrf.mxu0
        %v728 = vadd.f32 0.0, %v727
        %v729 = vpop.f32.mrf.mxu0
        %v730 = vpop.f32.mrf.mxu0
        %v731 = vpop.f32.mrf.mxu0
        %732 = vdwg.mxu0
        %v733 = vpack.c.bf16 %v728, %v728
        %v734 = vld [vmem:[%s611] sm:$0xf]
        %v735 = vld [vmem:[%s611 + $0x4] sm:$0xf]
        %v736 = vld [vmem:[%s611 + $0x8] sm:$0xf]
        %v737 = vld [vmem:[%s611 + $0xc] sm:$0xf]
        %v742 = vunpack.c.l.b16 %v734
        %v743 = vunpack.c.l.b16 %v735
        %v744 = vunpack.c.l.b16 %v736
        %v745 = vunpack.c.l.b16 %v737
        %v746 = vpack.c.b16 %v743, %v742
        %v747 = vpack.c.b16 %v745, %v744
        %750 = vmatprep.subr.bf16.mxu0 0
        %751 = vmatpush1.bf16.msra.mxu0 0
        %752 = vmatprep.subr.bf16.mxu0 0
        %753 = vmatpush1.bf16.msra.mxu0 0
        %754 = vmatprep.subr.bf16.mxu0 0
        %755 = vmatpush1.bf16.msra.mxu0 0
        %756 = vmatprep.subr.bf16.mxu0 0
        %757 = vmatpush1.bf16.msra.mxu0 0
        %758 = vmatprep.subr.bf16.mxu0 0
        %759 = vmatpush1.bf16.msra.mxu0 0
        %760 = vmatprep.subr.bf16.mxu0 0
        %761 = vmatpush1.bf16.msra.mxu0 0
        %762 = vmatprep.subr.bf16.mxu0 0
        %763 = vmatpush1.bf16.msra.mxu0 %v747
        %764 = vmatprep.subr.bf16.mxu0 0
        %765 = vmatpush1.bf16.msra.mxu0 %v746
        %766 = vmatprep.subr.bf16.mxu0 0
        %767 = vmatpush2.bf16.msra.mxu0 0
        %768 = vmatprep.subr.bf16.mxu0 0
        %769 = vmatpush2.bf16.msra.mxu0 0
        %770 = vmatprep.subr.bf16.mxu0 0
        %771 = vmatpush2.bf16.msra.mxu0 0
        %772 = vmatprep.subr.bf16.mxu0 0
        %773 = vmatpush2.bf16.msra.mxu0 0
        %774 = vmatprep.subr.bf16.mxu0 0
        %775 = vmatpush2.bf16.msra.mxu0 0
        %776 = vmatprep.subr.bf16.mxu0 0
        %777 = vmatpush2.bf16.msra.mxu0 0
        %778 = vmatprep.subr.bf16.mxu0 0
        %779 = vmatpush2.bf16.msra.mxu0 0
        %780 = vmatprep.subr.bf16.mxu0 0
        %781 = vmatpush2.bf16.msra.mxu0 0
        %782 = vmatprep.mubr.bf16.mxu0 0
        %783 = vmatmul.mubr.bf16.gmra.mxu0 %v691
        %v784 = vpop.f32.mrf.mxu0
        %v785 = vadd.f32 0.0, %v784
        %v786 = vpop.f32.mrf.mxu0
        %v787 = vpop.f32.mrf.mxu0
        %v788 = vpop.f32.mrf.mxu0
        %789 = vdwg.mxu0
        %v790 = vpack.c.bf16 %v785, %v785
        %v791 = vld [vmem:[%s616] sm:$0xf]
        %v792 = vld [vmem:[%s616 + $0x4] sm:$0xf]
        %v793 = vld [vmem:[%s616 + $0x8] sm:$0xf]
        %v794 = vld [vmem:[%s616 + $0xc] sm:$0xf]
        %v799 = vunpack.c.l.b16 %v791
        %v800 = vunpack.c.l.b16 %v792
        %v801 = vunpack.c.l.b16 %v793
        %v802 = vunpack.c.l.b16 %v794
        %v803 = vpack.c.b16 %v800, %v799
        %v804 = vpack.c.b16 %v802, %v801
        %807 = vmatprep.subr.bf16.mxu0 0
        %808 = vmatpush1.bf16.msra.mxu0 0
        %809 = vmatprep.subr.bf16.mxu0 0
        %810 = vmatpush1.bf16.msra.mxu0 0
        %811 = vmatprep.subr.bf16.mxu0 0
        %812 = vmatpush1.bf16.msra.mxu0 0
        %813 = vmatprep.subr.bf16.mxu0 0
        %814 = vmatpush1.bf16.msra.mxu0 0
        %815 = vmatprep.subr.bf16.mxu0 0
        %816 = vmatpush1.bf16.msra.mxu0 0
        %817 = vmatprep.subr.bf16.mxu0 0
        %818 = vmatpush1.bf16.msra.mxu0 0
        %819 = vmatprep.subr.bf16.mxu0 0
        %820 = vmatpush1.bf16.msra.mxu0 %v804
        %821 = vmatprep.subr.bf16.mxu0 0
        %822 = vmatpush1.bf16.msra.mxu0 %v803
        %823 = vmatprep.subr.bf16.mxu0 0
        %824 = vmatpush2.bf16.msra.mxu0 0
        %825 = vmatprep.subr.bf16.mxu0 0
        %826 = vmatpush2.bf16.msra.mxu0 0
        %827 = vmatprep.subr.bf16.mxu0 0
        %828 = vmatpush2.bf16.msra.mxu0 0
        %829 = vmatprep.subr.bf16.mxu0 0
        %830 = vmatpush2.bf16.msra.mxu0 0
        %831 = vmatprep.subr.bf16.mxu0 0
        %832 = vmatpush2.bf16.msra.mxu0 0
        %833 = vmatprep.subr.bf16.mxu0 0
        %834 = vmatpush2.bf16.msra.mxu0 0
        %835 = vmatprep.subr.bf16.mxu0 0
        %836 = vmatpush2.bf16.msra.mxu0 0
        %837 = vmatprep.subr.bf16.mxu0 0
        %838 = vmatpush2.bf16.msra.mxu0 0
        %839 = vmatprep.mubr.bf16.mxu0 0
        %840 = vmatmul.mubr.bf16.gmra.mxu0 %v691
        %v841 = vpop.f32.mrf.mxu0
        %v842 = vadd.f32 0.0, %v841
        %v843 = vpop.f32.mrf.mxu0
        %v844 = vpop.f32.mrf.mxu0
        %v845 = vpop.f32.mrf.mxu0
        %846 = vdwg.mxu0
        %v847 = vpack.c.bf16 %v842, %v842
        %vm848 = vcmask 64512
        %v850 = vsel %vm848, %v733, 0
        %v853 = vsel %vm848, %v790, 0
        %855 = vmatprep.subr.bf16.mxu0 0
        %856 = vmatpush1.bf16.xpose.msra.mxu0 0
        %857 = vmatprep.subr.bf16.mxu0 0
        %858 = vmatpush1.bf16.xpose.msra.mxu0 0
        %859 = vmatprep.subr.bf16.mxu0 0
        %860 = vmatpush1.bf16.xpose.msra.mxu0 0
        %861 = vmatprep.subr.bf16.mxu0 0
        %862 = vmatpush1.bf16.xpose.msra.mxu0 0
        %863 = vmatprep.subr.bf16.mxu0 0
        %864 = vmatpush1.bf16.xpose.msra.mxu0 0
        %865 = vmatprep.subr.bf16.mxu0 0
        %866 = vmatpush1.bf16.xpose.msra.mxu0 0
        %867 = vmatprep.subr.bf16.mxu0 0
        %868 = vmatpush1.bf16.xpose.msra.mxu0 0
        %869 = vmatprep.subr.bf16.mxu0 0
        %870 = vmatpush1.bf16.xpose.msra.mxu0 %v853
        %871 = vmatprep.subr.bf16.mxu0 0
        %872 = vmatpush2.bf16.xpose.msra.mxu0 0
        %873 = vmatprep.subr.bf16.mxu0 0
        %874 = vmatpush2.bf16.xpose.msra.mxu0 0
        %875 = vmatprep.subr.bf16.mxu0 0
        %876 = vmatpush2.bf16.xpose.msra.mxu0 0
        %877 = vmatprep.subr.bf16.mxu0 0
        %878 = vmatpush2.bf16.xpose.msra.mxu0 0
        %879 = vmatprep.subr.bf16.mxu0 0
        %880 = vmatpush2.bf16.xpose.msra.mxu0 0
        %881 = vmatprep.subr.bf16.mxu0 0
        %882 = vmatpush2.bf16.xpose.msra.mxu0 0
        %883 = vmatprep.subr.bf16.mxu0 0
        %884 = vmatpush2.bf16.xpose.msra.mxu0 0
        %885 = vmatprep.subr.bf16.mxu0 0
        %886 = vmatpush2.bf16.xpose.msra.mxu0 0
        %887 = vmatprep.mubr.bf16.mxu0 0
        %888 = vmatmul.mubr.bf16.gmra.mxu0 %v850
        %v889 = vpop.f32.mrf.mxu0
        %v890 = vadd.f32 0.0, %v889
        %v891 = vpop.f32.mrf.mxu0
        %v892 = vpop.f32.mrf.mxu0
        %v893 = vpop.f32.mrf.mxu0
        %894 = vdwg.mxu0
        %v895 = vsel %vm848, %v890, -inf
        %896 = vmax.xlane.f32.xlu0 %v895
        %v897 = vpop.xlane.xlu0 %896
        %v898 = vsub.f32 %v890, %v897
        %v899 = vmul.f32 %v898, 1.442695
        %v900 = vpow.pop %v899
        %v901 = vsel %vm848, %v900, 0.0
        %902 = vadd.xlane.f32.xlu0 %v901
        %v903 = vpop.xlane.xlu0 %902
        %v904 = vrcp.pop %v903
        %v905 = vmul.f32 1.0, %v904
        %v906 = vmul.f32 %v900, %v905
        %907 = vst.msk [vmem:[%s597] sm:$0xff] %vm848, %v906
        %v908 = vpack.c.bf16 %v906, %v906
        %v910 = vsel %vm848, %v908, 0
        %vm912 = vcmask 1043456
        %v914 = vsel %vm912, %v847, 0
        %916 = vmatprep.subr.bf16.mxu0 0
        %917 = vmatpush1.bf16.msra.mxu0 0
        %918 = vmatprep.subr.bf16.mxu0 0
        %919 = vmatpush1.bf16.msra.mxu0 0
        %920 = vmatprep.subr.bf16.mxu0 0
        %921 = vmatpush1.bf16.msra.mxu0 0
        %922 = vmatprep.subr.bf16.mxu0 0
        %923 = vmatpush1.bf16.msra.mxu0 0
        %924 = vmatprep.subr.bf16.mxu0 0
        %925 = vmatpush1.bf16.msra.mxu0 0
        %926 = vmatprep.subr.bf16.mxu0 0
        %927 = vmatpush1.bf16.msra.mxu0 0
        %928 = vmatprep.subr.bf16.mxu0 0
        %929 = vmatpush1.bf16.msra.mxu0 0
        %930 = vmatprep.subr.bf16.mxu0 0
        %931 = vmatpush1.bf16.msra.mxu0 %v914
        %932 = vmatprep.subr.bf16.mxu0 0
        %933 = vmatpush2.bf16.msra.mxu0 0
        %934 = vmatprep.subr.bf16.mxu0 0
        %935 = vmatpush2.bf16.msra.mxu0 0
        %936 = vmatprep.subr.bf16.mxu0 0
        %937 = vmatpush2.bf16.msra.mxu0 0
        %938 = vmatprep.subr.bf16.mxu0 0
        %939 = vmatpush2.bf16.msra.mxu0 0
        %940 = vmatprep.subr.bf16.mxu0 0
        %941 = vmatpush2.bf16.msra.mxu0 0
        %942 = vmatprep.subr.bf16.mxu0 0
        %943 = vmatpush2.bf16.msra.mxu0 0
        %944 = vmatprep.subr.bf16.mxu0 0
        %945 = vmatpush2.bf16.msra.mxu0 0
        %946 = vmatprep.subr.bf16.mxu0 0
        %947 = vmatpush2.bf16.msra.mxu0 0
        %948 = vmatprep.mubr.bf16.mxu0 0
        %949 = vmatmul.mubr.bf16.gmra.mxu0 %v910
        %v950 = vpop.f32.mrf.mxu0
        %v951 = vadd.f32 0.0, %v950
        %v952 = vpop.f32.mrf.mxu0
        %v953 = vpop.f32.mrf.mxu0
        %v954 = vpop.f32.mrf.mxu0
        %955 = vdwg.mxu0
        %v956 = vpack.c.bf16 %v951, %v951
        %958 = vrot.lane.b32.xlu0 %v733, 120
        %v959 = vpop.permute.xlu0 %958
        %961 = vrot.lane.b32.xlu0 %v790, 120
        %v962 = vpop.permute.xlu0 %961
        %v964 = vsel %vm848, %v959, 0
        %v967 = vsel %vm848, %v962, 0
        %969 = vmatprep.subr.bf16.mxu0 0
        %970 = vmatpush1.bf16.xpose.msra.mxu0 0
        %971 = vmatprep.subr.bf16.mxu0 0
        %972 = vmatpush1.bf16.xpose.msra.mxu0 0
        %973 = vmatprep.subr.bf16.mxu0 0
        %974 = vmatpush1.bf16.xpose.msra.mxu0 0
        %975 = vmatprep.subr.bf16.mxu0 0
        %976 = vmatpush1.bf16.xpose.msra.mxu0 0
        %977 = vmatprep.subr.bf16.mxu0 0
        %978 = vmatpush1.bf16.xpose.msra.mxu0 0
        %979 = vmatprep.subr.bf16.mxu0 0
        %980 = vmatpush1.bf16.xpose.msra.mxu0 0
        %981 = vmatprep.subr.bf16.mxu0 0
        %982 = vmatpush1.bf16.xpose.msra.mxu0 0
        %983 = vmatprep.subr.bf16.mxu0 0
        %984 = vmatpush1.bf16.xpose.msra.mxu0 %v967
        %985 = vmatprep.subr.bf16.mxu0 0
        %986 = vmatpush2.bf16.xpose.msra.mxu0 0
        %987 = vmatprep.subr.bf16.mxu0 0
        %988 = vmatpush2.bf16.xpose.msra.mxu0 0
        %989 = vmatprep.subr.bf16.mxu0 0
        %990 = vmatpush2.bf16.xpose.msra.mxu0 0
        %991 = vmatprep.subr.bf16.mxu0 0
        %992 = vmatpush2.bf16.xpose.msra.mxu0 0
        %993 = vmatprep.subr.bf16.mxu0 0
        %994 = vmatpush2.bf16.xpose.msra.mxu0 0
        %995 = vmatprep.subr.bf16.mxu0 0
        %996 = vmatpush2.bf16.xpose.msra.mxu0 0
        %997 = vmatprep.subr.bf16.mxu0 0
        %998 = vmatpush2.bf16.xpose.msra.mxu0 0
        %999 = vmatprep.subr.bf16.mxu0 0
        %1000 = vmatpush2.bf16.xpose.msra.mxu0 0
        %1001 = vmatprep.mubr.bf16.mxu0 0
        %1002 = vmatmul.mubr.bf16.gmra.mxu0 %v964
        %v1003 = vpop.f32.mrf.mxu0
        %v1004 = vadd.f32 0.0, %v1003
        %v1005 = vpop.f32.mrf.mxu0
        %v1006 = vpop.f32.mrf.mxu0
        %v1007 = vpop.f32.mrf.mxu0
        %1008 = vdwg.mxu0
        %v1009 = vsel %vm848, %v1004, -inf
        %1010 = vmax.xlane.f32.xlu0 %v1009
        %v1011 = vpop.xlane.xlu0 %1010
        %v1012 = vsub.f32 %v1004, %v1011
        %v1013 = vmul.f32 %v1012, 1.442695
        %v1014 = vpow.pop %v1013
        %v1015 = vsel %vm848, %v1014, 0.0
        %1016 = vadd.xlane.f32.xlu0 %v1015
        %v1017 = vpop.xlane.xlu0 %1016
        %v1018 = vrcp.pop %v1017
        %v1019 = vmul.f32 1.0, %v1018
        %v1020 = vmul.f32 %v1014, %v1019
        %s1021 = scalar_lea.vmem %s597, 8 [#allocation6]
        %1022 = vst.msk [vmem:[%s1021] sm:$0xff] %vm848, %v1020
        %v1023 = vpack.c.bf16 %v1020, %v1020
        %1025 = vrot.lane.b32.xlu0 %v847, 120
        %v1026 = vpop.permute.xlu0 %1025
        %v1028 = vsel %vm848, %v1023, 0
        %v1031 = vsel %vm912, %v1026, 0
        %1033 = vmatprep.subr.bf16.mxu0 0
        %1034 = vmatpush1.bf16.msra.mxu0 0
        %1035 = vmatprep.subr.bf16.mxu0 0
        %1036 = vmatpush1.bf16.msra.mxu0 0
        %1037 = vmatprep.subr.bf16.mxu0 0
        %1038 = vmatpush1.bf16.msra.mxu0 0
        %1039 = vmatprep.subr.bf16.mxu0 0
        %1040 = vmatpush1.bf16.msra.mxu0 0
        %1041 = vmatprep.subr.bf16.mxu0 0
        %1042 = vmatpush1.bf16.msra.mxu0 0
        %1043 = vmatprep.subr.bf16.mxu0 0
        %1044 = vmatpush1.bf16.msra.mxu0 0
        %1045 = vmatprep.subr.bf16.mxu0 0
        %1046 = vmatpush1.bf16.msra.mxu0 0
        %1047 = vmatprep.subr.bf16.mxu0 0
        %1048 = vmatpush1.bf16.msra.mxu0 %v1031
        %1049 = vmatprep.subr.bf16.mxu0 0
        %1050 = vmatpush2.bf16.msra.mxu0 0
        %1051 = vmatprep.subr.bf16.mxu0 0
        %1052 = vmatpush2.bf16.msra.mxu0 0
        %1053 = vmatprep.subr.bf16.mxu0 0
        %1054 = vmatpush2.bf16.msra.mxu0 0
        %1055 = vmatprep.subr.bf16.mxu0 0
        %1056 = vmatpush2.bf16.msra.mxu0 0
        %1057 = vmatprep.subr.bf16.mxu0 0
        %1058 = vmatpush2.bf16.msra.mxu0 0
        %1059 = vmatprep.subr.bf16.mxu0 0
        %1060 = vmatpush2.bf16.msra.mxu0 0
        %1061 = vmatprep.subr.bf16.mxu0 0
        %1062 = vmatpush2.bf16.msra.mxu0 0
        %1063 = vmatprep.subr.bf16.mxu0 0
        %1064 = vmatpush2.bf16.msra.mxu0 0
        %1065 = vmatprep.mubr.bf16.mxu0 0
        %1066 = vmatmul.mubr.bf16.gmra.mxu0 %v1028
        %v1067 = vpop.f32.mrf.mxu0
        %v1068 = vadd.f32 0.0, %v1067
        %v1069 = vpop.f32.mrf.mxu0
        %v1070 = vpop.f32.mrf.mxu0
        %v1071 = vpop.f32.mrf.mxu0
        %1072 = vdwg.mxu0
        %v1073 = vpack.c.bf16 %v1068, %v1068
        %1075 = vrot.lane.b32.xlu0 %v1073, 8
        %v1076 = vpop.permute.xlu0 %1075
        %v1079 = vsel %vm848, %v956, %v1076
        %v1080 = vld [vmem:[#allocation3] sm:$0xff]
        %v1081 = vld [vmem:[%s621] sm:$0xf]
        %v1082 = vld [vmem:[%s621 + $0x4] sm:$0xf]
        %v1085 = vunpack.c.l.b16 %v1081
        %v1086 = vunpack.c.l.b16 %v1082
        %v1087 = vpack.c.b16 %v1086, %v1085
        %vm1089 = vcmask 130048
        %v1090 = vsel %vm1089, %v1079, 0
        %1092 = vmatprep.subr.bf16.mxu0 0
        %1093 = vmatpush1.bf16.msra.mxu0 0
        %1094 = vmatprep.subr.bf16.mxu0 0
        %1095 = vmatpush1.bf16.msra.mxu0 0
        %1096 = vmatprep.subr.bf16.mxu0 0
        %1097 = vmatpush1.bf16.msra.mxu0 0
        %1098 = vmatprep.subr.bf16.mxu0 0
        %1099 = vmatpush1.bf16.msra.mxu0 0
        %1100 = vmatprep.subr.bf16.mxu0 0
        %1101 = vmatpush1.bf16.msra.mxu0 0
        %1102 = vmatprep.subr.bf16.mxu0 0
        %1103 = vmatpush1.bf16.msra.mxu0 0
        %1104 = vmatprep.subr.bf16.mxu0 0
        %1105 = vmatpush1.bf16.msra.mxu0 0
        %1106 = vmatprep.subr.bf16.mxu0 0
        %1107 = vmatpush1.bf16.msra.mxu0 %v1087
        %1108 = vmatprep.subr.bf16.mxu0 0
        %1109 = vmatpush2.bf16.msra.mxu0 0
        %1110 = vmatprep.subr.bf16.mxu0 0
        %1111 = vmatpush2.bf16.msra.mxu0 0
        %1112 = vmatprep.subr.bf16.mxu0 0
        %1113 = vmatpush2.bf16.msra.mxu0 0
        %1114 = vmatprep.subr.bf16.mxu0 0
        %1115 = vmatpush2.bf16.msra.mxu0 0
        %1116 = vmatprep.subr.bf16.mxu0 0
        %1117 = vmatpush2.bf16.msra.mxu0 0
        %1118 = vmatprep.subr.bf16.mxu0 0
        %1119 = vmatpush2.bf16.msra.mxu0 0
        %1120 = vmatprep.subr.bf16.mxu0 0
        %1121 = vmatpush2.bf16.msra.mxu0 0
        %1122 = vmatprep.subr.bf16.mxu0 0
        %1123 = vmatpush2.bf16.msra.mxu0 0
        %1124 = vmatprep.mubr.bf16.mxu0 0
        %1125 = vmatmul.mubr.bf16.gmra.mxu0 %v1090
        %v1126 = vpop.f32.mrf.mxu0
        %v1127 = vadd.f32 0.0, %v1126
        %v1128 = vpop.f32.mrf.mxu0
        %v1129 = vpop.f32.mrf.mxu0
        %v1130 = vpop.f32.mrf.mxu0
        %1131 = vdwg.mxu0
        %v1132 = vadd.f32 %v1080, %v1127
        %1133 = vst.msk [vmem:[#allocation3] sm:$0xff] %vm689, %v1132
        %p1134 = scmp.eq.s32.totalorder %s39, 1
        // Predicated region
        $region85: #{tpu_custom_call.1} parent=79 // pred_check
          %p1135 = pneg %p1134
        $region86: #{tpu_custom_call.1} parent=79 // pred_check_branch
          %1137 = sbr.rel (%p1135) target = $region88
        $region87: #{tpu_custom_call.1} parent=79 // pred_region
          %v1138 = vld [vmem:[%s601] sm:$0xff]
          %v1139 = vld [vmem:[#allocation3] sm:$0xff]
          %v1140 = vadd.f32 %v1138, %v1139
          %v1141 = vld [vmem:[%s9] sm:$0x1]
          %v1142 = vld [vmem:[%s10] sm:$0x1]
          %v1143 = vsel %vm689, %v1140, 0.0
          %1144 = vadd.xlane.f32.xlu0 %v1143
          %v1145 = vpop.xlane.xlu0 %1144
          %v1146 = vrcp.pop 32.0
          %v1147 = vmul.f32 %v1145, %v1146
          %v1148 = vsub.f32 %v1140, %v1147
          %v1149 = vmul.f32 %v1148, %v1148
          %v1150 = vsel %vm689, %v1149, 0.0
          %1151 = vadd.xlane.f32.xlu0 %v1150
          %v1152 = vpop.xlane.xlu0 %1151
          %v1153 = vmul.f32 %v1152, %v1146
          %v1154 = vadd.f32 %v1153, 1e-05
          %v1155 = vrsqrt.pop %v1154
          %v1156 = vmul.f32 %v1148, %v1155
          %v1158 = vlaneseq
          %v1159 = vshrl.u32 %v1158, 7
          %v1160 = vsub.s32 0, %v1159
          %v1161 = vrot.slane %v1141, %v1160
          %v1163 = vmul.f32 %v1156, %v1161
          %v1165 = vlaneseq
          %v1166 = vshrl.u32 %v1165, 7
          %v1167 = vsub.s32 0, %v1166
          %v1168 = vrot.slane %v1142, %v1167
          %v1170 = vadd.f32 %v1163, %v1168
          %v1171 = vpack.c.bf16 %v1170, %v1170
          %v1172 = vld [vmem:[%s11] sm:$0xf]
          %v1173 = vld [vmem:[%s11 + $0x4] sm:$0xf]
          %v1174 = vld [vmem:[%s11 + $0x8] sm:$0xf]
          %v1175 = vld [vmem:[%s11 + $0xc] sm:$0xf]
          %v1176 = vld [vmem:[%s12] sm:$0x1]
          %v1178 = vlaneseq
          %v1179 = vshrl.u32 %v1178, 7
          %v1180 = vsub.s32 0, %v1179
          %v1181 = vrot.slane %v1176, %v1180
          %v1187 = vunpack.c.l.b16 %v1172
          %v1188 = vunpack.c.l.b16 %v1173
          %v1189 = vunpack.c.l.b16 %v1174
          %v1190 = vunpack.c.l.b16 %v1175
          %v1191 = vpack.c.b16 %v1188, %v1187
          %v1192 = vpack.c.b16 %v1190, %v1189
          %v1196 = vsel %vm689, %v1171, 0
          %1198 = vmatprep.subr.bf16.mxu0 0
          %1199 = vmatpush1.bf16.msra.mxu0 0
          %1200 = vmatprep.subr.bf16.mxu0 0
          %1201 = vmatpush1.bf16.msra.mxu0 0
          %1202 = vmatprep.subr.bf16.mxu0 0
          %1203 = vmatpush1.bf16.msra.mxu0 0
          %1204 = vmatprep.subr.bf16.mxu0 0
          %1205 = vmatpush1.bf16.msra.mxu0 0
          %1206 = vmatprep.subr.bf16.mxu0 0
          %1207 = vmatpush1.bf16.msra.mxu0 0
          %1208 = vmatprep.subr.bf16.mxu0 0
          %1209 = vmatpush1.bf16.msra.mxu0 0
          %1210 = vmatprep.subr.bf16.mxu0 0
          %1211 = vmatpush1.bf16.msra.mxu0 %v1192
          %1212 = vmatprep.subr.bf16.mxu0 0
          %1213 = vmatpush1.bf16.msra.mxu0 %v1191
          %1214 = vmatprep.subr.bf16.mxu0 0
          %1215 = vmatpush2.bf16.msra.mxu0 0
          %1216 = vmatprep.subr.bf16.mxu0 0
          %1217 = vmatpush2.bf16.msra.mxu0 0
          %1218 = vmatprep.subr.bf16.mxu0 0
          %1219 = vmatpush2.bf16.msra.mxu0 0
          %1220 = vmatprep.subr.bf16.mxu0 0
          %1221 = vmatpush2.bf16.msra.mxu0 0
          %1222 = vmatprep.subr.bf16.mxu0 0
          %1223 = vmatpush2.bf16.msra.mxu0 0
          %1224 = vmatprep.subr.bf16.mxu0 0
          %1225 = vmatpush2.bf16.msra.mxu0 0
          %1226 = vmatprep.subr.bf16.mxu0 0
          %1227 = vmatpush2.bf16.msra.mxu0 0
          %1228 = vmatprep.subr.bf16.mxu0 0
          %1229 = vmatpush2.bf16.msra.mxu0 0
          %1230 = vmatprep.mubr.bf16.mxu0 0
          %1231 = vmatmul.mubr.bf16.gmra.mxu0 %v1196
          %v1232 = vpop.f32.mrf.mxu0
          %v1233 = vadd.f32 %v1181, %v1232
          %v1234 = vpop.f32.mrf.mxu0
          %v1235 = vpop.f32.mrf.mxu0
          %v1236 = vpop.f32.mrf.mxu0
          %1237 = vdwg.mxu0
          %v1238 = vmul.f32 %v1233, 0.5
          %v1239 = vmul.f32 %v1233, 0.70710677
          %v1240 = verf.f32.pop %v1239
          %v1241 = vadd.f32 %v1240, 1.0
          %v1242 = vmul.f32 %v1238, %v1241
          %v1243 = vpack.c.bf16 %v1242, %v1242
          %v1244 = vld [vmem:[%s13] sm:$0xf]
          %v1245 = vld [vmem:[%s13 + $0x4] sm:$0xf]
          %v1246 = vld [vmem:[%s13 + $0x8] sm:$0xf]
          %v1247 = vld [vmem:[%s13 + $0xc] sm:$0xf]
          %v1248 = vld [vmem:[%s13 + $0x10] sm:$0xf]
          %v1249 = vld [vmem:[%s13 + $0x14] sm:$0xf]
          %v1250 = vld [vmem:[%s13 + $0x18] sm:$0xf]
          %v1251 = vld [vmem:[%s13 + $0x1c] sm:$0xf]
          %v1252 = vld [vmem:[%s13 + $0x20] sm:$0xf]
          %v1253 = vld [vmem:[%s13 + $0x24] sm:$0xf]
          %v1254 = vld [vmem:[%s13 + $0x28] sm:$0xf]
          %v1255 = vld [vmem:[%s13 + $0x2c] sm:$0xf]
          %v1256 = vld [vmem:[%s13 + $0x30] sm:$0xf]
          %v1257 = vld [vmem:[%s13 + $0x34] sm:$0xf]
          %v1258 = vld [vmem:[%s13 + $0x38] sm:$0xf]
          %v1259 = vld [vmem:[%s13 + $0x3c] sm:$0xf]
          %v1260 = vld [vmem:[%s14] sm:$0x1]
          %v1262 = vlaneseq
          %v1263 = vshrl.u32 %v1262, 7
          %v1264 = vsub.s32 0, %v1263
          %v1265 = vrot.slane %v1260, %v1264
          %v1283 = vunpack.c.l.b16 %v1244
          %v1284 = vunpack.c.l.b16 %v1245
          %v1285 = vunpack.c.l.b16 %v1246
          %v1286 = vunpack.c.l.b16 %v1247
          %v1287 = vunpack.c.l.b16 %v1248
          %v1288 = vunpack.c.l.b16 %v1249
          %v1289 = vunpack.c.l.b16 %v1250
          %v1290 = vunpack.c.l.b16 %v1251
          %v1291 = vunpack.c.l.b16 %v1252
          %v1292 = vunpack.c.l.b16 %v1253
          %v1293 = vunpack.c.l.b16 %v1254
          %v1294 = vunpack.c.l.b16 %v1255
          %v1295 = vunpack.c.l.b16 %v1256
          %v1296 = vunpack.c.l.b16 %v1257
          %v1297 = vunpack.c.l.b16 %v1258
          %v1298 = vunpack.c.l.b16 %v1259
          %v1299 = vpack.c.b16 %v1284, %v1283
          %v1300 = vpack.c.b16 %v1286, %v1285
          %v1301 = vpack.c.b16 %v1288, %v1287
          %v1302 = vpack.c.b16 %v1290, %v1289
          %v1303 = vpack.c.b16 %v1292, %v1291
          %v1304 = vpack.c.b16 %v1294, %v1293
          %v1305 = vpack.c.b16 %v1296, %v1295
          %v1306 = vpack.c.b16 %v1298, %v1297
          %1315 = vmatprep.subr.bf16.mxu0 0
          %1316 = vmatpush1.bf16.msra.mxu0 %v1306
          %1317 = vmatprep.subr.bf16.mxu0 0
          %1318 = vmatpush1.bf16.msra.mxu0 %v1305
          %1319 = vmatprep.subr.bf16.mxu0 0
          %1320 = vmatpush1.bf16.msra.mxu0 %v1304
          %1321 = vmatprep.subr.bf16.mxu0 0
          %1322 = vmatpush1.bf16.msra.mxu0 %v1303
          %1323 = vmatprep.subr.bf16.mxu0 0
          %1324 = vmatpush1.bf16.msra.mxu0 %v1302
          %1325 = vmatprep.subr.bf16.mxu0 0
          %1326 = vmatpush1.bf16.msra.mxu0 %v1301
          %1327 = vmatprep.subr.bf16.mxu0 0
          %1328 = vmatpush1.bf16.msra.mxu0 %v1300
          %1329 = vmatprep.subr.bf16.mxu0 0
          %1330 = vmatpush1.bf16.msra.mxu0 %v1299
          %1331 = vmatprep.subr.bf16.mxu0 0
          %1332 = vmatpush2.bf16.msra.mxu0 0
          %1333 = vmatprep.subr.bf16.mxu0 0
          %1334 = vmatpush2.bf16.msra.mxu0 0
          %1335 = vmatprep.subr.bf16.mxu0 0
          %1336 = vmatpush2.bf16.msra.mxu0 0
          %1337 = vmatprep.subr.bf16.mxu0 0
          %1338 = vmatpush2.bf16.msra.mxu0 0
          %1339 = vmatprep.subr.bf16.mxu0 0
          %1340 = vmatpush2.bf16.msra.mxu0 0
          %1341 = vmatprep.subr.bf16.mxu0 0
          %1342 = vmatpush2.bf16.msra.mxu0 0
          %1343 = vmatprep.subr.bf16.mxu0 0
          %1344 = vmatpush2.bf16.msra.mxu0 0
          %1345 = vmatprep.subr.bf16.mxu0 0
          %1346 = vmatpush2.bf16.msra.mxu0 0
          %1347 = vmatprep.mubr.bf16.mxu0 0
          %1348 = vmatmul.mubr.bf16.gmra.mxu0 %v1243
          %v1349 = vpop.f32.mrf.mxu0
          %v1350 = vadd.f32 %v1265, %v1349
          %v1351 = vpop.f32.mrf.mxu0
          %v1352 = vpop.f32.mrf.mxu0
          %v1353 = vpop.f32.mrf.mxu0
          %1354 = vdwg.mxu0
          %v1355 = vadd.f32 %v1140, %v1350
          %1356 = vst.msk [vmem:[%s590] sm:$0xff] %vm689, %v1355
        $region88: #{tpu_custom_call.1} parent=79 // pred_fallthru
          _
        %s1357 = sand.u32 %s394, 1
        %s1358 = scalar_lea.sflag [#allocation5], %s1357
        %s1359 = sand.u32 %s394, 1
        %s1360 = smul.addr %s1359, 8
        %s1361 = scalar_lea.vmem [#allocation4], %s1360
        %s1362 = sand.u32 %s422, 1
        %s1363 = scalar_lea.sflag [#allocation7], %s1362
        %s1364 = sand.u32 %s422, 1
        %s1365 = smul.addr %s1364, 16
        %s1366 = scalar_lea.vmem [#allocation6], %s1365
        // Predicated region
        $region89: #{tpu_custom_call.1} parent=79 // pred_check
          %p1367 = pneg %p404
        $region90: #{tpu_custom_call.1} parent=79 // pred_check_branch
          %1369 = sbr.rel (%p1367) target = $region92
        $region91: #{tpu_custom_call.1} parent=79 // pred_region
          %s1371 = ssub.s32 128, 128
          %1372 = vsyncadd %s1358, %s1371
          %s1373 = smul.addr %s38, 128
          %s1374 = scalar_lea.hbm %s15, %s1373
          %s1376 = sshll.u32 %s1361, 4
          %s1377 = int_to_ptr.vmem [resolvable:$true] %s1376
          %1379 = dma.vmem_to_hbm [thread:$0]  %s1377, 128, %s1374, %s1358
        $region92: #{tpu_custom_call.1} parent=79 // pred_fallthru
          _
        // Predicated region
        $region93: #{tpu_custom_call.1} parent=79 // pred_check
          %p1380 = pneg %p432
        $region94: #{tpu_custom_call.1} parent=79 // pred_check_branch
          %1382 = sbr.rel (%p1380) target = $region96
        $region95: #{tpu_custom_call.1} parent=79 // pred_region
          %s1383 = smul.u32 2, %s39
          %s1385 = ssub.s32 256, 256
          %1386 = vsyncadd %s1363, %s1385
          %s1387 = smul.addr %s38, 4
          %s1388 = sadd.s32 %s1383, %s1387
          %s1389 = smul.addr %s1388, 128
          %s1390 = scalar_lea.hbm %s16, %s1389
          %s1391 = sshll.u32 %s1366, 4
          %s1392 = int_to_ptr.vmem [resolvable:$true] %s1391
          %1397 = dma.vmem_to_hbm [thread:$0]  %s1392, 256, %s1390, %s1363, 128, 128, 8
        $region96: #{tpu_custom_call.1} parent=79 // pred_fallthru
          _
      $region80: #{tpu_custom_call.1} parent=5 // pred_fallthru
        _
      %p1398 = scmp.le.s32.totalorder 2, %s29
      // Predicated region
      $region97: #{tpu_custom_call.1} parent=5 // pred_check
        %p1399 = pneg %p1398
      $region98: #{tpu_custom_call.1} parent=5 // pred_check_branch
        %1401 = sbr.rel (%p1399) target = $region100
      $region99: #{tpu_custom_call.1} parent=5 // pred_region
        %s1402 = ssub.s32 %s29, 2
        // Predicated region
        $region101: #{tpu_custom_call.1} parent=99 // pred_check
          %p1403 = pneg %p410
        $region102: #{tpu_custom_call.1} parent=99 // pred_check_branch
          %1405 = sbr.rel (%p1403) target = $region104
        $region103: #{tpu_custom_call.1} parent=99 // pred_region
          %s1406 = sand.u32 %s395, 1
          %s1407 = scalar_lea.sflag [#allocation5], %s1406
          %s1408 = sand.u32 %s395, 1
          %s1409 = smul.addr %s1408, 8
          %s1410 = scalar_lea.vmem [#allocation4], %s1409
          %1411 = dma.done %s1407, 128
        $region104: #{tpu_custom_call.1} parent=99 // pred_fallthru
          _
        // Predicated region
        $region105: #{tpu_custom_call.1} parent=99 // pred_check
          %p1412 = pneg %p438
        $region106: #{tpu_custom_call.1} parent=99 // pred_check_branch
          %1414 = sbr.rel (%p1412) target = $region108
        $region107: #{tpu_custom_call.1} parent=99 // pred_region
          %s1415 = sand.u32 %s423, 1
          %s1416 = scalar_lea.sflag [#allocation7], %s1415
          %s1417 = sand.u32 %s423, 1
          %s1418 = smul.addr %s1417, 16
          %s1419 = scalar_lea.vmem [#allocation6], %s1418
          %1420 = dma.done %s1416, 256
        $region108: #{tpu_custom_call.1} parent=99 // pred_fallthru
          _
      $region100: #{tpu_custom_call.1} parent=5 // pred_fallthru
        _
    $region6: #{tpu_custom_call.1} parent=1 // loop_footer
      %s33 = sadd.s32 1, %s29
    $region7: #{tpu_custom_call.1} parent=1 // loop_footer_branch
      %28 = sbr.rel target = $region3
    $region8: #{tpu_custom_call.1} parent=1 // loop_exit
      _
    %1421 = vsyncpa [#allocation5], 1
    %s1422 = scalar_lea.sflag [#allocation5], 1
    %1423 = vsyncpa %s1422, 1
    %1424 = vsyncpa [#allocation7], 1
    %s1425 = scalar_lea.sflag [#allocation7], 1
    %1426 = vsyncpa %s1425, 1

// kernel: tpu_custom_call.1
$region0: #{tpu_custom_call.1}
  #allocation0 [shape = 'u32[]', space=smem, size = 0x4, offset = 0x4, fixed_abs, tag = 'smem constant byte address 0x4 - core index']
  #allocation1 [shape = 'u32[144,128]{1,0:T(1,128)}', space=vmem, size = 0x12000, scoped, tag = 'internal scratch']
  #allocation2 [shape = 'bf16[8,32]{1,0:T(8,128)(2,1)}', space=vmem, size = 0x800, scoped, tag = 'scratch operand']
  #allocation3 [shape = 'f32[8,32]{1,0:T(8,128)}', space=vmem, size = 0x1000, scoped, tag = 'scratch operand']
  %s0 = inlined_call_operand.vmem [shape: f32[4,8,32], index: 0, kind: input, shape index: {}]
  %s1 = inlined_call_operand.vmem [shape: f32[1,8], index: 1, kind: input, shape index: {}]
  %s2 = inlined_call_operand.vmem [shape: f32[1,32], index: 2, kind: input, shape index: {}]
  %s3 = inlined_call_operand.vmem [shape: f32[1,32], index: 3, kind: input, shape index: {}]
  %s4 = inlined_call_operand.vmem [shape: bf16[2,32,16], index: 4, kind: input, shape index: {}]
  %s5 = inlined_call_operand.vmem [shape: bf16[2,32,16], index: 5, kind: input, shape index: {}]
  %s6 = inlined_call_operand.vmem [shape: bf16[2,32,16], index: 6, kind: input, shape index: {}]
  %s7 = inlined_call_operand.vmem [shape: bf16[2,16,32], index: 7, kind: input, shape index: {}]
  %s8 = inlined_call_operand.vmem [shape: f32[1,32], index: 8, kind: input, shape index: {}]
  %s9 = inlined_call_operand.vmem [shape: f32[1,32], index: 9, kind: input, shape index: {}]
  %s10 = inlined_call_operand.vmem [shape: f32[1,32], index: 10, kind: input, shape index: {}]
  %s11 = inlined_call_operand.vmem [shape: bf16[32,128], index: 11, kind: input, shape index: {}]
  %s12 = inlined_call_operand.vmem [shape: f32[1,128], index: 12, kind: input, shape index: {}]
  %s13 = inlined_call_operand.vmem [shape: bf16[128,32], index: 13, kind: input, shape index: {}]
  %s14 = inlined_call_operand.vmem [shape: f32[1,32], index: 14, kind: input, shape index: {}]
  %s15 = inlined_call_operand.hbm [shape: f32[4,8,32], index: 15, kind: output, shape index: {0}]
  %s16 = inlined_call_operand.hbm [shape: f32[4,4,8,8], index: 16, kind: output, shape index: {1}]
  %17 = xla_tuple %s15, %s16
  %s18 = sld [smem:[#allocation0]]
  $region109: #{tpu_custom_call.1} parent=0
    _
  %s20 = ssub.s32 1, %s18
  %s21 = scalar_select 0, %s20, %s18
  $region1: #{tpu_custom_call.1} parent=0
    #allocation4 [shape = 'u8[8192]{0}', space=vmem, size = 0x2000, scoped, tag = 'output window, operand 0']
    #allocation5 [shape = 's32[2]{0}', space=sflag, size = 0x8, scoped, tag = 'scoped memory for tpu_custom_call.1']
    #allocation6 [shape = 'u8[16384]{0}', space=vmem, size = 0x4000, scoped, tag = 'output window, operand 1']
    #allocation7 [shape = 's32[2]{0}', space=sflag, size = 0x8, scoped, tag = 'scoped memory for tpu_custom_call.1']
    %22 = vsyncpa [#allocation5], 0
    %s23 = scalar_lea.sflag [#allocation5], 1
    %24 = vsyncpa %s23, 0
    %25 = vsyncpa [#allocation7], 0
    %s26 = scalar_lea.sflag [#allocation7], 1
    %27 = vsyncpa %s26, 0
    loop: start=0, step=1, limit=10
    $region2: #{tpu_custom_call.1} parent=1 // loop_pre_header
      _
    $region3: #{tpu_custom_call.1} parent=1 // loop_header
      %s29 = sphi 0, %s33
      %p30 = scmp.ge.s32.totalorder %s29, 10
      %s36 = sphi 0, %s48
      %s37 = sphi 0, %s44
      %s38 = sphi 0, %s36
      %s39 = sphi 0, %s37
      %s40 = sphi 0, %s38
      %s41 = sphi 0, %s39
      %s51 = sphi 0, %s53
      %s54 = sphi 0, %s51
      %s55 = sphi 0, %s54
      %s71 = sphi 0, %s55
      %s75 = sphi 0, %s75
      %s77 = sphi 0, %s75
      %s78 = sphi 0, %s77
      %s92 = sphi 0, %s78
      %s96 = sphi 0, %s96
      %s98 = sphi 0, %s96
      %s99 = sphi 0, %s98
      %s113 = sphi 0, %s99
      %s117 = sphi 0, %s117
      %s119 = sphi 0, %s117
      %s120 = sphi 0, %s119
      %s134 = sphi 0, %s120
      %s140 = sphi 0, %s142
      %s143 = sphi 0, %s140
      %s144 = sphi 0, %s143
      %s160 = sphi 0, %s144
      %s166 = sphi 0, %s168
      %s169 = sphi 0, %s166
      %s170 = sphi 0, %s169
      %s186 = sphi 0, %s170
      %s192 = sphi 0, %s194
      %s195 = sphi 0, %s192
      %s196 = sphi 0, %s195
      %s212 = sphi 0, %s196
      %s218 = sphi 0, %s220
      %s221 = sphi 0, %s218
      %s222 = sphi 0, %s221
      %s238 = sphi 0, %s222
      %s242 = sphi 0, %s242
      %s244 = sphi 0, %s242
      %s245 = sphi 0, %s244
      %s259 = sphi 0, %s245
      %s263 = sphi 0, %s263
      %s265 = sphi 0, %s263
      %s266 = sphi 0, %s265
      %s280 = sphi 0, %s266
      %s284 = sphi 0, %s284
      %s286 = sphi 0, %s284
      %s287 = sphi 0, %s286
      %s301 = sphi 0, %s287
      %s305 = sphi 0, %s305
      %s307 = sphi 0, %s305
      %s308 = sphi 0, %s307
      %s322 = sphi 0, %s308
      %s326 = sphi 0, %s326
      %s328 = sphi 0, %s326
      %s329 = sphi 0, %s328
      %s343 = sphi 0, %s329
      %s347 = sphi 0, %s347
      %s349 = sphi 0, %s347
      %s350 = sphi 0, %s349
      %s364 = sphi 0, %s350
      %s368 = sphi 0, %s368
      %s370 = sphi 0, %s368
      %s371 = sphi 0, %s370
      %s385 = sphi 0, %s371
      %s391 = sphi 0, %s393
      %s394 = sphi 0, %s391
      %s395 = sphi 0, %s394
      %s411 = sphi 0, %s395
      %s419 = sphi 0, %s421
      %s422 = sphi 0, %s419
      %s423 = sphi 0, %s422
      %s439 = sphi 0, %s423
    $region4: #{tpu_custom_call.1} parent=1 // loop_header_branch
      %32 = sbr.rel (%p30) target = $region8
    $region5: #{tpu_custom_call.1} parent=1 // loop_body
      %s34 = ssub.s32 %s29, 1
      %s35 = ssub.s32 %s29, 2
      %s42 = sadd.s32 1, %s37
      %p43 = scmp.ge.s32.totalorder %s42, 2
      %s44 = scalar_select %p43, 0, %s42
      %s45 = sadd.s32 1, %s36
      %s46 = scalar_select %p43, %s45, %s36
      %p47 = scmp.ge.s32.totalorder %s46, 4
      %s48 = scalar_select %p47, 0, %s46
      %s49 = ssub.s32 %s36, %s48
      %p50 = scmp.eq.s32.totalorder %s49, 0
      %s52 = sadd.s32 %s51, 1
      %s53 = scalar_select %p50, %s51, %s52
      %p56 = pneg %p50
      %p57 = scmp.eq.s32.totalorder %s29, 7
      %p58 = por %p56, %p57
      %p59 = scmp.ne.s32.totalorder %s51, %s54
      %p60 = scmp.eq.s32.totalorder %s29, 0
      %p61 = por %p59, %p60
      %p62 = scmp.ne.s32.totalorder %s51, %s54
      %p63 = scmp.eq.s32.totalorder %s34, 7
      %p64 = por %p62, %p63
      %p65 = scmp.ne.s32.totalorder %s54, %s55
      %p66 = scmp.eq.s32.totalorder %s34, 0
      %p67 = por %p65, %p66
      %p68 = scmp.ne.s32.totalorder %s54, %s55
      %p69 = scmp.eq.s32.totalorder %s35, 7
      %p70 = por %p68, %p69
      %p72 = scmp.ne.s32.totalorder %s55, %s71
      %p73 = scmp.eq.s32.totalorder %s35, 0
      %p74 = por %p72, %p73
      %s76 = sadd.s32 %s75, 1
      %p79 = scmp.eq.s32.totalorder %s29, 7
      %p80 = scmp.ne.s32.totalorder %s75, %s77
      %p81 = scmp.eq.s32.totalorder %s29, 0
      %p82 = por %p80, %p81
      %p83 = scmp.ne.s32.totalorder %s75, %s77
      %p84 = scmp.eq.s32.totalorder %s34, 7
      %p85 = por %p83, %p84
      %p86 = scmp.ne.s32.totalorder %s77, %s78
      %p87 = scmp.eq.s32.totalorder %s34, 0
      %p88 = por %p86, %p87
      %p89 = scmp.ne.s32.totalorder %s77, %s78
      %p90 = scmp.eq.s32.totalorder %s35, 7
      %p91 = por %p89, %p90
      %p93 = scmp.ne.s32.totalorder %s78, %s92
      %p94 = scmp.eq.s32.totalorder %s35, 0
      %p95 = por %p93, %p94
      %s97 = sadd.s32 %s96, 1
      %p100 = scmp.eq.s32.totalorder %s29, 7
      %p101 = scmp.ne.s32.totalorder %s96, %s98
      %p102 = scmp.eq.s32.totalorder %s29, 0
      %p103 = por %p101, %p102
      %p104 = scmp.ne.s32.totalorder %s96, %s98
      %p105 = scmp.eq.s32.totalorder %s34, 7
      %p106 = por %p104, %p105
      %p107 = scmp.ne.s32.totalorder %s98, %s99
      %p108 = scmp.eq.s32.totalorder %s34, 0
      %p109 = por %p107, %p108
      %p110 = scmp.ne.s32.totalorder %s98, %s99
      %p111 = scmp.eq.s32.totalorder %s35, 7
      %p112 = por %p110, %p111
      %p114 = scmp.ne.s32.totalorder %s99, %s113
      %p115 = scmp.eq.s32.totalorder %s35, 0
      %p116 = por %p114, %p115
      %s118 = sadd.s32 %s117, 1
      %p121 = scmp.eq.s32.totalorder %s29, 7
      %p122 = scmp.ne.s32.totalorder %s117, %s119
      %p123 = scmp.eq.s32.totalorder %s29, 0
      %p124 = por %p122, %p123
      %p125 = scmp.ne.s32.totalorder %s117, %s119
      %p126 = scmp.eq.s32.totalorder %s34, 7
      %p127 = por %p125, %p126
      %p128 = scmp.ne.s32.totalorder %s119, %s120
      %p129 = scmp.eq.s32.totalorder %s34, 0
      %p130 = por %p128, %p129
      %p131 = scmp.ne.s32.totalorder %s119, %s120
      %p132 = scmp.eq.s32.totalorder %s35, 7
      %p133 = por %p131, %p132
      %p135 = scmp.ne.s32.totalorder %s120, %s134
      %p136 = scmp.eq.s32.totalorder %s35, 0
      %p137 = por %p135, %p136
      %s138 = ssub.s32 %s37, %s44
      %p139 = scmp.eq.s32.totalorder %s138, 0
      %s141 = sadd.s32 %s140, 1
      %s142 = scalar_select %p139, %s140, %s141
      %p145 = pneg %p139
      %p146 = scmp.eq.s32.totalorder %s29, 7
      %p147 = por %p145, %p146
      %p148 = scmp.ne.s32.totalorder %s140, %s143
      %p149 = scmp.eq.s32.totalorder %s29, 0
      %p150 = por %p148, %p149
      %p151 = scmp.ne.s32.totalorder %s140, %s143
      %p152 = scmp.eq.s32.totalorder %s34, 7
      %p153 = por %p151, %p152
      %p154 = scmp.ne.s32.totalorder %s143, %s144
      %p155 = scmp.eq.s32.totalorder %s34, 0
      %p156 = por %p154, %p155
      %p157 = scmp.ne.s32.totalorder %s143, %s144
      %p158 = scmp.eq.s32.totalorder %s35, 7
      %p159 = por %p157, %p158
      %p161 = scmp.ne.s32.totalorder %s144, %s160
      %p162 = scmp.eq.s32.totalorder %s35, 0
      %p163 = por %p161, %p162
      %s164 = ssub.s32 %s37, %s44
      %p165 = scmp.eq.s32.totalorder %s164, 0
      %s167 = sadd.s32 %s166, 1
      %s168 = scalar_select %p165, %s166, %s167
      %p171 = pneg %p165
      %p172 = scmp.eq.s32.totalorder %s29, 7
      %p173 = por %p171, %p172
      %p174 = scmp.ne.s32.totalorder %s166, %s169
      %p175 = scmp.eq.s32.totalorder %s29, 0
      %p176 = por %p174, %p175
      %p177 = scmp.ne.s32.totalorder %s166, %s169
      %p178 = scmp.eq.s32.totalorder %s34, 7
      %p179 = por %p177, %p178
      %p180 = scmp.ne.s32.totalorder %s169, %s170
      %p181 = scmp.eq.s32.totalorder %s34, 0
      %p182 = por %p180, %p181
      %p183 = scmp.ne.s32.totalorder %s169, %s170
      %p184 = scmp.eq.s32.totalorder %s35, 7
      %p185 = por %p183, %p184
      %p187 = scmp.ne.s32.totalorder %s170, %s186
      %p188 = scmp.eq.s32.totalorder %s35, 0
      %p189 = por %p187, %p188
      %s190 = ssub.s32 %s37, %s44
      %p191 = scmp.eq.s32.totalorder %s190, 0
      %s193 = sadd.s32 %s192, 1
      %s194 = scalar_select %p191, %s192, %s193
      %p197 = pneg %p191
      %p198 = scmp.eq.s32.totalorder %s29, 7
      %p199 = por %p197, %p198
      %p200 = scmp.ne.s32.totalorder %s192, %s195
      %p201 = scmp.eq.s32.totalorder %s29, 0
      %p202 = por %p200, %p201
      %p203 = scmp.ne.s32.totalorder %s192, %s195
      %p204 = scmp.eq.s32.totalorder %s34, 7
      %p205 = por %p203, %p204
      %p206 = scmp.ne.s32.totalorder %s195, %s196
      %p207 = scmp.eq.s32.totalorder %s34, 0
      %p208 = por %p206, %p207
      %p209 = scmp.ne.s32.totalorder %s195, %s196
      %p210 = scmp.eq.s32.totalorder %s35, 7
      %p211 = por %p209, %p210
      %p213 = scmp.ne.s32.totalorder %s196, %s212
      %p214 = scmp.eq.s32.totalorder %s35, 0
      %p215 = por %p213, %p214
      %s216 = ssub.s32 %s37, %s44
      %p217 = scmp.eq.s32.totalorder %s216, 0
      %s219 = sadd.s32 %s218, 1
      %s220 = scalar_select %p217, %s218, %s219
      %p223 = pneg %p217
      %p224 = scmp.eq.s32.totalorder %s29, 7
      %p225 = por %p223, %p224
      %p226 = scmp.ne.s32.totalorder %s218, %s221
      %p227 = scmp.eq.s32.totalorder %s29, 0
      %p228 = por %p226, %p227
      %p229 = scmp.ne.s32.totalorder %s218, %s221
      %p230 = scmp.eq.s32.totalorder %s34, 7
      %p231 = por %p229, %p230
      %p232 = scmp.ne.s32.totalorder %s221, %s222
      %p233 = scmp.eq.s32.totalorder %s34, 0
      %p234 = por %p232, %p233
      %p235 = scmp.ne.s32.totalorder %s221, %s222
      %p236 = scmp.eq.s32.totalorder %s35, 7
      %p237 = por %p235, %p236
      %p239 = scmp.ne.s32.totalorder %s222, %s238
      %p240 = scmp.eq.s32.totalorder %s35, 0
      %p241 = por %p239, %p240
      %s243 = sadd.s32 %s242, 1
      %p246 = scmp.eq.s32.totalorder %s29, 7
      %p247 = scmp.ne.s32.totalorder %s242, %s244
      %p248 = scmp.eq.s32.totalorder %s29, 0
      %p249 = por %p247, %p248
      %p250 = scmp.ne.s32.totalorder %s242, %s244
      %p251 = scmp.eq.s32.totalorder %s34, 7
      %p252 = por %p250, %p251
      %p253 = scmp.ne.s32.totalorder %s244, %s245
      %p254 = scmp.eq.s32.totalorder %s34, 0
      %p255 = por %p253, %p254
      %p256 = scmp.ne.s32.totalorder %s244, %s245
      %p257 = scmp.eq.s32.totalorder %s35, 7
      %p258 = por %p256, %p257
      %p260 = scmp.ne.s32.totalorder %s245, %s259
      %p261 = scmp.eq.s32.totalorder %s35, 0
      %p262 = por %p260, %p261
      %s264 = sadd.s32 %s263, 1
      %p267 = scmp.eq.s32.totalorder %s29, 7
      %p268 = scmp.ne.s32.totalorder %s263, %s265
      %p269 = scmp.eq.s32.totalorder %s29, 0
      %p270 = por %p268, %p269
      %p271 = scmp.ne.s32.totalorder %s263, %s265
      %p272 = scmp.eq.s32.totalorder %s34, 7
      %p273 = por %p271, %p272
      %p274 = scmp.ne.s32.totalorder %s265, %s266
      %p275 = scmp.eq.s32.totalorder %s34, 0
      %p276 = por %p274, %p275
      %p277 = scmp.ne.s32.totalorder %s265, %s266
      %p278 = scmp.eq.s32.totalorder %s35, 7
      %p279 = por %p277, %p278
      %p281 = scmp.ne.s32.totalorder %s266, %s280
      %p282 = scmp.eq.s32.totalorder %s35, 0
      %p283 = por %p281, %p282
      %s285 = sadd.s32 %s284, 1
      %p288 = scmp.eq.s32.totalorder %s29, 7
      %p289 = scmp.ne.s32.totalorder %s284, %s286
      %p290 = scmp.eq.s32.totalorder %s29, 0
      %p291 = por %p289, %p290
      %p292 = scmp.ne.s32.totalorder %s284, %s286
      %p293 = scmp.eq.s32.totalorder %s34, 7
      %p294 = por %p292, %p293
      %p295 = scmp.ne.s32.totalorder %s286, %s287
      %p296 = scmp.eq.s32.totalorder %s34, 0
      %p297 = por %p295, %p296
      %p298 = scmp.ne.s32.totalorder %s286, %s287
      %p299 = scmp.eq.s32.totalorder %s35, 7
      %p300 = por %p298, %p299
      %p302 = scmp.ne.s32.totalorder %s287, %s301
      %p303 = scmp.eq.s32.totalorder %s35, 0
      %p304 = por %p302, %p303
      %s306 = sadd.s32 %s305, 1
      %p309 = scmp.eq.s32.totalorder %s29, 7
      %p310 = scmp.ne.s32.totalorder %s305, %s307
      %p311 = scmp.eq.s32.totalorder %s29, 0
      %p312 = por %p310, %p311
      %p313 = scmp.ne.s32.totalorder %s305, %s307
      %p314 = scmp.eq.s32.totalorder %s34, 7
      %p315 = por %p313, %p314
      %p316 = scmp.ne.s32.totalorder %s307, %s308
      %p317 = scmp.eq.s32.totalorder %s34, 0
      %p318 = por %p316, %p317
      %p319 = scmp.ne.s32.totalorder %s307, %s308
      %p320 = scmp.eq.s32.totalorder %s35, 7
      %p321 = por %p319, %p320
      %p323 = scmp.ne.s32.totalorder %s308, %s322
      %p324 = scmp.eq.s32.totalorder %s35, 0
      %p325 = por %p323, %p324
      %s327 = sadd.s32 %s326, 1
      %p330 = scmp.eq.s32.totalorder %s29, 7
      %p331 = scmp.ne.s32.totalorder %s326, %s328
      %p332 = scmp.eq.s32.totalorder %s29, 0
      %p333 = por %p331, %p332
      %p334 = scmp.ne.s32.totalorder %s326, %s328
      %p335 = scmp.eq.s32.totalorder %s34, 7
      %p336 = por %p334, %p335
      %p337 = scmp.ne.s32.totalorder %s328, %s329
      %p338 = scmp.eq.s32.totalorder %s34, 0
      %p339 = por %p337, %p338
      %p340 = scmp.ne.s32.totalorder %s328, %s329
      %p341 = scmp.eq.s32.totalorder %s35, 7
      %p342 = por %p340, %p341
      %p344 = scmp.ne.s32.totalorder %s329, %s343
      %p345 = scmp.eq.s32.totalorder %s35, 0
      %p346 = por %p344, %p345
      %s348 = sadd.s32 %s347, 1
      %p351 = scmp.eq.s32.totalorder %s29, 7
      %p352 = scmp.ne.s32.totalorder %s347, %s349
      %p353 = scmp.eq.s32.totalorder %s29, 0
      %p354 = por %p352, %p353
      %p355 = scmp.ne.s32.totalorder %s347, %s349
      %p356 = scmp.eq.s32.totalorder %s34, 7
      %p357 = por %p355, %p356
      %p358 = scmp.ne.s32.totalorder %s349, %s350
      %p359 = scmp.eq.s32.totalorder %s34, 0
      %p360 = por %p358, %p359
      %p361 = scmp.ne.s32.totalorder %s349, %s350
      %p362 = scmp.eq.s32.totalorder %s35, 7
      %p363 = por %p361, %p362
      %p365 = scmp.ne.s32.totalorder %s350, %s364
      %p366 = scmp.eq.s32.totalorder %s35, 0
      %p367 = por %p365, %p366
      %s369 = sadd.s32 %s368, 1
      %p372 = scmp.eq.s32.totalorder %s29, 7
      %p373 = scmp.ne.s32.totalorder %s368, %s370
      %p374 = scmp.eq.s32.totalorder %s29, 0
      %p375 = por %p373, %p374
      %p376 = scmp.ne.s32.totalorder %s368, %s370
      %p377 = scmp.eq.s32.totalorder %s34, 7
      %p378 = por %p376, %p377
      %p379 = scmp.ne.s32.totalorder %s370, %s371
      %p380 = scmp.eq.s32.totalorder %s34, 0
      %p381 = por %p379, %p380
      %p382 = scmp.ne.s32.totalorder %s370, %s371
      %p383 = scmp.eq.s32.totalorder %s35, 7
      %p384 = por %p382, %p383
      %p386 = scmp.ne.s32.totalorder %s371, %s385
      %p387 = scmp.eq.s32.totalorder %s35, 0
      %p388 = por %p386, %p387
      %s389 = ssub.s32 %s36, %s48
      %p390 = scmp.eq.s32.totalorder %s389, 0
      %s392 = sadd.s32 %s391, 1
      %s393 = scalar_select %p390, %s391, %s392
      %p396 = pneg %p390
      %p397 = scmp.eq.s32.totalorder %s29, 7
      %p398 = por %p396, %p397
      %p399 = scmp.ne.s32.totalorder %s391, %s394
      %p400 = scmp.eq.s32.totalorder %s29, 0
      %p401 = por %p399, %p400
      %p402 = scmp.ne.s32.totalorder %s391, %s394
      %p403 = scmp.eq.s32.totalorder %s34, 7
      %p404 = por %p402, %p403
      %p405 = scmp.ne.s32.totalorder %s394, %s395
      %p406 = scmp.eq.s32.totalorder %s34, 0
      %p407 = por %p405, %p406
      %p408 = scmp.ne.s32.totalorder %s394, %s395
      %p409 = scmp.eq.s32.totalorder %s35, 7
      %p410 = por %p408, %p409
      %p412 = scmp.ne.s32.totalorder %s395, %s411
      %p413 = scmp.eq.s32.totalorder %s35, 0
      %p414 = por %p412, %p413
      %s415 = ssub.s32 %s36, %s48
      %s416 = ssub.s32 %s37, %s44
      %s417 = sor.u32 %s415, %s416
      %p418 = scmp.eq.s32.totalorder %s417, 0
      %s420 = sadd.s32 %s419, 1
      %s421 = scalar_select %p418, %s419, %s420
      %p424 = pneg %p418
      %p425 = scmp.eq.s32.totalorder %s29, 7
      %p426 = por %p424, %p425
      %p427 = scmp.ne.s32.totalorder %s419, %s422
      %p428 = scmp.eq.s32.totalorder %s29, 0
      %p429 = por %p427, %p428
      %p430 = scmp.ne.s32.totalorder %s419, %s422
      %p431 = scmp.eq.s32.totalorder %s34, 7
      %p432 = por %p430, %p431
      %p433 = scmp.ne.s32.totalorder %s422, %s423
      %p434 = scmp.eq.s32.totalorder %s34, 0
      %p435 = por %p433, %p434
      %p436 = scmp.ne.s32.totalorder %s422, %s423
      %p437 = scmp.eq.s32.totalorder %s35, 7
      %p438 = por %p436, %p437
      %p440 = scmp.ne.s32.totalorder %s423, %s439
      %p441 = scmp.eq.s32.totalorder %s35, 0
      %p442 = por %p440, %p441
      %p443 = scmp.le.s32.totalorder 1, %s29
      %p444 = scmp.lt.s32.totalorder %s29, 9
      %p445 = pnand %p443, %p444
      %p446 = pneg %p445
      // Predicated region
      $region9: #{tpu_custom_call.1} parent=5 // pred_check
        _
      $region10: #{tpu_custom_call.1} parent=5 // pred_check_branch
        %448 = sbr.rel (%p445) target = $region12
      $region11: #{tpu_custom_call.1} parent=5 // pred_region
        %s449 = ssub.s32 %s29, 1
        // Predicated region
        $region13: #{tpu_custom_call.1} parent=11 // pred_check
          %p450 = pneg %p88
        $region14: #{tpu_custom_call.1} parent=11 // pred_check_branch
          %452 = sbr.rel (%p450) target = $region16
        $region15: #{tpu_custom_call.1} parent=11 // pred_region
          _
        $region16: #{tpu_custom_call.1} parent=11 // pred_fallthru
          _
        // Predicated region
        $region17: #{tpu_custom_call.1} parent=11 // pred_check
          %p453 = pneg %p109
        $region18: #{tpu_custom_call.1} parent=11 // pred_check_branch
          %455 = sbr.rel (%p453) target = $region20
        $region19: #{tpu_custom_call.1} parent=11 // pred_region
          _
        $region20: #{tpu_custom_call.1} parent=11 // pred_fallthru
          _
        // Predicated region
        $region21: #{tpu_custom_call.1} parent=11 // pred_check
          %p456 = pneg %p130
        $region22: #{tpu_custom_call.1} parent=11 // pred_check_branch
          %458 = sbr.rel (%p456) target = $region24
        $region23: #{tpu_custom_call.1} parent=11 // pred_region
          _
        $region24: #{tpu_custom_call.1} parent=11 // pred_fallthru
          _
        // Predicated region
        $region25: #{tpu_custom_call.1} parent=11 // pred_check
          %p459 = pneg %p255
        $region26: #{tpu_custom_call.1} parent=11 // pred_check_branch
          %461 = sbr.rel (%p459) target = $region28
        $region27: #{tpu_custom_call.1} parent=11 // pred_region
          _
        $region28: #{tpu_custom_call.1} parent=11 // pred_fallthru
          _
        // Predicated region
        $region29: #{tpu_custom_call.1} parent=11 // pred_check
          %p462 = pneg %p276
        $region30: #{tpu_custom_call.1} parent=11 // pred_check_branch
          %464 = sbr.rel (%p462) target = $region32
        $region31: #{tpu_custom_call.1} parent=11 // pred_region
          _
        $region32: #{tpu_custom_call.1} parent=11 // pred_fallthru
          _
        // Predicated region
        $region33: #{tpu_custom_call.1} parent=11 // pred_check
          %p465 = pneg %p297
        $region34: #{tpu_custom_call.1} parent=11 // pred_check_branch
          %467 = sbr.rel (%p465) target = $region36
        $region35: #{tpu_custom_call.1} parent=11 // pred_region
          _
        $region36: #{tpu_custom_call.1} parent=11 // pred_fallthru
          _
        // Predicated region
        $region37: #{tpu_custom_call.1} parent=11 // pred_check
          %p468 = pneg %p318
        $region38: #{tpu_custom_call.1} parent=11 // pred_check_branch
          %470 = sbr.rel (%p468) target = $region40
        $region39: #{tpu_custom_call.1} parent=11 // pred_region
          _
        $region40: #{tpu_custom_call.1} parent=11 // pred_fallthru
          _
        // Predicated region
        $region41: #{tpu_custom_call.1} parent=11 // pred_check
          %p471 = pneg %p339
        $region42: #{tpu_custom_call.1} parent=11 // pred_check_branch
          %473 = sbr.rel (%p471) target = $region44
        $region43: #{tpu_custom_call.1} parent=11 // pred_region
          _
        $region44: #{tpu_custom_call.1} parent=11 // pred_fallthru
          _
        // Predicated region
        $region45: #{tpu_custom_call.1} parent=11 // pred_check
          %p474 = pneg %p360
        $region46: #{tpu_custom_call.1} parent=11 // pred_check_branch
          %476 = sbr.rel (%p474) target = $region48
        $region47: #{tpu_custom_call.1} parent=11 // pred_region
          _
        $region48: #{tpu_custom_call.1} parent=11 // pred_fallthru
          _
        // Predicated region
        $region49: #{tpu_custom_call.1} parent=11 // pred_check
          %p477 = pneg %p381
        $region50: #{tpu_custom_call.1} parent=11 // pred_check_branch
          %479 = sbr.rel (%p477) target = $region52
        $region51: #{tpu_custom_call.1} parent=11 // pred_region
          _
        $region52: #{tpu_custom_call.1} parent=11 // pred_fallthru
          _
      $region12: #{tpu_custom_call.1} parent=5 // pred_fallthru
        _
      %p480 = scmp.lt.s32.totalorder %s29, 8
      // Predicated region
      $region53: #{tpu_custom_call.1} parent=5 // pred_check
        %p481 = pneg %p480
      $region54: #{tpu_custom_call.1} parent=5 // pred_check_branch
        %483 = sbr.rel (%p481) target = $region56
      $region55: #{tpu_custom_call.1} parent=5 // pred_region
        // Predicated region
        $region57: #{tpu_custom_call.1} parent=55 // pred_check
          %p484 = pneg %p61
        $region58: #{tpu_custom_call.1} parent=55 // pred_check_branch
          %486 = sbr.rel (%p484) target = $region60
        $region59: #{tpu_custom_call.1} parent=55 // pred_region
          %p487 = scmp.lt.s32.totalorder %s36, 3
          %s488 = scalar_select %p487, %s36, 3
          %s489 = smul.addr %s488, 8
          %s490 = scalar_lea.vmem %s0, %s489
        $region60: #{tpu_custom_call.1} parent=55 // pred_fallthru
          _
        // Predicated region
        $region61: #{tpu_custom_call.1} parent=55 // pred_check
          %p491 = pneg %p150
        $region62: #{tpu_custom_call.1} parent=55 // pred_check_branch
          %493 = sbr.rel (%p491) target = $region64
        $region63: #{tpu_custom_call.1} parent=55 // pred_region
          %p494 = scmp.lt.s32.totalorder %s37, 1
          %s495 = scalar_select %p494, %s37, 1
          %s496 = smul.addr %s495, 4
          %s497 = smul.addr %s496, 4
          %s498 = scalar_lea.vmem %s4, %s497
        $region64: #{tpu_custom_call.1} parent=55 // pred_fallthru
          _
        // Predicated region
        $region65: #{tpu_custom_call.1} parent=55 // pred_check
          %p499 = pneg %p176
        $region66: #{tpu_custom_call.1} parent=55 // pred_check_branch
          %501 = sbr.rel (%p499) target = $region68
        $region67: #{tpu_custom_call.1} parent=55 // pred_region
          %p502 = scmp.lt.s32.totalorder %s37, 1
          %s503 = scalar_select %p502, %s37, 1
          %s504 = smul.addr %s503, 4
          %s505 = smul.addr %s504, 4
          %s506 = scalar_lea.vmem %s5, %s505
        $region68: #{tpu_custom_call.1} parent=55 // pred_fallthru
          _
        // Predicated region
        $region69: #{tpu_custom_call.1} parent=55 // pred_check
          %p507 = pneg %p202
        $region70: #{tpu_custom_call.1} parent=55 // pred_check_branch
          %509 = sbr.rel (%p507) target = $region72
        $region71: #{tpu_custom_call.1} parent=55 // pred_region
          %p510 = scmp.lt.s32.totalorder %s37, 1
          %s511 = scalar_select %p510, %s37, 1
          %s512 = smul.addr %s511, 4
          %s513 = smul.addr %s512, 4
          %s514 = scalar_lea.vmem %s6, %s513
        $region72: #{tpu_custom_call.1} parent=55 // pred_fallthru
          _
        // Predicated region
        $region73: #{tpu_custom_call.1} parent=55 // pred_check
          %p515 = pneg %p228
        $region74: #{tpu_custom_call.1} parent=55 // pred_check_branch
          %517 = sbr.rel (%p515) target = $region76
        $region75: #{tpu_custom_call.1} parent=55 // pred_region
          %p518 = scmp.lt.s32.totalorder %s37, 1
          %s519 = scalar_select %p518, %s37, 1
          %s520 = smul.addr %s519, 2
          %s521 = smul.addr %s520, 4
          %s522 = scalar_lea.vmem %s7, %s521
        $region76: #{tpu_custom_call.1} parent=55 // pred_fallthru
          _
      $region56: #{tpu_custom_call.1} parent=5 // pred_fallthru
        _
      %p523 = scmp.le.s32.totalorder 1, %s29
      %p524 = scmp.lt.s32.totalorder %s29, 9
      %p525 = pnand %p523, %p524
      %p526 = pneg %p525
      // Predicated region
      $region77: #{tpu_custom_call.1} parent=5 // pred_check
        _
      $region78: #{tpu_custom_call.1} parent=5 // pred_check_branch
        %528 = sbr.rel (%p525) target = $region80
      $region79: #{tpu_custom_call.1} parent=5 // pred_region
        %s529 = ssub.s32 %s29, 1
        %p530 = scmp.lt.s32.totalorder %s38, 3
        %s531 = scalar_select %p530, %s38, 3
        %s532 = smul.addr %s531, 8
        %s533 = scalar_lea.vmem %s0, %s532
        %p534 = pneg %p67
        %p535 = pneg %p64
        %p536 = pneg %p88
        %p537 = pneg %p85
        %p538 = pneg %p109
        %p539 = pneg %p106
        %p540 = pneg %p130
        %p541 = pneg %p127
        %p542 = scmp.lt.s32.totalorder %s39, 1
        %s543 = scalar_select %p542, %s39, 1
        %s544 = smul.addr %s543, 4
        %s545 = smul.addr %s544, 4
        %s546 = scalar_lea.vmem %s4, %s545
        %p547 = pneg %p156
        %p548 = pneg %p153
        %p549 = scmp.lt.s32.totalorder %s39, 1
        %s550 = scalar_select %p549, %s39, 1
        %s551 = smul.addr %s550, 4
        %s552 = smul.addr %s551, 4
        %s553 = scalar_lea.vmem %s5, %s552
        %p554 = pneg %p182
        %p555 = pneg %p179
        %p556 = scmp.lt.s32.totalorder %s39, 1
        %s557 = scalar_select %p556, %s39, 1
        %s558 = smul.addr %s557, 4
        %s559 = smul.addr %s558, 4
        %s560 = scalar_lea.vmem %s6, %s559
        %p561 = pneg %p208
        %p562 = pneg %p205
        %p563 = scmp.lt.s32.totalorder %s39, 1
        %s564 = scalar_select %p563, %s39, 1
        %s565 = smul.addr %s564, 2
        %s566 = smul.addr %s565, 4
        %s567 = scalar_lea.vmem %s7, %s566
        %p568 = pneg %p234
        %p569 = pneg %p231
        %p570 = pneg %p255
        %p571 = pneg %p252
        %p572 = pneg %p276
        %p573 = pneg %p273
        %p574 = pneg %p297
        %p575 = pneg %p294
        %p576 = pneg %p318
        %p577 = pneg %p315
        %p578 = pneg %p339
        %p579 = pneg %p336
        %p580 = pneg %p360
        %p581 = pneg %p357
        %p582 = pneg %p381
        %p583 = pneg %p378
        %p584 = pneg %p407
        %p585 = pneg %p404
        %s586 = sand.u32 %s394, 1
        %s587 = scalar_lea.sflag [#allocation5], %s586
        %s588 = sand.u32 %s394, 1
        %s589 = smul.addr %s588, 8
        %s590 = scalar_lea.vmem [#allocation4], %s589
        %p591 = pneg %p435
        %p592 = pneg %p432
        %s593 = sand.u32 %s422, 1
        %s594 = scalar_lea.sflag [#allocation7], %s593
        %s595 = sand.u32 %s422, 1
        %s596 = smul.addr %s595, 16
        %s597 = scalar_lea.vmem [#allocation6], %s596
        %p598 = scmp.lt.s32.totalorder %s38, 3
        %s599 = scalar_select %p598, %s38, 3
        %s600 = smul.addr %s599, 8
        %s601 = scalar_lea.vmem %s0, %s600
        %p602 = scmp.lt.s32.totalorder %s39, 1
        %s603 = scalar_select %p602, %s39, 1
        %s604 = smul.addr %s603, 4
        %s605 = smul.addr %s604, 4
        %s606 = scalar_lea.vmem %s4, %s605
        %p607 = scmp.lt.s32.totalorder %s39, 1
        %s608 = scalar_select %p607, %s39, 1
        %s609 = smul.addr %s608, 4
        %s610 = smul.addr %s609, 4
        %s611 = scalar_lea.vmem %s5, %s610
        %p612 = scmp.lt.s32.totalorder %s39, 1
        %s613 = scalar_select %p612, %s39, 1
        %s614 = smul.addr %s613, 4
        %s615 = smul.addr %s614, 4
        %s616 = scalar_lea.vmem %s6, %s615
        %p617 = scmp.lt.s32.totalorder %s39, 1
        %s618 = scalar_select %p617, %s39, 1
        %s619 = smul.addr %s618, 2
        %s620 = smul.addr %s619, 4
        %s621 = scalar_lea.vmem %s7, %s620
        %s622 = smul.u32 2, %s39
        %p624 = scmp.eq.s32.totalorder %s39, 0
        // Predicated region
        $region81: #{tpu_custom_call.1} parent=79 // pred_check
          %p625 = pneg %p624
        $region82: #{tpu_custom_call.1} parent=79 // pred_check_branch
          %627 = sbr.rel (%p625) target = $region84
        $region83: #{tpu_custom_call.1} parent=79 // pred_region
          %v628 = vld [vmem:[%s601] sm:$0xff]
          %v629 = vld [vmem:[%s2] sm:$0x1]
          %v630 = vld [vmem:[%s3] sm:$0x1]
          %vm631 = vcmask 261120
          %v632 = vsel %vm631, %v628, 0.0
          %633 = vadd.xlane.f32.xlu0 %v632
          %v634 = vpop.xlane.xlu0 %633
          %v635 = vrcp.pop 32.0
          %v636 = vmul.f32 %v634, %v635
          %v637 = vsub.f32 %v628, %v636
          %v638 = vmul.f32 %v637, %v637
          %v639 = vsel %vm631, %v638, 0.0
          %640 = vadd.xlane.f32.xlu0 %v639
          %v641 = vpop.xlane.xlu0 %640
          %v642 = vmul.f32 %v641, %v635
          %v643 = vadd.f32 %v642, 1e-05
          %v644 = vrsqrt.pop %v643
          %v645 = vmul.f32 %v637, %v644
          %v647 = vlaneseq
          %v648 = vshrl.u32 %v647, 7
          %v649 = vsub.s32 0, %v648
          %v650 = vrot.slane %v629, %v649
          %v652 = vmul.f32 %v645, %v650
          %v654 = vlaneseq
          %v655 = vshrl.u32 %v654, 7
          %v656 = vsub.s32 0, %v655
          %v657 = vrot.slane %v630, %v656
          %v659 = vadd.f32 %v652, %v657
          %v660 = vpack.c.bf16 %v659, %v659
          %vm661 = vcmask 257024
          %662 = vst.msk [vmem:[#allocation2] sm:$0xf] %vm661, %v660
          %v663 = vld [vmem:[%s8] sm:$0x1]
          %v665 = vlaneseq
          %v666 = vshrl.u32 %v665, 7
          %v667 = vsub.s32 0, %v666
          %v668 = vrot.slane %v663, %v667
          %v670 = vadd.f32 %v668, 0.0
          %671 = vst.msk [vmem:[#allocation3] sm:$0xff] %vm631, %v670
        $region84: #{tpu_custom_call.1} parent=79 // pred_fallthru
          _
        %v672 = vld [vmem:[#allocation2] sm:$0xf]
        %v673 = vld [vmem:[%s606] sm:$0xf]
        %v674 = vld [vmem:[%s606 + $0x4] sm:$0xf]
        %v675 = vld [vmem:[%s606 + $0x8] sm:$0xf]
        %v676 = vld [vmem:[%s606 + $0xc] sm:$0xf]
        %v681 = vunpack.c.l.b16 %v673
        %v682 = vunpack.c.l.b16 %v674
        %v683 = vunpack.c.l.b16 %v675
        %v684 = vunpack.c.l.b16 %v676
        %v685 = vpack.c.b16 %v682, %v681
        %v686 = vpack.c.b16 %v684, %v683
        %vm689 = vcmask 261120
        %v691 = vsel %vm689, %v672, 0
        %693 = vmatprep.subr.bf16.mxu0 0
        %694 = vmatpush1.bf16.msra.mxu0 0
        %695 = vmatprep.subr.bf16.mxu0 0
        %696 = vmatpush1.bf16.msra.mxu0 0
        %697 = vmatprep.subr.bf16.mxu0 0
        %698 = vmatpush1.bf16.msra.mxu0 0
        %699 = vmatprep.subr.bf16.mxu0 0
        %700 = vmatpush1.bf16.msra.mxu0 0
        %701 = vmatprep.subr.bf16.mxu0 0
        %702 = vmatpush1.bf16.msra.mxu0 0
        %703 = vmatprep.subr.bf16.mxu0 0
        %704 = vmatpush1.bf16.msra.mxu0 0
        %705 = vmatprep.subr.bf16.mxu0 0
        %706 = vmatpush1.bf16.msra.mxu0 %v686
        %707 = vmatprep.subr.bf16.mxu0 0
        %708 = vmatpush1.bf16.msra.mxu0 %v685
        %709 = vmatprep.subr.bf16.mxu0 0
        %710 = vmatpush2.bf16.msra.mxu0 0
        %711 = vmatprep.subr.bf16.mxu0 0
        %712 = vmatpush2.bf16.msra.mxu0 0
        %713 = vmatprep.subr.bf16.mxu0 0
        %714 = vmatpush2.bf16.msra.mxu0 0
        %715 = vmatprep.subr.bf16.mxu0 0
        %716 = vmatpush2.bf16.msra.mxu0 0
        %717 = vmatprep.subr.bf16.mxu0 0
        %718 = vmatpush2.bf16.msra.mxu0 0
        %719 = vmatprep.subr.bf16.mxu0 0
        %720 = vmatpush2.bf16.msra.mxu0 0
        %721 = vmatprep.subr.bf16.mxu0 0
        %722 = vmatpush2.bf16.msra.mxu0 0
        %723 = vmatprep.subr.bf16.mxu0 0
        %724 = vmatpush2.bf16.msra.mxu0 0
        %725 = vmatprep.mubr.bf16.mxu0 0
        %726 = vmatmul.mubr.bf16.gmra.mxu0 %v691
        %v727 = vpop.f32.mrf.mxu0
        %v728 = vadd.f32 0.0, %v727
        %v729 = vpop.f32.mrf.mxu0
        %v730 = vpop.f32.mrf.mxu0
        %v731 = vpop.f32.mrf.mxu0
        %732 = vdwg.mxu0
        %v733 = vpack.c.bf16 %v728, %v728
        %v734 = vld [vmem:[%s611] sm:$0xf]
        %v735 = vld [vmem:[%s611 + $0x4] sm:$0xf]
        %v736 = vld [vmem:[%s611 + $0x8] sm:$0xf]
        %v737 = vld [vmem:[%s611 + $0xc] sm:$0xf]
        %v742 = vunpack.c.l.b16 %v734
        %v743 = vunpack.c.l.b16 %v735
        %v744 = vunpack.c.l.b16 %v736
        %v745 = vunpack.c.l.b16 %v737
        %v746 = vpack.c.b16 %v743, %v742
        %v747 = vpack.c.b16 %v745, %v744
        %750 = vmatprep.subr.bf16.mxu0 0
        %751 = vmatpush1.bf16.msra.mxu0 0
        %752 = vmatprep.subr.bf16.mxu0 0
        %753 = vmatpush1.bf16.msra.mxu0 0
        %754 = vmatprep.subr.bf16.mxu0 0
        %755 = vmatpush1.bf16.msra.mxu0 0
        %756 = vmatprep.subr.bf16.mxu0 0
        %757 = vmatpush1.bf16.msra.mxu0 0
        %758 = vmatprep.subr.bf16.mxu0 0
        %759 = vmatpush1.bf16.msra.mxu0 0
        %760 = vmatprep.subr.bf16.mxu0 0
        %761 = vmatpush1.bf16.msra.mxu0 0
        %762 = vmatprep.subr.bf16.mxu0 0
        %763 = vmatpush1.bf16.msra.mxu0 %v747
        %764 = vmatprep.subr.bf16.mxu0 0
        %765 = vmatpush1.bf16.msra.mxu0 %v746
        %766 = vmatprep.subr.bf16.mxu0 0
        %767 = vmatpush2.bf16.msra.mxu0 0
        %768 = vmatprep.subr.bf16.mxu0 0
        %769 = vmatpush2.bf16.msra.mxu0 0
        %770 = vmatprep.subr.bf16.mxu0 0
        %771 = vmatpush2.bf16.msra.mxu0 0
        %772 = vmatprep.subr.bf16.mxu0 0
        %773 = vmatpush2.bf16.msra.mxu0 0
        %774 = vmatprep.subr.bf16.mxu0 0
        %775 = vmatpush2.bf16.msra.mxu0 0
        %776 = vmatprep.subr.bf16.mxu0 0
        %777 = vmatpush2.bf16.msra.mxu0 0
        %778 = vmatprep.subr.bf16.mxu0 0
        %779 = vmatpush2.bf16.msra.mxu0 0
        %780 = vmatprep.subr.bf16.mxu0 0
        %781 = vmatpush2.bf16.msra.mxu0 0
        %782 = vmatprep.mubr.bf16.mxu0 0
        %783 = vmatmul.mubr.bf16.gmra.mxu0 %v691
        %v784 = vpop.f32.mrf.mxu0
        %v785 = vadd.f32 0.0, %v784
        %v786 = vpop.f32.mrf.mxu0
        %v787 = vpop.f32.mrf.mxu0
        %v788 = vpop.f32.mrf.mxu0
        %789 = vdwg.mxu0
        %v790 = vpack.c.bf16 %v785, %v785
        %v791 = vld [vmem:[%s616] sm:$0xf]
        %v792 = vld [vmem:[%s616 + $0x4] sm:$0xf]
        %v793 = vld [vmem:[%s616 + $0x8] sm:$0xf]
        %v794 = vld [vmem:[%s616 + $0xc] sm:$0xf]
        %v799 = vunpack.c.l.b16 %v791
        %v800 = vunpack.c.l.b16 %v792
        %v801 = vunpack.c.l.b16 %v793
        %v802 = vunpack.c.l.b16 %v794
        %v803 = vpack.c.b16 %v800, %v799
        %v804 = vpack.c.b16 %v802, %v801
        %807 = vmatprep.subr.bf16.mxu0 0
        %808 = vmatpush1.bf16.msra.mxu0 0
        %809 = vmatprep.subr.bf16.mxu0 0
        %810 = vmatpush1.bf16.msra.mxu0 0
        %811 = vmatprep.subr.bf16.mxu0 0
        %812 = vmatpush1.bf16.msra.mxu0 0
        %813 = vmatprep.subr.bf16.mxu0 0
        %814 = vmatpush1.bf16.msra.mxu0 0
        %815 = vmatprep.subr.bf16.mxu0 0
        %816 = vmatpush1.bf16.msra.mxu0 0
        %817 = vmatprep.subr.bf16.mxu0 0
        %818 = vmatpush1.bf16.msra.mxu0 0
        %819 = vmatprep.subr.bf16.mxu0 0
        %820 = vmatpush1.bf16.msra.mxu0 %v804
        %821 = vmatprep.subr.bf16.mxu0 0
        %822 = vmatpush1.bf16.msra.mxu0 %v803
        %823 = vmatprep.subr.bf16.mxu0 0
        %824 = vmatpush2.bf16.msra.mxu0 0
        %825 = vmatprep.subr.bf16.mxu0 0
        %826 = vmatpush2.bf16.msra.mxu0 0
        %827 = vmatprep.subr.bf16.mxu0 0
        %828 = vmatpush2.bf16.msra.mxu0 0
        %829 = vmatprep.subr.bf16.mxu0 0
        %830 = vmatpush2.bf16.msra.mxu0 0
        %831 = vmatprep.subr.bf16.mxu0 0
        %832 = vmatpush2.bf16.msra.mxu0 0
        %833 = vmatprep.subr.bf16.mxu0 0
        %834 = vmatpush2.bf16.msra.mxu0 0
        %835 = vmatprep.subr.bf16.mxu0 0
        %836 = vmatpush2.bf16.msra.mxu0 0
        %837 = vmatprep.subr.bf16.mxu0 0
        %838 = vmatpush2.bf16.msra.mxu0 0
        %839 = vmatprep.mubr.bf16.mxu0 0
        %840 = vmatmul.mubr.bf16.gmra.mxu0 %v691
        %v841 = vpop.f32.mrf.mxu0
        %v842 = vadd.f32 0.0, %v841
        %v843 = vpop.f32.mrf.mxu0
        %v844 = vpop.f32.mrf.mxu0
        %v845 = vpop.f32.mrf.mxu0
        %846 = vdwg.mxu0
        %v847 = vpack.c.bf16 %v842, %v842
        %vm848 = vcmask 64512
        %v850 = vsel %vm848, %v733, 0
        %v853 = vsel %vm848, %v790, 0
        %855 = vmatprep.subr.bf16.mxu0 0
        %856 = vmatpush1.bf16.xpose.msra.mxu0 0
        %857 = vmatprep.subr.bf16.mxu0 0
        %858 = vmatpush1.bf16.xpose.msra.mxu0 0
        %859 = vmatprep.subr.bf16.mxu0 0
        %860 = vmatpush1.bf16.xpose.msra.mxu0 0
        %861 = vmatprep.subr.bf16.mxu0 0
        %862 = vmatpush1.bf16.xpose.msra.mxu0 0
        %863 = vmatprep.subr.bf16.mxu0 0
        %864 = vmatpush1.bf16.xpose.msra.mxu0 0
        %865 = vmatprep.subr.bf16.mxu0 0
        %866 = vmatpush1.bf16.xpose.msra.mxu0 0
        %867 = vmatprep.subr.bf16.mxu0 0
        %868 = vmatpush1.bf16.xpose.msra.mxu0 0
        %869 = vmatprep.subr.bf16.mxu0 0
        %870 = vmatpush1.bf16.xpose.msra.mxu0 %v853
        %871 = vmatprep.subr.bf16.mxu0 0
        %872 = vmatpush2.bf16.xpose.msra.mxu0 0
        %873 = vmatprep.subr.bf16.mxu0 0
        %874 = vmatpush2.bf16.xpose.msra.mxu0 0
        %875 = vmatprep.subr.bf16.mxu0 0
        %876 = vmatpush2.bf16.xpose.msra.mxu0 0
        %877 = vmatprep.subr.bf16.mxu0 0
        %878 = vmatpush2.bf16.xpose.msra.mxu0 0
        %879 = vmatprep.subr.bf16.mxu0 0
        %880 = vmatpush2.bf16.xpose.msra.mxu0 0
        %881 = vmatprep.subr.bf16.mxu0 0
        %882 = vmatpush2.bf16.xpose.msra.mxu0 0
        %883 = vmatprep.subr.bf16.mxu0 0
        %884 = vmatpush2.bf16.xpose.msra.mxu0 0
        %885 = vmatprep.subr.bf16.mxu0 0
        %886 = vmatpush2.bf16.xpose.msra.mxu0 0
        %887 = vmatprep.mubr.bf16.mxu0 0
        %888 = vmatmul.mubr.bf16.gmra.mxu0 %v850
        %v889 = vpop.f32.mrf.mxu0
        %v890 = vadd.f32 0.0, %v889
        %v891 = vpop.f32.mrf.mxu0
        %v892 = vpop.f32.mrf.mxu0
        %v893 = vpop.f32.mrf.mxu0
        %894 = vdwg.mxu0
        %v895 = vsel %vm848, %v890, -inf
        %896 = vmax.xlane.f32.xlu0 %v895
        %v897 = vpop.xlane.xlu0 %896
        %v898 = vsub.f32 %v890, %v897
        %v899 = vmul.f32 %v898, 1.442695
        %v900 = vpow.pop %v899
        %v901 = vsel %vm848, %v900, 0.0
        %902 = vadd.xlane.f32.xlu0 %v901
        %v903 = vpop.xlane.xlu0 %902
        %v904 = vrcp.pop %v903
        %v905 = vmul.f32 1.0, %v904
        %v906 = vmul.f32 %v900, %v905
        %907 = vst.msk [vmem:[%s597] sm:$0xff] %vm848, %v906
        %v908 = vpack.c.bf16 %v906, %v906
        %v910 = vsel %vm848, %v908, 0
        %vm912 = vcmask 1043456
        %v914 = vsel %vm912, %v847, 0
        %916 = vmatprep.subr.bf16.mxu0 0
        %917 = vmatpush1.bf16.msra.mxu0 0
        %918 = vmatprep.subr.bf16.mxu0 0
        %919 = vmatpush1.bf16.msra.mxu0 0
        %920 = vmatprep.subr.bf16.mxu0 0
        %921 = vmatpush1.bf16.msra.mxu0 0
        %922 = vmatprep.subr.bf16.mxu0 0
        %923 = vmatpush1.bf16.msra.mxu0 0
        %924 = vmatprep.subr.bf16.mxu0 0
        %925 = vmatpush1.bf16.msra.mxu0 0
        %926 = vmatprep.subr.bf16.mxu0 0
        %927 = vmatpush1.bf16.msra.mxu0 0
        %928 = vmatprep.subr.bf16.mxu0 0
        %929 = vmatpush1.bf16.msra.mxu0 0
        %930 = vmatprep.subr.bf16.mxu0 0
        %931 = vmatpush1.bf16.msra.mxu0 %v914
        %932 = vmatprep.subr.bf16.mxu0 0
        %933 = vmatpush2.bf16.msra.mxu0 0
        %934 = vmatprep.subr.bf16.mxu0 0
        %935 = vmatpush2.bf16.msra.mxu0 0
        %936 = vmatprep.subr.bf16.mxu0 0
        %937 = vmatpush2.bf16.msra.mxu0 0
        %938 = vmatprep.subr.bf16.mxu0 0
        %939 = vmatpush2.bf16.msra.mxu0 0
        %940 = vmatprep.subr.bf16.mxu0 0
        %941 = vmatpush2.bf16.msra.mxu0 0
        %942 = vmatprep.subr.bf16.mxu0 0
        %943 = vmatpush2.bf16.msra.mxu0 0
        %944 = vmatprep.subr.bf16.mxu0 0
        %945 = vmatpush2.bf16.msra.mxu0 0
        %946 = vmatprep.subr.bf16.mxu0 0
        %947 = vmatpush2.bf16.msra.mxu0 0
        %948 = vmatprep.mubr.bf16.mxu0 0
        %949 = vmatmul.mubr.bf16.gmra.mxu0 %v910
        %v950 = vpop.f32.mrf.mxu0
        %v951 = vadd.f32 0.0, %v950
        %v952 = vpop.f32.mrf.mxu0
        %v953 = vpop.f32.mrf.mxu0
        %v954 = vpop.f32.mrf.mxu0
        %955 = vdwg.mxu0
        %v956 = vpack.c.bf16 %v951, %v951
        %958 = vrot.lane.b32.xlu0 %v733, 120
        %v959 = vpop.permute.xlu0 %958
        %961 = vrot.lane.b32.xlu0 %v790, 120
        %v962 = vpop.permute.xlu0 %961
        %v964 = vsel %vm848, %v959, 0
        %v967 = vsel %vm848, %v962, 0
        %969 = vmatprep.subr.bf16.mxu0 0
        %970 = vmatpush1.bf16.xpose.msra.mxu0 0
        %971 = vmatprep.subr.bf16.mxu0 0
        %972 = vmatpush1.bf16.xpose.msra.mxu0 0
        %973 = vmatprep.subr.bf16.mxu0 0
        %974 = vmatpush1.bf16.xpose.msra.mxu0 0
        %975 = vmatprep.subr.bf16.mxu0 0
        %976 = vmatpush1.bf16.xpose.msra.mxu0 0
        %977 = vmatprep.subr.bf16.mxu0 0
        %978 = vmatpush1.bf16.xpose.msra.mxu0 0
        %979 = vmatprep.subr.bf16.mxu0 0
        %980 = vmatpush1.bf16.xpose.msra.mxu0 0
        %981 = vmatprep.subr.bf16.mxu0 0
        %982 = vmatpush1.bf16.xpose.msra.mxu0 0
        %983 = vmatprep.subr.bf16.mxu0 0
        %984 = vmatpush1.bf16.xpose.msra.mxu0 %v967
        %985 = vmatprep.subr.bf16.mxu0 0
        %986 = vmatpush2.bf16.xpose.msra.mxu0 0
        %987 = vmatprep.subr.bf16.mxu0 0
        %988 = vmatpush2.bf16.xpose.msra.mxu0 0
        %989 = vmatprep.subr.bf16.mxu0 0
        %990 = vmatpush2.bf16.xpose.msra.mxu0 0
        %991 = vmatprep.subr.bf16.mxu0 0
        %992 = vmatpush2.bf16.xpose.msra.mxu0 0
        %993 = vmatprep.subr.bf16.mxu0 0
        %994 = vmatpush2.bf16.xpose.msra.mxu0 0
        %995 = vmatprep.subr.bf16.mxu0 0
        %996 = vmatpush2.bf16.xpose.msra.mxu0 0
        %997 = vmatprep.subr.bf16.mxu0 0
        %998 = vmatpush2.bf16.xpose.msra.mxu0 0
        %999 = vmatprep.subr.bf16.mxu0 0
        %1000 = vmatpush2.bf16.xpose.msra.mxu0 0
        %1001 = vmatprep.mubr.bf16.mxu0 0
        %1002 = vmatmul.mubr.bf16.gmra.mxu0 %v964
        %v1003 = vpop.f32.mrf.mxu0
        %v1004 = vadd.f32 0.0, %v1003
        %v1005 = vpop.f32.mrf.mxu0
        %v1006 = vpop.f32.mrf.mxu0
        %v1007 = vpop.f32.mrf.mxu0
        %1008 = vdwg.mxu0
        %v1009 = vsel %vm848, %v1004, -inf
        %1010 = vmax.xlane.f32.xlu0 %v1009
        %v1011 = vpop.xlane.xlu0 %1010
        %v1012 = vsub.f32 %v1004, %v1011
        %v1013 = vmul.f32 %v1012, 1.442695
        %v1014 = vpow.pop %v1013
        %v1015 = vsel %vm848, %v1014, 0.0
        %1016 = vadd.xlane.f32.xlu0 %v1015
        %v1017 = vpop.xlane.xlu0 %1016
        %v1018 = vrcp.pop %v1017
        %v1019 = vmul.f32 1.0, %v1018
        %v1020 = vmul.f32 %v1014, %v1019
        %s1021 = scalar_lea.vmem %s597, 8 [#allocation6]
        %1022 = vst.msk [vmem:[%s1021] sm:$0xff] %vm848, %v1020
        %v1023 = vpack.c.bf16 %v1020, %v1020
        %1025 = vrot.lane.b32.xlu0 %v847, 120
        %v1026 = vpop.permute.xlu0 %1025
        %v1028 = vsel %vm848, %v1023, 0
        %v1031 = vsel %vm912, %v1026, 0
        %1033 = vmatprep.subr.bf16.mxu0 0
        %1034 = vmatpush1.bf16.msra.mxu0 0
        %1035 = vmatprep.subr.bf16.mxu0 0
        %1036 = vmatpush1.bf16.msra.mxu0 0
        %1037 = vmatprep.subr.bf16.mxu0 0
        %1038 = vmatpush1.bf16.msra.mxu0 0
        %1039 = vmatprep.subr.bf16.mxu0 0
        %1040 = vmatpush1.bf16.msra.mxu0 0
        %1041 = vmatprep.subr.bf16.mxu0 0
        %1042 = vmatpush1.bf16.msra.mxu0 0
        %1043 = vmatprep.subr.bf16.mxu0 0
        %1044 = vmatpush1.bf16.msra.mxu0 0
        %1045 = vmatprep.subr.bf16.mxu0 0
        %1046 = vmatpush1.bf16.msra.mxu0 0
        %1047 = vmatprep.subr.bf16.mxu0 0
        %1048 = vmatpush1.bf16.msra.mxu0 %v1031
        %1049 = vmatprep.subr.bf16.mxu0 0
        %1050 = vmatpush2.bf16.msra.mxu0 0
        %1051 = vmatprep.subr.bf16.mxu0 0
        %1052 = vmatpush2.bf16.msra.mxu0 0
        %1053 = vmatprep.subr.bf16.mxu0 0
        %1054 = vmatpush2.bf16.msra.mxu0 0
        %1055 = vmatprep.subr.bf16.mxu0 0
        %1056 = vmatpush2.bf16.msra.mxu0 0
        %1057 = vmatprep.subr.bf16.mxu0 0
        %1058 = vmatpush2.bf16.msra.mxu0 0
        %1059 = vmatprep.subr.bf16.mxu0 0
        %1060 = vmatpush2.bf16.msra.mxu0 0
        %1061 = vmatprep.subr.bf16.mxu0 0
        %1062 = vmatpush2.bf16.msra.mxu0 0
        %1063 = vmatprep.subr.bf16.mxu0 0
        %1064 = vmatpush2.bf16.msra.mxu0 0
        %1065 = vmatprep.mubr.bf16.mxu0 0
        %1066 = vmatmul.mubr.bf16.gmra.mxu0 %v1028
        %v1067 = vpop.f32.mrf.mxu0
        %v1068 = vadd.f32 0.0, %v1067
        %v1069 = vpop.f32.mrf.mxu0
        %v1070 = vpop.f32.mrf.mxu0
        %v1071 = vpop.f32.mrf.mxu0
        %1072 = vdwg.mxu0
        %v1073 = vpack.c.bf16 %v1068, %v1068
        %1075 = vrot.lane.b32.xlu0 %v1073, 8
        %v1076 = vpop.permute.xlu0 %1075
        %v1079 = vsel %vm848, %v956, %v1076
        %v1080 = vld [vmem:[#allocation3] sm:$0xff]
        %v1081 = vld [vmem:[%s621] sm:$0xf]
        %v1082 = vld [vmem:[%s621 + $0x4] sm:$0xf]
        %v1085 = vunpack.c.l.b16 %v1081
        %v1086 = vunpack.c.l.b16 %v1082
        %v1087 = vpack.c.b16 %v1086, %v1085
        %vm1089 = vcmask 130048
        %v1090 = vsel %vm1089, %v1079, 0
        %1092 = vmatprep.subr.bf16.mxu0 0
        %1093 = vmatpush1.bf16.msra.mxu0 0
        %1094 = vmatprep.subr.bf16.mxu0 0
        %1095 = vmatpush1.bf16.msra.mxu0 0
        %1096 = vmatprep.subr.bf16.mxu0 0
        %1097 = vmatpush1.bf16.msra.mxu0 0
        %1098 = vmatprep.subr.bf16.mxu0 0
        %1099 = vmatpush1.bf16.msra.mxu0 0
        %1100 = vmatprep.subr.bf16.mxu0 0
        %1101 = vmatpush1.bf16.msra.mxu0 0
        %1102 = vmatprep.subr.bf16.mxu0 0
        %1103 = vmatpush1.bf16.msra.mxu0 0
        %1104 = vmatprep.subr.bf16.mxu0 0
        %1105 = vmatpush1.bf16.msra.mxu0 0
        %1106 = vmatprep.subr.bf16.mxu0 0
        %1107 = vmatpush1.bf16.msra.mxu0 %v1087
        %1108 = vmatprep.subr.bf16.mxu0 0
        %1109 = vmatpush2.bf16.msra.mxu0 0
        %1110 = vmatprep.subr.bf16.mxu0 0
        %1111 = vmatpush2.bf16.msra.mxu0 0
        %1112 = vmatprep.subr.bf16.mxu0 0
        %1113 = vmatpush2.bf16.msra.mxu0 0
        %1114 = vmatprep.subr.bf16.mxu0 0
        %1115 = vmatpush2.bf16.msra.mxu0 0
        %1116 = vmatprep.subr.bf16.mxu0 0
        %1117 = vmatpush2.bf16.msra.mxu0 0
        %1118 = vmatprep.subr.bf16.mxu0 0
        %1119 = vmatpush2.bf16.msra.mxu0 0
        %1120 = vmatprep.subr.bf16.mxu0 0
        %1121 = vmatpush2.bf16.msra.mxu0 0
        %1122 = vmatprep.subr.bf16.mxu0 0
        %1123 = vmatpush2.bf16.msra.mxu0 0
        %1124 = vmatprep.mubr.bf16.mxu0 0
        %1125 = vmatmul.mubr.bf16.gmra.mxu0 %v1090
        %v1126 = vpop.f32.mrf.mxu0
        %v1127 = vadd.f32 0.0, %v1126
        %v1128 = vpop.f32.mrf.mxu0
        %v1129 = vpop.f32.mrf.mxu0
        %v1130 = vpop.f32.mrf.mxu0
        %1131 = vdwg.mxu0
        %v1132 = vadd.f32 %v1080, %v1127
        %1133 = vst.msk [vmem:[#allocation3] sm:$0xff] %vm689, %v1132
        %p1134 = scmp.eq.s32.totalorder %s39, 1
        // Predicated region
        $region85: #{tpu_custom_call.1} parent=79 // pred_check
          %p1135 = pneg %p1134
        $region86: #{tpu_custom_call.1} parent=79 // pred_check_branch
          %1137 = sbr.rel (%p1135) target = $region88
        $region87: #{tpu_custom_call.1} parent=79 // pred_region
          %v1138 = vld [vmem:[%s601] sm:$0xff]
          %v1139 = vld [vmem:[#allocation3] sm:$0xff]
          %v1140 = vadd.f32 %v1138, %v1139
          %v1141 = vld [vmem:[%s9] sm:$0x1]
          %v1142 = vld [vmem:[%s10] sm:$0x1]
          %v1143 = vsel %vm689, %v1140, 0.0
          %1144 = vadd.xlane.f32.xlu0 %v1143
          %v1145 = vpop.xlane.xlu0 %1144
          %v1146 = vrcp.pop 32.0
          %v1147 = vmul.f32 %v1145, %v1146
          %v1148 = vsub.f32 %v1140, %v1147
          %v1149 = vmul.f32 %v1148, %v1148
          %v1150 = vsel %vm689, %v1149, 0.0
          %1151 = vadd.xlane.f32.xlu0 %v1150
          %v1152 = vpop.xlane.xlu0 %1151
          %v1153 = vmul.f32 %v1152, %v1146
          %v1154 = vadd.f32 %v1153, 1e-05
          %v1155 = vrsqrt.pop %v1154
          %v1156 = vmul.f32 %v1148, %v1155
          %v1158 = vlaneseq
          %v1159 = vshrl.u32 %v1158, 7
          %v1160 = vsub.s32 0, %v1159
          %v1161 = vrot.slane %v1141, %v1160
          %v1163 = vmul.f32 %v1156, %v1161
          %v1165 = vlaneseq
          %v1166 = vshrl.u32 %v1165, 7
          %v1167 = vsub.s32 0, %v1166
          %v1168 = vrot.slane %v1142, %v1167
          %v1170 = vadd.f32 %v1163, %v1168
          %v1171 = vpack.c.bf16 %v1170, %v1170
          %v1172 = vld [vmem:[%s11] sm:$0xf]
          %v1173 = vld [vmem:[%s11 + $0x4] sm:$0xf]
          %v1174 = vld [vmem:[%s11 + $0x8] sm:$0xf]
          %v1175 = vld [vmem:[%s11 + $0xc] sm:$0xf]
          %v1176 = vld [vmem:[%s12] sm:$0x1]
          %v1178 = vlaneseq
          %v1179 = vshrl.u32 %v1178, 7
          %v1180 = vsub.s32 0, %v1179
          %v1181 = vrot.slane %v1176, %v1180
          %v1187 = vunpack.c.l.b16 %v1172
          %v1188 = vunpack.c.l.b16 %v1173
          %v1189 = vunpack.c.l.b16 %v1174
          %v1190 = vunpack.c.l.b16 %v1175
          %v1191 = vpack.c.b16 %v1188, %v1187
          %v1192 = vpack.c.b16 %v1190, %v1189
          %v1196 = vsel %vm689, %v1171, 0
          %1198 = vmatprep.subr.bf16.mxu0 0
          %1199 = vmatpush1.bf16.msra.mxu0 0
          %1200 = vmatprep.subr.bf16.mxu0 0
          %1201 = vmatpush1.bf16.msra.mxu0 0
          %1202 = vmatprep.subr.bf16.mxu0 0
          %1203 = vmatpush1.bf16.msra.mxu0 0
          %1204 = vmatprep.subr.bf16.mxu0 0
          %1205 = vmatpush1.bf16.msra.mxu0 0
          %1206 = vmatprep.subr.bf16.mxu0 0
          %1207 = vmatpush1.bf16.msra.mxu0 0
          %1208 = vmatprep.subr.bf16.mxu0 0
          %1209 = vmatpush1.bf16.msra.mxu0 0
          %1210 = vmatprep.subr.bf16.mxu0 0
          %1211 = vmatpush1.bf16.msra.mxu0 %v1192
          %1212 = vmatprep.subr.bf16.mxu0 0
          %1213 = vmatpush1.bf16.msra.mxu0 %v1191
          %1214 = vmatprep.subr.bf16.mxu0 0
          %1215 = vmatpush2.bf16.msra.mxu0 0
          %1216 = vmatprep.subr.bf16.mxu0 0
          %1217 = vmatpush2.bf16.msra.mxu0 0
          %1218 = vmatprep.subr.bf16.mxu0 0
          %1219 = vmatpush2.bf16.msra.mxu0 0
          %1220 = vmatprep.subr.bf16.mxu0 0
          %1221 = vmatpush2.bf16.msra.mxu0 0
          %1222 = vmatprep.subr.bf16.mxu0 0
          %1223 = vmatpush2.bf16.msra.mxu0 0
          %1224 = vmatprep.subr.bf16.mxu0 0
          %1225 = vmatpush2.bf16.msra.mxu0 0
          %1226 = vmatprep.subr.bf16.mxu0 0
          %1227 = vmatpush2.bf16.msra.mxu0 0
          %1228 = vmatprep.subr.bf16.mxu0 0
          %1229 = vmatpush2.bf16.msra.mxu0 0
          %1230 = vmatprep.mubr.bf16.mxu0 0
          %1231 = vmatmul.mubr.bf16.gmra.mxu0 %v1196
          %v1232 = vpop.f32.mrf.mxu0
          %v1233 = vadd.f32 %v1181, %v1232
          %v1234 = vpop.f32.mrf.mxu0
          %v1235 = vpop.f32.mrf.mxu0
          %v1236 = vpop.f32.mrf.mxu0
          %1237 = vdwg.mxu0
          %v1238 = vmul.f32 %v1233, 0.5
          %v1239 = vmul.f32 %v1233, 0.70710677
          %v1240 = verf.f32.pop %v1239
          %v1241 = vadd.f32 %v1240, 1.0
          %v1242 = vmul.f32 %v1238, %v1241
          %v1243 = vpack.c.bf16 %v1242, %v1242
          %v1244 = vld [vmem:[%s13] sm:$0xf]
          %v1245 = vld [vmem:[%s13 + $0x4] sm:$0xf]
          %v1246 = vld [vmem:[%s13 + $0x8] sm:$0xf]
          %v1247 = vld [vmem:[%s13 + $0xc] sm:$0xf]
          %v1248 = vld [vmem:[%s13 + $0x10] sm:$0xf]
          %v1249 = vld [vmem:[%s13 + $0x14] sm:$0xf]
          %v1250 = vld [vmem:[%s13 + $0x18] sm:$0xf]
          %v1251 = vld [vmem:[%s13 + $0x1c] sm:$0xf]
          %v1252 = vld [vmem:[%s13 + $0x20] sm:$0xf]
          %v1253 = vld [vmem:[%s13 + $0x24] sm:$0xf]
          %v1254 = vld [vmem:[%s13 + $0x28] sm:$0xf]
          %v1255 = vld [vmem:[%s13 + $0x2c] sm:$0xf]
          %v1256 = vld [vmem:[%s13 + $0x30] sm:$0xf]
          %v1257 = vld [vmem:[%s13 + $0x34] sm:$0xf]
          %v1258 = vld [vmem:[%s13 + $0x38] sm:$0xf]
          %v1259 = vld [vmem:[%s13 + $0x3c] sm:$0xf]
          %v1260 = vld [vmem:[%s14] sm:$0x1]
          %v1262 = vlaneseq
          %v1263 = vshrl.u32 %v1262, 7
          %v1264 = vsub.s32 0, %v1263
          %v1265 = vrot.slane %v1260, %v1264
          %v1283 = vunpack.c.l.b16 %v1244
          %v1284 = vunpack.c.l.b16 %v1245
          %v1285 = vunpack.c.l.b16 %v1246
          %v1286 = vunpack.c.l.b16 %v1247
          %v1287 = vunpack.c.l.b16 %v1248
          %v1288 = vunpack.c.l.b16 %v1249
          %v1289 = vunpack.c.l.b16 %v1250
          %v1290 = vunpack.c.l.b16 %v1251
          %v1291 = vunpack.c.l.b16 %v1252
          %v1292 = vunpack.c.l.b16 %v1253
          %v1293 = vunpack.c.l.b16 %v1254
          %v1294 = vunpack.c.l.b16 %v1255
          %v1295 = vunpack.c.l.b16 %v1256
          %v1296 = vunpack.c.l.b16 %v1257
          %v1297 = vunpack.c.l.b16 %v1258
          %v1298 = vunpack.c.l.b16 %v1259
          %v1299 = vpack.c.b16 %v1284, %v1283
          %v1300 = vpack.c.b16 %v1286, %v1285
          %v1301 = vpack.c.b16 %v1288, %v1287
          %v1302 = vpack.c.b16 %v1290, %v1289
          %v1303 = vpack.c.b16 %v1292, %v1291
          %v1304 = vpack.c.b16 %v1294, %v1293
          %v1305 = vpack.c.b16 %v1296, %v1295
          %v1306 = vpack.c.b16 %v1298, %v1297
          %1315 = vmatprep.subr.bf16.mxu0 0
          %1316 = vmatpush1.bf16.msra.mxu0 %v1306
          %1317 = vmatprep.subr.bf16.mxu0 0
          %1318 = vmatpush1.bf16.msra.mxu0 %v1305
          %1319 = vmatprep.subr.bf16.mxu0 0
          %1320 = vmatpush1.bf16.msra.mxu0 %v1304
          %1321 = vmatprep.subr.bf16.mxu0 0
          %1322 = vmatpush1.bf16.msra.mxu0 %v1303
          %1323 = vmatprep.subr.bf16.mxu0 0
          %1324 = vmatpush1.bf16.msra.mxu0 %v1302
          %1325 = vmatprep.subr.bf16.mxu0 0
          %1326 = vmatpush1.bf16.msra.mxu0 %v1301
          %1327 = vmatprep.subr.bf16.mxu0 0
          %1328 = vmatpush1.bf16.msra.mxu0 %v1300
          %1329 = vmatprep.subr.bf16.mxu0 0
          %1330 = vmatpush1.bf16.msra.mxu0 %v1299
          %1331 = vmatprep.subr.bf16.mxu0 0
          %1332 = vmatpush2.bf16.msra.mxu0 0
          %1333 = vmatprep.subr.bf16.mxu0 0
          %1334 = vmatpush2.bf16.msra.mxu0 0
          %1335 = vmatprep.subr.bf16.mxu0 0
          %1336 = vmatpush2.bf16.msra.mxu0 0
          %1337 = vmatprep.subr.bf16.mxu0 0
          %1338 = vmatpush2.bf16.msra.mxu0 0
          %1339 = vmatprep.subr.bf16.mxu0 0
          %1340 = vmatpush2.bf16.msra.mxu0 0
          %1341 = vmatprep.subr.bf16.mxu0 0
          %1342 = vmatpush2.bf16.msra.mxu0 0
          %1343 = vmatprep.subr.bf16.mxu0 0
          %1344 = vmatpush2.bf16.msra.mxu0 0
          %1345 = vmatprep.subr.bf16.mxu0 0
          %1346 = vmatpush2.bf16.msra.mxu0 0
          %1347 = vmatprep.mubr.bf16.mxu0 0
          %1348 = vmatmul.mubr.bf16.gmra.mxu0 %v1243
          %v1349 = vpop.f32.mrf.mxu0
          %v1350 = vadd.f32 %v1265, %v1349
          %v1351 = vpop.f32.mrf.mxu0
          %v1352 = vpop.f32.mrf.mxu0
          %v1353 = vpop.f32.mrf.mxu0
          %1354 = vdwg.mxu0
          %v1355 = vadd.f32 %v1140, %v1350
          %1356 = vst.msk [vmem:[%s590] sm:$0xff] %vm689, %v1355
        $region88: #{tpu_custom_call.1} parent=79 // pred_fallthru
          _
        %s1357 = sand.u32 %s394, 1
        %s1358 = scalar_lea.sflag [#allocation5], %s1357
        %s1359 = sand.u32 %s394, 1
        %s1360 = smul.addr %s1359, 8
        %s1361 = scalar_lea.vmem [#allocation4], %s1360
        %s1362 = sand.u32 %s422, 1
        %s1363 = scalar_lea.sflag [#allocation7], %s1362
        %s1364 = sand.u32 %s422, 1
        %s1365 = smul.addr %s1364, 16
        %s1366 = scalar_lea.vmem [#allocation6], %s1365
        // Predicated region
        $region89: #{tpu_custom_call.1} parent=79 // pred_check
          %p1367 = pneg %p404
        $region90: #{tpu_custom_call.1} parent=79 // pred_check_branch
          %1369 = sbr.rel (%p1367) target = $region92
        $region91: #{tpu_custom_call.1} parent=79 // pred_region
          %s1371 = ssub.s32 128, 128
          %1372 = vsyncadd %s1358, %s1371
          %s1373 = smul.addr %s38, 128
          %s1374 = scalar_lea.hbm %s15, %s1373
          %s1376 = sshll.u32 %s1361, 4
          %s1377 = int_to_ptr.vmem [resolvable:$true] %s1376
          %1379 = dma.vmem_to_hbm [thread:$0]  %s1377, 128, %s1374, %s1358
        $region92: #{tpu_custom_call.1} parent=79 // pred_fallthru
          _
        // Predicated region
        $region93: #{tpu_custom_call.1} parent=79 // pred_check
          %p1380 = pneg %p432
        $region94: #{tpu_custom_call.1} parent=79 // pred_check_branch
          %1382 = sbr.rel (%p1380) target = $region96
        $region95: #{tpu_custom_call.1} parent=79 // pred_region
          %s1383 = smul.u32 2, %s39
          %s1385 = ssub.s32 256, 256
          %1386 = vsyncadd %s1363, %s1385
          %s1387 = smul.addr %s38, 4
          %s1388 = sadd.s32 %s1383, %s1387
          %s1389 = smul.addr %s1388, 128
          %s1390 = scalar_lea.hbm %s16, %s1389
          %s1391 = sshll.u32 %s1366, 4
          %s1392 = int_to_ptr.vmem [resolvable:$true] %s1391
          %1397 = dma.vmem_to_hbm [thread:$0]  %s1392, 256, %s1390, %s1363, 128, 128, 8
        $region96: #{tpu_custom_call.1} parent=79 // pred_fallthru
          _
      $region80: #{tpu_custom_call.1} parent=5 // pred_fallthru
        _
      %p1398 = scmp.le.s32.totalorder 2, %s29
      // Predicated region
      $region97: #{tpu_custom_call.1} parent=5 // pred_check
        %p1399 = pneg %p1398
      $region98: #{tpu_custom_call.1} parent=5 // pred_check_branch
        %1401 = sbr.rel (%p1399) target = $region100
      $region99: #{tpu_custom_call.1} parent=5 // pred_region
        %s1402 = ssub.s32 %s29, 2
        // Predicated region
        $region101: #{tpu_custom_call.1} parent=99 // pred_check
          %p1403 = pneg %p410
        $region102: #{tpu_custom_call.1} parent=99 // pred_check_branch
          %1405 = sbr.rel (%p1403) target = $region104
        $region103: #{tpu_custom_call.1} parent=99 // pred_region
          %s1406 = sand.u32 %s395, 1
          %s1407 = scalar_lea.sflag [#allocation5], %s1406
          %s1408 = sand.u32 %s395, 1
          %s1409 = smul.addr %s1408, 8
          %s1410 = scalar_lea.vmem [#allocation4], %s1409
          %1411 = dma.done %s1407, 128
        $region104: #{tpu_custom_call.1} parent=99 // pred_fallthru
          _
        // Predicated region
        $region105: #{tpu_custom_call.1} parent=99 // pred_check
          %p1412 = pneg %p438
        $region106: #{tpu_custom_call.1} parent=99 // pred_check_branch
          %1414 = sbr.rel (%p1412) target = $region108
        $region107: #{tpu_custom_call.1} parent=99 // pred_region
          %s1415 = sand.u32 %s423, 1
          %s1416 = scalar_lea.sflag [#allocation7], %s1415
          %s1417 = sand.u32 %s423, 1
          %s1418 = smul.addr %s1417, 16
          %s1419 = scalar_lea.vmem [#allocation6], %s1418
          %1420 = dma.done %s1416, 256
        $region108: #{tpu_custom_call.1} parent=99 // pred_fallthru
          _
      $region100: #{tpu_custom_call.1} parent=5 // pred_fallthru
        _
    $region6: #{tpu_custom_call.1} parent=1 // loop_footer
      %s33 = sadd.s32 1, %s29
    $region7: #{tpu_custom_call.1} parent=1 // loop_footer_branch
      %28 = sbr.rel target = $region3
    $region8: #{tpu_custom_call.1} parent=1 // loop_exit
      _
    %1421 = vsyncpa [#allocation5], 1
    %s1422 = scalar_lea.sflag [#allocation5], 1
    %1423 = vsyncpa %s1422, 1
    %1424 = vsyncpa [#allocation7], 1
    %s1425 = scalar_lea.sflag [#allocation7], 1
    %1426 = vsyncpa %s1425, 1

</llo_original>
